<compile_context>
chip_gen: v5e
topology: v5e:2x2
jax: 0.10.0
libtpu: 0.0.40
codegen_flags: <defaults>
</compile_context>

<pallas_src>
import functools

import jax
import jax.numpy as jnp
from jax.experimental import pallas as pl
from jax.experimental.pallas import tpu as pltpu

_LN2 = 0.6931471805599453


def _act(x):
    # Shifted softplus: softplus(x) - ln(2), computed in f32.
    # TODO(synk): the constant "-ln2" could be folded into the following
    # linear's bias (b' = b - ln2 * W.sum(0)) if the EUP/VPU slot ever binds.
    return jax.nn.softplus(x) - jnp.float32(_LN2)


def residual_mlp_kernel(x_ref, w1_ref, b1_ref, w2_ref, b2_ref, wf_ref, bf_ref,
                        o_ref, *, num_residual):
    # Row tile in f32 for activations / residual accumulation.
    x = x_ref[...].astype(jnp.float32)
    # Weights arrive pre-cast to bf16; MXU runs bf16 x bf16 -> f32 accumulate.
    # Small static residual stack: unrolled Python loop (static indices).
    for r in range(num_residual):
        y = _act(x).astype(jnp.bfloat16)
        y = jnp.dot(y, w1_ref[r], preferred_element_type=jnp.float32) + b1_ref[r]
        y = _act(y).astype(jnp.bfloat16)
        y = jnp.dot(y, w2_ref[r], preferred_element_type=jnp.float32) + b2_ref[r]
        x = x + y
    y = _act(x).astype(jnp.bfloat16)
    y = jnp.dot(y, wf_ref[...], preferred_element_type=jnp.float32) + bf_ref[...]
    o_ref[...] = y.astype(o_ref.dtype)


def residual_mlp(x, w1, b1, w2, b2, wf, bf, *, tile_n=256):
    """x: [N, F]; w1/w2: [R, F, F] (pre-transposed for y @ W); b1/b2: [R, F];
    wf: [F, F]; bf: [1, F]."""
    N, F = x.shape
    R = w1.shape[0]
    assert N % tile_n == 0, "N must be divisible by tile_n"
    assert tile_n % 8 == 0, "tile_n must be a multiple of 8 sublanes"
    assert F % 128 == 0, "pad num_features to a multiple of 128 lanes"

    # bf16 MXU operands; biases stay f32 (added after the f32-accumulated dot).
    w1b = w1.astype(jnp.bfloat16)
    w2b = w2.astype(jnp.bfloat16)
    wfb = wf.astype(jnp.bfloat16)
    b1f = b1.astype(jnp.float32)
    b2f = b2.astype(jnp.float32)
    bff = bf.astype(jnp.float32)

    kernel = functools.partial(residual_mlp_kernel, num_residual=R)

    # Advisory cost estimate for XLA scheduling around the call.
    flops = 2 * N * F * F * (2 * R + 1)
    transcendentals = 2 * N * F * (2 * R + 1)          # softplus ~ exp + log1p
    bytes_accessed = ((2 * R + 1) * F * F * 2          # bf16 weights
                      + (2 * R + 1) * F * 4            # f32 biases
                      + 2 * N * F * 4)                 # x in + out (f32)
    cost = pl.CostEstimate(flops=flops, transcendentals=transcendentals,
                           bytes_accessed=bytes_accessed)

    # VMEM budget: double-buffered x/out tiles + (grid-invariant, but still
    # double-buffered by default) weight stacks, plus slack for scratch.
    vmem_bytes = (2 * 2 * tile_n * F * 4
                  + 2 * ((2 * R + 1) * F * F * 2 + (2 * R + 1) * F * 4)
                  + (2 << 20))
    vmem_limit = int(min(max(2 * vmem_bytes, 32 * 1024 * 1024),
                         48 * 1024 * 1024))            # stay inside v7x 64 MiB

    return pl.pallas_call(
        kernel,
        out_shape=jax.ShapeDtypeStruct((N, F), x.dtype),
        grid_spec=pltpu.PrefetchScalarGridSpec(
            num_scalar_prefetch=0,
            grid=(N // tile_n,),
            in_specs=[
                pl.BlockSpec((tile_n, F), lambda i: (i, 0)),    # x row tile
                pl.BlockSpec((R, F, F), lambda i: (0, 0, 0)),   # W1 stack (bf16)
                pl.BlockSpec((R, F), lambda i: (0, 0)),         # b1 stack
                pl.BlockSpec((R, F, F), lambda i: (0, 0, 0)),   # W2 stack (bf16)
                pl.BlockSpec((R, F), lambda i: (0, 0)),         # b2 stack
                pl.BlockSpec((F, F), lambda i: (0, 0)),         # final W (bf16)
                pl.BlockSpec((1, F), lambda i: (0, 0)),         # final bias
            ],
            out_specs=pl.BlockSpec((tile_n, F), lambda i: (i, 0)),
        ),
        compiler_params=pltpu.CompilerParams(
            dimension_semantics=("parallel",),
            vmem_limit_bytes=vmem_limit),
        cost_estimate=cost,
    )(x, w1b, b1f, w2b, b2f, wfb, bff)


def residual_mlp_ref(x, w1, b1, w2, b2, wf, bf, *, matmul_dtype=jnp.float32):
    """Pure-JAX reference. matmul_dtype lets us mirror the kernel's bf16
    MXU-operand path exactly (f32 accumulation either way)."""
    x = x.astype(jnp.float32)
    for r in range(w1.shape[0]):
        y = _act(x).astype(matmul_dtype)
        y = jnp.dot(y, w1[r].astype(matmul_dtype),
                    preferred_element_type=jnp.float32) + b1[r]
        y = _act(y).astype(matmul_dtype)
        y = jnp.dot(y, w2[r].astype(matmul_dtype),
                    preferred_element_type=jnp.float32) + b2[r]
        x = x + y
    y = _act(x).astype(matmul_dtype)
    return jnp.dot(y, wf.astype(matmul_dtype),
                   preferred_element_type=jnp.float32) + bf


if __name__ == "__main__":
    N = 512      # number of atoms (2 grid steps of 256 -> both v7x TCs busy)
    F = 128      # num_features, lane-dense
    R = 2        # num_residual
    TILE_N = 256

    key = jax.random.PRNGKey(0)
    kx, k1, k2, kf = jax.random.split(key, 4)

    x = jax.random.normal(kx, (N, F), dtype=jnp.float32)

    scale = 1.0 / jnp.sqrt(jnp.float32(F))
    w1 = jax.random.normal(k1, (R, F, F), dtype=jnp.float32) * scale
    w2 = jax.random.normal(k2, (R, F, F), dtype=jnp.float32) * scale
    b1 = jnp.zeros((R, F), dtype=jnp.float32)
    b2 = jnp.zeros((R, F), dtype=jnp.float32)
    wf = jax.random.normal(kf, (F, F), dtype=jnp.float32) * scale
    bf = jnp.zeros((1, F), dtype=jnp.float32)

    out = residual_mlp(x, w1, b1, w2, b2, wf, bf, tile_n=TILE_N)
    out = jax.block_until_ready(out)
    assert out.shape == (N, F)

    # Exact-path check: reference with the same bf16 matmul operands.
    ref_bf16 = residual_mlp_ref(x, w1, b1, w2, b2, wf, bf,
                                matmul_dtype=jnp.bfloat16)
    assert jnp.allclose(out, ref_bf16, atol=1e-2, rtol=1e-2), \
        "mismatch vs bf16-operand reference"

    # Loose sanity check against the full-f32 reference (bf16 MXU operands add
    # ~1e-2 relative error through the residual chain).
    ref_f32 = residual_mlp_ref(x, w1, b1, w2, b2, wf, bf,
                               matmul_dtype=jnp.float32)
    assert jnp.allclose(out, ref_f32, atol=1e-1, rtol=1e-1), \
        "mismatch vs f32 reference"

    print("KERNEL_OK")
</pallas_src>

<mosaic_0001>
module attributes {stable_mosaic.version = 11 : i64} {
  func.func @residual_mlp_kernel(%arg0: i32, %arg1: memref<256x128xf32, #tpu.memory_space<vmem>>, %arg2: memref<2x128x128xbf16, #tpu.memory_space<vmem>>, %arg3: memref<2x128xf32, #tpu.memory_space<vmem>>, %arg4: memref<2x128x128xbf16, #tpu.memory_space<vmem>>, %arg5: memref<2x128xf32, #tpu.memory_space<vmem>>, %arg6: memref<128x128xbf16, #tpu.memory_space<vmem>>, %arg7: memref<1x128xf32, #tpu.memory_space<vmem>>, %arg8: memref<256x128xf32, #tpu.memory_space<vmem>>) attributes {dimension_semantics = [#tpu.dimension_semantics<parallel>], iteration_bounds = array<i64: 2>, scalar_prefetch = 0 : i64, scratch_operands = 0 : i64, tpu.core_type = #tpu.core_type<tc>, window_params = [{transform_indices = @transform_0, window_bounds = array<i64: 256, 128>}, {pipeline_mode = #tpu.pipeline_mode<synchronous>, transform_indices = @transform_1, window_bounds = array<i64: 2, 128, 128>}, {pipeline_mode = #tpu.pipeline_mode<synchronous>, transform_indices = @transform_2, window_bounds = array<i64: 2, 128>}, {pipeline_mode = #tpu.pipeline_mode<synchronous>, transform_indices = @transform_3, window_bounds = array<i64: 2, 128, 128>}, {pipeline_mode = #tpu.pipeline_mode<synchronous>, transform_indices = @transform_4, window_bounds = array<i64: 2, 128>}, {pipeline_mode = #tpu.pipeline_mode<synchronous>, transform_indices = @transform_5, window_bounds = array<i64: 128, 128>}, {pipeline_mode = #tpu.pipeline_mode<synchronous>, transform_indices = @transform_6, window_bounds = array<i64: 1, 128>}, {transform_indices = @transform_7, window_bounds = array<i64: 256, 128>}]} {
    %c0 = arith.constant 0 : index
    %c0_0 = arith.constant 0 : index
    %0 = vector.load %arg1[%c0, %c0_0] : memref<256x128xf32, #tpu.memory_space<vmem>>, vector<256x128xf32>
    %cst = arith.constant 0.000000e+00 : f32
    %1 = vector.broadcast %cst : f32 to vector<256x128xf32>
    %2 = arith.maximumf %0, %1 : vector<256x128xf32>
    %3 = vector.broadcast %cst : f32 to vector<256x128xf32>
    %4 = arith.subf %0, %3 : vector<256x128xf32>
    %5 = arith.cmpf one, %4, %4 : vector<256x128xf32>
    %6 = vector.broadcast %cst : f32 to vector<256x128xf32>
    %7 = arith.addf %0, %6 : vector<256x128xf32>
    %8 = math.absf %4 : vector<256x128xf32>
    %cst_1 = arith.constant 0.000000e+00 : f32
    %9 = vector.broadcast %cst_1 : f32 to vector<256x128xf32>
    %10 = arith.subf %9, %8 : vector<256x128xf32>
    %11 = math.exp %10 : vector<256x128xf32>
    %12 = math.log1p %11 : vector<256x128xf32>
    %13 = arith.addf %2, %12 : vector<256x128xf32>
    %14 = arith.select %5, %7, %13 : vector<256x128xi1>, vector<256x128xf32>
    %cst_2 = arith.constant 0.693147182 : f32
    %15 = vector.broadcast %cst_2 : f32 to vector<256x128xf32>
    %16 = arith.subf %14, %15 : vector<256x128xf32>
    %17 = arith.truncf %16 : vector<256x128xf32> to vector<256x128xbf16>
    %c0_3 = arith.constant 0 : index
    %c0_4 = arith.constant 0 : index
    %c0_5 = arith.constant 0 : index
    %18 = vector.load %arg2[%c0_3, %c0_4, %c0_5] : memref<2x128x128xbf16, #tpu.memory_space<vmem>>, vector<1x128x128xbf16>
    %19 = vector.shape_cast %18 : vector<1x128x128xbf16> to vector<128x128xbf16>
    %cst_6 = arith.constant dense<0.000000e+00> : vector<256x128xf32>
    %20 = tpu.matmul %17, %19, %cst_6 {dimension_numbers = #tpu.dot_dimension_numbers<[1], [0], [0], [1], [0, 0, 1, 1], [], []>} : vector<256x128xbf16>, vector<128x128xbf16>, vector<256x128xf32> -> vector<256x128xf32>
    %c0_7 = arith.constant 0 : index
    %c0_8 = arith.constant 0 : index
    %21 = vector.load %arg3[%c0_7, %c0_8] : memref<2x128xf32, #tpu.memory_space<vmem>>, vector<1x128xf32>
    %22 = vector.shape_cast %21 : vector<1x128xf32> to vector<128xf32>
    %23 = vector.shape_cast %22 : vector<128xf32> to vector<1x128xf32>
    %24 = vector.broadcast %23 : vector<1x128xf32> to vector<256x128xf32>
    %25 = arith.addf %20, %24 : vector<256x128xf32>
    %cst_9 = arith.constant 0.000000e+00 : f32
    %26 = vector.broadcast %cst_9 : f32 to vector<256x128xf32>
    %27 = arith.maximumf %25, %26 : vector<256x128xf32>
    %28 = vector.broadcast %cst_9 : f32 to vector<256x128xf32>
    %29 = arith.subf %25, %28 : vector<256x128xf32>
    %30 = arith.cmpf one, %29, %29 : vector<256x128xf32>
    %31 = vector.broadcast %cst_9 : f32 to vector<256x128xf32>
    %32 = arith.addf %25, %31 : vector<256x128xf32>
    %33 = math.absf %29 : vector<256x128xf32>
    %cst_10 = arith.constant 0.000000e+00 : f32
    %34 = vector.broadcast %cst_10 : f32 to vector<256x128xf32>
    %35 = arith.subf %34, %33 : vector<256x128xf32>
    %36 = math.exp %35 : vector<256x128xf32>
    %37 = math.log1p %36 : vector<256x128xf32>
    %38 = arith.addf %27, %37 : vector<256x128xf32>
    %39 = arith.select %30, %32, %38 : vector<256x128xi1>, vector<256x128xf32>
    %cst_11 = arith.constant 0.693147182 : f32
    %40 = vector.broadcast %cst_11 : f32 to vector<256x128xf32>
    %41 = arith.subf %39, %40 : vector<256x128xf32>
    %42 = arith.truncf %41 : vector<256x128xf32> to vector<256x128xbf16>
    %c0_12 = arith.constant 0 : index
    %c0_13 = arith.constant 0 : index
    %c0_14 = arith.constant 0 : index
    %43 = vector.load %arg4[%c0_12, %c0_13, %c0_14] : memref<2x128x128xbf16, #tpu.memory_space<vmem>>, vector<1x128x128xbf16>
    %44 = vector.shape_cast %43 : vector<1x128x128xbf16> to vector<128x128xbf16>
    %cst_15 = arith.constant dense<0.000000e+00> : vector<256x128xf32>
    %45 = tpu.matmul %42, %44, %cst_15 {dimension_numbers = #tpu.dot_dimension_numbers<[1], [0], [0], [1], [0, 0, 1, 1], [], []>} : vector<256x128xbf16>, vector<128x128xbf16>, vector<256x128xf32> -> vector<256x128xf32>
    %c0_16 = arith.constant 0 : index
    %c0_17 = arith.constant 0 : index
    %46 = vector.load %arg5[%c0_16, %c0_17] : memref<2x128xf32, #tpu.memory_space<vmem>>, vector<1x128xf32>
    %47 = vector.shape_cast %46 : vector<1x128xf32> to vector<128xf32>
    %48 = vector.shape_cast %47 : vector<128xf32> to vector<1x128xf32>
    %49 = vector.broadcast %48 : vector<1x128xf32> to vector<256x128xf32>
    %50 = arith.addf %45, %49 : vector<256x128xf32>
    %51 = arith.addf %0, %50 : vector<256x128xf32>
    %cst_18 = arith.constant 0.000000e+00 : f32
    %52 = vector.broadcast %cst_18 : f32 to vector<256x128xf32>
    %53 = arith.maximumf %51, %52 : vector<256x128xf32>
    %54 = vector.broadcast %cst_18 : f32 to vector<256x128xf32>
    %55 = arith.subf %51, %54 : vector<256x128xf32>
    %56 = arith.cmpf one, %55, %55 : vector<256x128xf32>
    %57 = vector.broadcast %cst_18 : f32 to vector<256x128xf32>
    %58 = arith.addf %51, %57 : vector<256x128xf32>
    %59 = math.absf %55 : vector<256x128xf32>
    %cst_19 = arith.constant 0.000000e+00 : f32
    %60 = vector.broadcast %cst_19 : f32 to vector<256x128xf32>
    %61 = arith.subf %60, %59 : vector<256x128xf32>
    %62 = math.exp %61 : vector<256x128xf32>
    %63 = math.log1p %62 : vector<256x128xf32>
    %64 = arith.addf %53, %63 : vector<256x128xf32>
    %65 = arith.select %56, %58, %64 : vector<256x128xi1>, vector<256x128xf32>
    %cst_20 = arith.constant 0.693147182 : f32
    %66 = vector.broadcast %cst_20 : f32 to vector<256x128xf32>
    %67 = arith.subf %65, %66 : vector<256x128xf32>
    %68 = arith.truncf %67 : vector<256x128xf32> to vector<256x128xbf16>
    %c1 = arith.constant 1 : index
    %c0_21 = arith.constant 0 : index
    %c0_22 = arith.constant 0 : index
    %69 = vector.load %arg2[%c1, %c0_21, %c0_22] : memref<2x128x128xbf16, #tpu.memory_space<vmem>>, vector<1x128x128xbf16>
    %70 = vector.shape_cast %69 : vector<1x128x128xbf16> to vector<128x128xbf16>
    %cst_23 = arith.constant dense<0.000000e+00> : vector<256x128xf32>
    %71 = tpu.matmul %68, %70, %cst_23 {dimension_numbers = #tpu.dot_dimension_numbers<[1], [0], [0], [1], [0, 0, 1, 1], [], []>} : vector<256x128xbf16>, vector<128x128xbf16>, vector<256x128xf32> -> vector<256x128xf32>
    %c1_24 = arith.constant 1 : index
    %c0_25 = arith.constant 0 : index
    %72 = vector.load %arg3[%c1_24, %c0_25] : memref<2x128xf32, #tpu.memory_space<vmem>>, vector<1x128xf32>
    %73 = vector.shape_cast %72 : vector<1x128xf32> to vector<128xf32>
    %74 = vector.shape_cast %73 : vector<128xf32> to vector<1x128xf32>
    %75 = vector.broadcast %74 : vector<1x128xf32> to vector<256x128xf32>
    %76 = arith.addf %71, %75 : vector<256x128xf32>
    %cst_26 = arith.constant 0.000000e+00 : f32
    %77 = vector.broadcast %cst_26 : f32 to vector<256x128xf32>
    %78 = arith.maximumf %76, %77 : vector<256x128xf32>
    %79 = vector.broadcast %cst_26 : f32 to vector<256x128xf32>
    %80 = arith.subf %76, %79 : vector<256x128xf32>
    %81 = arith.cmpf one, %80, %80 : vector<256x128xf32>
    %82 = vector.broadcast %cst_26 : f32 to vector<256x128xf32>
    %83 = arith.addf %76, %82 : vector<256x128xf32>
    %84 = math.absf %80 : vector<256x128xf32>
    %cst_27 = arith.constant 0.000000e+00 : f32
    %85 = vector.broadcast %cst_27 : f32 to vector<256x128xf32>
    %86 = arith.subf %85, %84 : vector<256x128xf32>
    %87 = math.exp %86 : vector<256x128xf32>
    %88 = math.log1p %87 : vector<256x128xf32>
    %89 = arith.addf %78, %88 : vector<256x128xf32>
    %90 = arith.select %81, %83, %89 : vector<256x128xi1>, vector<256x128xf32>
    %cst_28 = arith.constant 0.693147182 : f32
    %91 = vector.broadcast %cst_28 : f32 to vector<256x128xf32>
    %92 = arith.subf %90, %91 : vector<256x128xf32>
    %93 = arith.truncf %92 : vector<256x128xf32> to vector<256x128xbf16>
    %c1_29 = arith.constant 1 : index
    %c0_30 = arith.constant 0 : index
    %c0_31 = arith.constant 0 : index
    %94 = vector.load %arg4[%c1_29, %c0_30, %c0_31] : memref<2x128x128xbf16, #tpu.memory_space<vmem>>, vector<1x128x128xbf16>
    %95 = vector.shape_cast %94 : vector<1x128x128xbf16> to vector<128x128xbf16>
    %cst_32 = arith.constant dense<0.000000e+00> : vector<256x128xf32>
    %96 = tpu.matmul %93, %95, %cst_32 {dimension_numbers = #tpu.dot_dimension_numbers<[1], [0], [0], [1], [0, 0, 1, 1], [], []>} : vector<256x128xbf16>, vector<128x128xbf16>, vector<256x128xf32> -> vector<256x128xf32>
    %c1_33 = arith.constant 1 : index
    %c0_34 = arith.constant 0 : index
    %97 = vector.load %arg5[%c1_33, %c0_34] : memref<2x128xf32, #tpu.memory_space<vmem>>, vector<1x128xf32>
    %98 = vector.shape_cast %97 : vector<1x128xf32> to vector<128xf32>
    %99 = vector.shape_cast %98 : vector<128xf32> to vector<1x128xf32>
    %100 = vector.broadcast %99 : vector<1x128xf32> to vector<256x128xf32>
    %101 = arith.addf %96, %100 : vector<256x128xf32>
    %102 = arith.addf %51, %101 : vector<256x128xf32>
    %cst_35 = arith.constant 0.000000e+00 : f32
    %103 = vector.broadcast %cst_35 : f32 to vector<256x128xf32>
    %104 = arith.maximumf %102, %103 : vector<256x128xf32>
    %105 = vector.broadcast %cst_35 : f32 to vector<256x128xf32>
    %106 = arith.subf %102, %105 : vector<256x128xf32>
    %107 = arith.cmpf one, %106, %106 : vector<256x128xf32>
    %108 = vector.broadcast %cst_35 : f32 to vector<256x128xf32>
    %109 = arith.addf %102, %108 : vector<256x128xf32>
    %110 = math.absf %106 : vector<256x128xf32>
    %cst_36 = arith.constant 0.000000e+00 : f32
    %111 = vector.broadcast %cst_36 : f32 to vector<256x128xf32>
    %112 = arith.subf %111, %110 : vector<256x128xf32>
    %113 = math.exp %112 : vector<256x128xf32>
    %114 = math.log1p %113 : vector<256x128xf32>
    %115 = arith.addf %104, %114 : vector<256x128xf32>
    %116 = arith.select %107, %109, %115 : vector<256x128xi1>, vector<256x128xf32>
    %cst_37 = arith.constant 0.693147182 : f32
    %117 = vector.broadcast %cst_37 : f32 to vector<256x128xf32>
    %118 = arith.subf %116, %117 : vector<256x128xf32>
    %119 = arith.truncf %118 : vector<256x128xf32> to vector<256x128xbf16>
    %c0_38 = arith.constant 0 : index
    %c0_39 = arith.constant 0 : index
    %120 = vector.load %arg6[%c0_38, %c0_39] : memref<128x128xbf16, #tpu.memory_space<vmem>>, vector<128x128xbf16>
    %cst_40 = arith.constant dense<0.000000e+00> : vector<256x128xf32>
    %121 = tpu.matmul %119, %120, %cst_40 {dimension_numbers = #tpu.dot_dimension_numbers<[1], [0], [0], [1], [0, 0, 1, 1], [], []>} : vector<256x128xbf16>, vector<128x128xbf16>, vector<256x128xf32> -> vector<256x128xf32>
    %c0_41 = arith.constant 0 : index
    %c0_42 = arith.constant 0 : index
    %122 = vector.load %arg7[%c0_41, %c0_42] : memref<1x128xf32, #tpu.memory_space<vmem>>, vector<1x128xf32>
    %123 = vector.broadcast %122 : vector<1x128xf32> to vector<256x128xf32>
    %124 = arith.addf %121, %123 : vector<256x128xf32>
    %c0_43 = arith.constant 0 : index
    %c0_44 = arith.constant 0 : index
    %125 = vector.load %arg8[%c0_43, %c0_44] : memref<256x128xf32, #tpu.memory_space<vmem>>, vector<256x128xf32>
    tpu.vector_store %arg8[%c0_43, %c0_44], %124 {strides = array<i32>} : memref<256x128xf32, #tpu.memory_space<vmem>>, vector<256x128xf32>,
    return
  }
  func.func @transform_0(%arg0: i32) -> (i32, i32) {
    %c0_i32 = arith.constant 0 : i32
    %c0_i32_0 = arith.constant 0 : i32
    return %arg0, %c0_i32 : i32, i32
  }
  func.func @transform_1(%arg0: i32) -> (i32, i32, i32) {
    %c0_i32 = arith.constant 0 : i32
    %c0_i32_0 = arith.constant 0 : i32
    %c0_i32_1 = arith.constant 0 : i32
    %c0_i32_2 = arith.constant 0 : i32
    return %c0_i32, %c0_i32_0, %c0_i32_1 : i32, i32, i32
  }
  func.func @transform_2(%arg0: i32) -> (i32, i32) {
    %c0_i32 = arith.constant 0 : i32
    %c0_i32_0 = arith.constant 0 : i32
    %c0_i32_1 = arith.constant 0 : i32
    return %c0_i32, %c0_i32_0 : i32, i32
  }
  func.func @transform_3(%arg0: i32) -> (i32, i32, i32) {
    %c0_i32 = arith.constant 0 : i32
    %c0_i32_0 = arith.constant 0 : i32
    %c0_i32_1 = arith.constant 0 : i32
    %c0_i32_2 = arith.constant 0 : i32
    return %c0_i32, %c0_i32_0, %c0_i32_1 : i32, i32, i32
  }
  func.func @transform_4(%arg0: i32) -> (i32, i32) {
    %c0_i32 = arith.constant 0 : i32
    %c0_i32_0 = arith.constant 0 : i32
    %c0_i32_1 = arith.constant 0 : i32
    return %c0_i32, %c0_i32_0 : i32, i32
  }
  func.func @transform_5(%arg0: i32) -> (i32, i32) {
    %c0_i32 = arith.constant 0 : i32
    %c0_i32_0 = arith.constant 0 : i32
    %c0_i32_1 = arith.constant 0 : i32
    return %c0_i32, %c0_i32_0 : i32, i32
  }
  func.func @transform_6(%arg0: i32) -> (i32, i32) {
    %c0_i32 = arith.constant 0 : i32
    %c0_i32_0 = arith.constant 0 : i32
    %c0_i32_1 = arith.constant 0 : i32
    return %c0_i32, %c0_i32_0 : i32, i32
  }
  func.func @transform_7(%arg0: i32) -> (i32, i32) {
    %c0_i32 = arith.constant 0 : i32
    %c0_i32_0 = arith.constant 0 : i32
    return %arg0, %c0_i32 : i32, i32
  }
}

</mosaic_0001>

<llo_original>
// kernel: tpu_custom_call.1
$region0: #{tpu_custom_call.1}
  #allocation0 [shape = 'u32[]', space=smem, size = 0x4, offset = 0x4, fixed_abs, tag = 'smem constant byte address 0x4 - core index']
  #allocation1 [shape = 'u32[72,128]{1,0:T(1,128)}', space=vmem, size = 0x9000, scoped, tag = 'internal scratch']
  %s0 = inlined_call_operand.hbm [shape: f32[512,128], index: 0, kind: input, shape index: {}]
  %s1 = inlined_call_operand.hbm [shape: bf16[2,128,128], index: 1, kind: input, shape index: {}]
  %s2 = inlined_call_operand.hbm [shape: f32[2,128], index: 2, kind: input, shape index: {}]
  %s3 = inlined_call_operand.hbm [shape: bf16[2,128,128], index: 3, kind: input, shape index: {}]
  %s4 = inlined_call_operand.vmem [shape: f32[2,128], index: 4, kind: input, shape index: {}]
  %s5 = inlined_call_operand.hbm [shape: bf16[128,128], index: 5, kind: input, shape index: {}]
  %s6 = inlined_call_operand.vmem [shape: f32[1,128], index: 6, kind: input, shape index: {}]
  %s7 = inlined_call_operand.hbm [shape: f32[512,128], index: 7, kind: output, shape index: {}]
  %s8 = sld [smem:[#allocation0]]
  $region81: #{tpu_custom_call.1} parent=0
    _
  %s10 = ssub.s32 1, %s8
  %s11 = scalar_select 0, %s10, %s8
  $region1: #{tpu_custom_call.1} parent=0
    #allocation2 [shape = 'u8[262144]{0}', space=vmem, size = 0x40000, scoped, tag = 'input window, operand 0']
    #allocation3 [shape = 's32[2]{0}', space=sflag, size = 0x8, scoped, tag = 'scoped memory for tpu_custom_call.1']
    #allocation4 [shape = 's32[2]{0}', space=sflag, size = 0x8, scoped, tag = 'scoped memory for tpu_custom_call.1']
    #allocation5 [shape = 'u8[65536]{0}', space=vmem, size = 0x10000, scoped, tag = 'input window, operand 1, single buffered']
    #allocation6 [shape = 's32[1]{0}', space=sflag, size = 0x4, scoped, tag = 'scoped memory for tpu_custom_call.1']
    #allocation7 [shape = 'u8[1024]{0}', space=vmem, size = 0x400, scoped, tag = 'input window, operand 2, single buffered']
    #allocation8 [shape = 'u8[65536]{0}', space=vmem, size = 0x10000, scoped, tag = 'input window, operand 3, single buffered']
    #allocation9 [shape = 's32[1]{0}', space=sflag, size = 0x4, scoped, tag = 'scoped memory for tpu_custom_call.1']
    #allocation10 [shape = 'u8[32768]{0}', space=vmem, size = 0x8000, scoped, tag = 'input window, operand 5, single buffered']
    #allocation11 [shape = 'u8[262144]{0}', space=vmem, size = 0x40000, scoped, tag = 'output window, operand 0']
    %12 = vsyncpa [#allocation3], 0
    %s13 = scalar_lea.sflag [#allocation3], 1
    %14 = vsyncpa %s13, 0
    %15 = vsyncpa [#allocation6], 0
    %16 = vsyncpa [#allocation9], 0
    %17 = vsyncpa [#allocation4], 0
    %s18 = scalar_lea.sflag [#allocation4], 1
    %19 = vsyncpa %s18, 0
    loop: start=0, step=1, limit=4
    $region2: #{tpu_custom_call.1} parent=1 // loop_pre_header
      _
    $region3: #{tpu_custom_call.1} parent=1 // loop_header
      %s21 = sphi 0, %s25
      %p22 = scmp.ge.s32.totalorder %s21, 4
      %s31 = sphi 0, %s33
      %s34 = sphi 0, %s31
      %s35 = sphi 0, %s34
      %s51 = sphi 0, %s35
      %s55 = sphi 0, %s55
      %s57 = sphi 0, %s55
      %s58 = sphi 0, %s57
      %s72 = sphi 0, %s58
      %s76 = sphi 0, %s76
      %s78 = sphi 0, %s76
      %s79 = sphi 0, %s78
      %s93 = sphi 0, %s79
      %s97 = sphi 0, %s97
      %s99 = sphi 0, %s97
      %s100 = sphi 0, %s99
      %s114 = sphi 0, %s100
      %s118 = sphi 0, %s118
      %s120 = sphi 0, %s118
      %s121 = sphi 0, %s120
      %s135 = sphi 0, %s121
      %s139 = sphi 0, %s139
      %s141 = sphi 0, %s139
      %s142 = sphi 0, %s141
      %s156 = sphi 0, %s142
      %s160 = sphi 0, %s160
      %s162 = sphi 0, %s160
      %s163 = sphi 0, %s162
      %s177 = sphi 0, %s163
      %s183 = sphi 0, %s185
      %s186 = sphi 0, %s183
      %s187 = sphi 0, %s186
      %s203 = sphi 0, %s187
    $region4: #{tpu_custom_call.1} parent=1 // loop_header_branch
      %24 = sbr.rel (%p22) target = $region8
    $region5: #{tpu_custom_call.1} parent=1 // loop_body
      %s26 = ssub.s32 %s21, 1
      %s27 = ssub.s32 %s21, 2
      %s28 = sadd.s32 %s21, 1
      %s29 = ssub.s32 %s21, %s28
      %p30 = scmp.eq.s32.totalorder %s29, 0
      %s32 = sadd.s32 %s31, 1
      %s33 = scalar_select %p30, %s31, %s32
      %p36 = pneg %p30
      %p37 = scmp.eq.s32.totalorder %s21, 1
      %p38 = por %p36, %p37
      %p39 = scmp.ne.s32.totalorder %s31, %s34
      %p40 = scmp.eq.s32.totalorder %s21, 0
      %p41 = por %p39, %p40
      %p42 = scmp.ne.s32.totalorder %s31, %s34
      %p43 = scmp.eq.s32.totalorder %s26, 1
      %p44 = por %p42, %p43
      %p45 = scmp.ne.s32.totalorder %s34, %s35
      %p46 = scmp.eq.s32.totalorder %s26, 0
      %p47 = por %p45, %p46
      %p48 = scmp.ne.s32.totalorder %s34, %s35
      %p49 = scmp.eq.s32.totalorder %s27, 1
      %p50 = por %p48, %p49
      %p52 = scmp.ne.s32.totalorder %s35, %s51
      %p53 = scmp.eq.s32.totalorder %s27, 0
      %p54 = por %p52, %p53
      %s56 = sadd.s32 %s55, 1
      %p59 = scmp.eq.s32.totalorder %s21, 1
      %p60 = scmp.ne.s32.totalorder %s55, %s57
      %p61 = scmp.eq.s32.totalorder %s21, 0
      %p62 = por %p60, %p61
      %p63 = scmp.ne.s32.totalorder %s55, %s57
      %p64 = scmp.eq.s32.totalorder %s26, 1
      %p65 = por %p63, %p64
      %p66 = scmp.ne.s32.totalorder %s57, %s58
      %p67 = scmp.eq.s32.totalorder %s26, 0
      %p68 = por %p66, %p67
      %p69 = scmp.ne.s32.totalorder %s57, %s58
      %p70 = scmp.eq.s32.totalorder %s27, 1
      %p71 = por %p69, %p70
      %p73 = scmp.ne.s32.totalorder %s58, %s72
      %p74 = scmp.eq.s32.totalorder %s27, 0
      %p75 = por %p73, %p74
      %s77 = sadd.s32 %s76, 1
      %p80 = scmp.eq.s32.totalorder %s21, 1
      %p81 = scmp.ne.s32.totalorder %s76, %s78
      %p82 = scmp.eq.s32.totalorder %s21, 0
      %p83 = por %p81, %p82
      %p84 = scmp.ne.s32.totalorder %s76, %s78
      %p85 = scmp.eq.s32.totalorder %s26, 1
      %p86 = por %p84, %p85
      %p87 = scmp.ne.s32.totalorder %s78, %s79
      %p88 = scmp.eq.s32.totalorder %s26, 0
      %p89 = por %p87, %p88
      %p90 = scmp.ne.s32.totalorder %s78, %s79
      %p91 = scmp.eq.s32.totalorder %s27, 1
      %p92 = por %p90, %p91
      %p94 = scmp.ne.s32.totalorder %s79, %s93
      %p95 = scmp.eq.s32.totalorder %s27, 0
      %p96 = por %p94, %p95
      %s98 = sadd.s32 %s97, 1
      %p101 = scmp.eq.s32.totalorder %s21, 1
      %p102 = scmp.ne.s32.totalorder %s97, %s99
      %p103 = scmp.eq.s32.totalorder %s21, 0
      %p104 = por %p102, %p103
      %p105 = scmp.ne.s32.totalorder %s97, %s99
      %p106 = scmp.eq.s32.totalorder %s26, 1
      %p107 = por %p105, %p106
      %p108 = scmp.ne.s32.totalorder %s99, %s100
      %p109 = scmp.eq.s32.totalorder %s26, 0
      %p110 = por %p108, %p109
      %p111 = scmp.ne.s32.totalorder %s99, %s100
      %p112 = scmp.eq.s32.totalorder %s27, 1
      %p113 = por %p111, %p112
      %p115 = scmp.ne.s32.totalorder %s100, %s114
      %p116 = scmp.eq.s32.totalorder %s27, 0
      %p117 = por %p115, %p116
      %s119 = sadd.s32 %s118, 1
      %p122 = scmp.eq.s32.totalorder %s21, 1
      %p123 = scmp.ne.s32.totalorder %s118, %s120
      %p124 = scmp.eq.s32.totalorder %s21, 0
      %p125 = por %p123, %p124
      %p126 = scmp.ne.s32.totalorder %s118, %s120
      %p127 = scmp.eq.s32.totalorder %s26, 1
      %p128 = por %p126, %p127
      %p129 = scmp.ne.s32.totalorder %s120, %s121
      %p130 = scmp.eq.s32.totalorder %s26, 0
      %p131 = por %p129, %p130
      %p132 = scmp.ne.s32.totalorder %s120, %s121
      %p133 = scmp.eq.s32.totalorder %s27, 1
      %p134 = por %p132, %p133
      %p136 = scmp.ne.s32.totalorder %s121, %s135
      %p137 = scmp.eq.s32.totalorder %s27, 0
      %p138 = por %p136, %p137
      %s140 = sadd.s32 %s139, 1
      %p143 = scmp.eq.s32.totalorder %s21, 1
      %p144 = scmp.ne.s32.totalorder %s139, %s141
      %p145 = scmp.eq.s32.totalorder %s21, 0
      %p146 = por %p144, %p145
      %p147 = scmp.ne.s32.totalorder %s139, %s141
      %p148 = scmp.eq.s32.totalorder %s26, 1
      %p149 = por %p147, %p148
      %p150 = scmp.ne.s32.totalorder %s141, %s142
      %p151 = scmp.eq.s32.totalorder %s26, 0
      %p152 = por %p150, %p151
      %p153 = scmp.ne.s32.totalorder %s141, %s142
      %p154 = scmp.eq.s32.totalorder %s27, 1
      %p155 = por %p153, %p154
      %p157 = scmp.ne.s32.totalorder %s142, %s156
      %p158 = scmp.eq.s32.totalorder %s27, 0
      %p159 = por %p157, %p158
      %s161 = sadd.s32 %s160, 1
      %p164 = scmp.eq.s32.totalorder %s21, 1
      %p165 = scmp.ne.s32.totalorder %s160, %s162
      %p166 = scmp.eq.s32.totalorder %s21, 0
      %p167 = por %p165, %p166
      %p168 = scmp.ne.s32.totalorder %s160, %s162
      %p169 = scmp.eq.s32.totalorder %s26, 1
      %p170 = por %p168, %p169
      %p171 = scmp.ne.s32.totalorder %s162, %s163
      %p172 = scmp.eq.s32.totalorder %s26, 0
      %p173 = por %p171, %p172
      %p174 = scmp.ne.s32.totalorder %s162, %s163
      %p175 = scmp.eq.s32.totalorder %s27, 1
      %p176 = por %p174, %p175
      %p178 = scmp.ne.s32.totalorder %s163, %s177
      %p179 = scmp.eq.s32.totalorder %s27, 0
      %p180 = por %p178, %p179
      %s181 = ssub.s32 %s21, %s28
      %p182 = scmp.eq.s32.totalorder %s181, 0
      %s184 = sadd.s32 %s183, 1
      %s185 = scalar_select %p182, %s183, %s184
      %p188 = pneg %p182
      %p189 = scmp.eq.s32.totalorder %s21, 1
      %p190 = por %p188, %p189
      %p191 = scmp.ne.s32.totalorder %s183, %s186
      %p192 = scmp.eq.s32.totalorder %s21, 0
      %p193 = por %p191, %p192
      %p194 = scmp.ne.s32.totalorder %s183, %s186
      %p195 = scmp.eq.s32.totalorder %s26, 1
      %p196 = por %p194, %p195
      %p197 = scmp.ne.s32.totalorder %s186, %s187
      %p198 = scmp.eq.s32.totalorder %s26, 0
      %p199 = por %p197, %p198
      %p200 = scmp.ne.s32.totalorder %s186, %s187
      %p201 = scmp.eq.s32.totalorder %s27, 1
      %p202 = por %p200, %p201
      %p204 = scmp.ne.s32.totalorder %s187, %s203
      %p205 = scmp.eq.s32.totalorder %s27, 0
      %p206 = por %p204, %p205
      %p207 = scmp.le.s32.totalorder 1, %s21
      %p208 = scmp.lt.s32.totalorder %s21, 3
      %p209 = pnand %p207, %p208
      %p210 = pneg %p209
      // Predicated region
      $region9: #{tpu_custom_call.1} parent=5 // pred_check
        _
      $region10: #{tpu_custom_call.1} parent=5 // pred_check_branch
        %212 = sbr.rel (%p209) target = $region12
      $region11: #{tpu_custom_call.1} parent=5 // pred_region
        %s213 = ssub.s32 %s21, 1
        // Predicated region
        $region13: #{tpu_custom_call.1} parent=11 // pred_check
          %p214 = pneg %p68
        $region14: #{tpu_custom_call.1} parent=11 // pred_check_branch
          %216 = sbr.rel (%p214) target = $region16
        $region15: #{tpu_custom_call.1} parent=11 // pred_region
          %218 = vsyncadd [#allocation6], 0
          %s219 = sshll.u32 %s1, 4
          %s220 = int_to_ptr.hbm [resolvable:$true] %s219
          %s221 = sshll.u32 [#allocation5], 4
          %s222 = int_to_ptr.vmem [resolvable:$true] %s221
          %227 = dma.hbm_to_vmem [thread:$0]  %s220, 2048, %s222, [#allocation6], 64, 64, 4
        $region16: #{tpu_custom_call.1} parent=11 // pred_fallthru
          _
        // Predicated region
        $region17: #{tpu_custom_call.1} parent=11 // pred_check
          %p228 = pneg %p89
        $region18: #{tpu_custom_call.1} parent=11 // pred_check_branch
          %230 = sbr.rel (%p228) target = $region20
        $region19: #{tpu_custom_call.1} parent=11 // pred_region
          %232 = vsyncadd [#allocation6], 0
          %s234 = sshll.u32 %s2, 4
          %s235 = int_to_ptr.hbm [resolvable:$true] %s234
          %s236 = sshll.u32 [#allocation7], 4
          %s237 = int_to_ptr.vmem [resolvable:$true] %s236
          %239 = dma.hbm_to_vmem [thread:$0]  %s235, 32, %s237, [#allocation6]
        $region20: #{tpu_custom_call.1} parent=11 // pred_fallthru
          _
        // Predicated region
        $region21: #{tpu_custom_call.1} parent=11 // pred_check
          %p240 = pneg %p110
        $region22: #{tpu_custom_call.1} parent=11 // pred_check_branch
          %242 = sbr.rel (%p240) target = $region24
        $region23: #{tpu_custom_call.1} parent=11 // pred_region
          %244 = vsyncadd [#allocation9], 0
          %s245 = sshll.u32 %s3, 4
          %s246 = int_to_ptr.hbm [resolvable:$true] %s245
          %s247 = sshll.u32 [#allocation8], 4
          %s248 = int_to_ptr.vmem [resolvable:$true] %s247
          %253 = dma.hbm_to_vmem [thread:$0]  %s246, 2048, %s248, [#allocation9], 64, 64, 4
        $region24: #{tpu_custom_call.1} parent=11 // pred_fallthru
          _
        // Predicated region
        $region25: #{tpu_custom_call.1} parent=11 // pred_check
          %p254 = pneg %p131
        $region26: #{tpu_custom_call.1} parent=11 // pred_check_branch
          %256 = sbr.rel (%p254) target = $region28
        $region27: #{tpu_custom_call.1} parent=11 // pred_region
          _
        $region28: #{tpu_custom_call.1} parent=11 // pred_fallthru
          _
        // Predicated region
        $region29: #{tpu_custom_call.1} parent=11 // pred_check
          %p257 = pneg %p152
        $region30: #{tpu_custom_call.1} parent=11 // pred_check_branch
          %259 = sbr.rel (%p257) target = $region32
        $region31: #{tpu_custom_call.1} parent=11 // pred_region
          %261 = vsyncadd [#allocation9], 0
          %s262 = sshll.u32 %s5, 4
          %s263 = int_to_ptr.hbm [resolvable:$true] %s262
          %s264 = sshll.u32 [#allocation10], 4
          %s265 = int_to_ptr.vmem [resolvable:$true] %s264
          %270 = dma.hbm_to_vmem [thread:$0]  %s263, 1024, %s265, [#allocation9], 64, 64, 4
        $region32: #{tpu_custom_call.1} parent=11 // pred_fallthru
          _
        // Predicated region
        $region33: #{tpu_custom_call.1} parent=11 // pred_check
          %p271 = pneg %p173
        $region34: #{tpu_custom_call.1} parent=11 // pred_check_branch
          %273 = sbr.rel (%p271) target = $region36
        $region35: #{tpu_custom_call.1} parent=11 // pred_region
          _
        $region36: #{tpu_custom_call.1} parent=11 // pred_fallthru
          _
      $region12: #{tpu_custom_call.1} parent=5 // pred_fallthru
        _
      %p274 = scmp.lt.s32.totalorder %s21, 2
      // Predicated region
      $region37: #{tpu_custom_call.1} parent=5 // pred_check
        %p275 = pneg %p274
      $region38: #{tpu_custom_call.1} parent=5 // pred_check_branch
        %277 = sbr.rel (%p275) target = $region40
      $region39: #{tpu_custom_call.1} parent=5 // pred_region
        // Predicated region
        $region41: #{tpu_custom_call.1} parent=39 // pred_check
          %p278 = pneg %p41
        $region42: #{tpu_custom_call.1} parent=39 // pred_check_branch
          %280 = sbr.rel (%p278) target = $region44
        $region43: #{tpu_custom_call.1} parent=39 // pred_region
          %s281 = sand.u32 %s31, 1
          %s282 = scalar_lea.sflag [#allocation3], %s281
          %s283 = sand.u32 %s31, 1
          %s284 = smul.addr %s283, 256
          %s285 = scalar_lea.vmem [#allocation2], %s284
          %s286 = smul.u32 32, %s21
          %288 = vsyncadd %s282, 0
          %s289 = smul.addr %s286, 8
          %s290 = scalar_lea.hbm %s0, %s289
          %s291 = sshll.u32 %s290, 4
          %s292 = int_to_ptr.hbm [resolvable:$true] %s291
          %s293 = sshll.u32 %s285, 4
          %s294 = int_to_ptr.vmem [resolvable:$true] %s293
          %299 = dma.hbm_to_vmem [thread:$0]  %s292, 4096, %s294, %s282, 128, 128, 8
        $region44: #{tpu_custom_call.1} parent=39 // pred_fallthru
          _
      $region40: #{tpu_custom_call.1} parent=5 // pred_fallthru
        _
      %p300 = scmp.le.s32.totalorder 1, %s21
      %p301 = scmp.lt.s32.totalorder %s21, 3
      %p302 = pnand %p300, %p301
      %p303 = pneg %p302
      // Predicated region
      $region45: #{tpu_custom_call.1} parent=5 // pred_check
        _
      $region46: #{tpu_custom_call.1} parent=5 // pred_check_branch
        %305 = sbr.rel (%p302) target = $region48
      $region47: #{tpu_custom_call.1} parent=5 // pred_region
        %s306 = ssub.s32 %s21, 1
        %s307 = sand.u32 %s34, 1
        %s308 = scalar_lea.sflag [#allocation3], %s307
        %s309 = sand.u32 %s34, 1
        %s310 = smul.addr %s309, 256
        %s311 = scalar_lea.vmem [#allocation2], %s310
        // Predicated region
        $region49: #{tpu_custom_call.1} parent=47 // pred_check
          %p312 = pneg %p47
        $region50: #{tpu_custom_call.1} parent=47 // pred_check_branch
          %314 = sbr.rel (%p312) target = $region52
        $region51: #{tpu_custom_call.1} parent=47 // pred_region
          %316 = dma.done %s308, 4096
        $region52: #{tpu_custom_call.1} parent=47 // pred_fallthru
          _
        // Predicated region
        $region53: #{tpu_custom_call.1} parent=47 // pred_check
          %p317 = pneg %p68
        $region54: #{tpu_custom_call.1} parent=47 // pred_check_branch
          %319 = sbr.rel (%p317) target = $region56
        $region55: #{tpu_custom_call.1} parent=47 // pred_region
          %321 = dma.done [#allocation6], 2048
        $region56: #{tpu_custom_call.1} parent=47 // pred_fallthru
          _
        // Predicated region
        $region57: #{tpu_custom_call.1} parent=47 // pred_check
          %p322 = pneg %p89
        $region58: #{tpu_custom_call.1} parent=47 // pred_check_branch
          %324 = sbr.rel (%p322) target = $region60
        $region59: #{tpu_custom_call.1} parent=47 // pred_region
          %326 = dma.done [#allocation6], 32
        $region60: #{tpu_custom_call.1} parent=47 // pred_fallthru
          _
        // Predicated region
        $region61: #{tpu_custom_call.1} parent=47 // pred_check
          %p327 = pneg %p110
        $region62: #{tpu_custom_call.1} parent=47 // pred_check_branch
          %329 = sbr.rel (%p327) target = $region64
        $region63: #{tpu_custom_call.1} parent=47 // pred_region
          %331 = dma.done [#allocation9], 2048
        $region64: #{tpu_custom_call.1} parent=47 // pred_fallthru
          _
        // Predicated region
        $region65: #{tpu_custom_call.1} parent=47 // pred_check
          %p332 = pneg %p152
        $region66: #{tpu_custom_call.1} parent=47 // pred_check_branch
          %334 = sbr.rel (%p332) target = $region68
        $region67: #{tpu_custom_call.1} parent=47 // pred_region
          %336 = dma.done [#allocation9], 1024
        $region68: #{tpu_custom_call.1} parent=47 // pred_fallthru
          _
        %s337 = sand.u32 %s34, 1
        %s338 = scalar_lea.sflag [#allocation3], %s337
        %s339 = sand.u32 %s34, 1
        %s340 = smul.addr %s339, 256
        %s341 = scalar_lea.vmem [#allocation2], %s340
        %p342 = pneg %p47
        %p343 = pneg %p44
        %p344 = pneg %p68
        %p345 = pneg %p65
        %p346 = pneg %p89
        %p347 = pneg %p86
        %p348 = pneg %p110
        %p349 = pneg %p107
        %p350 = pneg %p131
        %p351 = pneg %p128
        %p352 = pneg %p152
        %p353 = pneg %p149
        %p354 = pneg %p173
        %p355 = pneg %p170
        %p356 = pneg %p199
        %p357 = pneg %p196
        %s358 = sand.u32 %s186, 1
        %s359 = scalar_lea.sflag [#allocation4], %s358
        %s360 = sand.u32 %s186, 1
        %s361 = smul.addr %s360, 256
        %s362 = scalar_lea.vmem [#allocation11], %s361
        %s363 = smul.u32 32, %s26
        %s364 = smul.u32 32, %s26
        %v365 = vld [vmem:[%s311] sm:$0xff]
        %v366 = vld [vmem:[%s311 + $0x8] sm:$0xff]
        %v367 = vld [vmem:[%s311 + $0x10] sm:$0xff]
        %v368 = vld [vmem:[%s311 + $0x18] sm:$0xff]
        %v369 = vld [vmem:[%s311 + $0x20] sm:$0xff]
        %v370 = vld [vmem:[%s311 + $0x28] sm:$0xff]
        %v371 = vld [vmem:[%s311 + $0x30] sm:$0xff]
        %v372 = vld [vmem:[%s311 + $0x38] sm:$0xff]
        %v373 = vld [vmem:[%s311 + $0x40] sm:$0xff]
        %v374 = vld [vmem:[%s311 + $0x48] sm:$0xff]
        %v375 = vld [vmem:[%s311 + $0x50] sm:$0xff]
        %v376 = vld [vmem:[%s311 + $0x58] sm:$0xff]
        %v377 = vld [vmem:[%s311 + $0x60] sm:$0xff]
        %v378 = vld [vmem:[%s311 + $0x68] sm:$0xff]
        %v379 = vld [vmem:[%s311 + $0x70] sm:$0xff]
        %v380 = vld [vmem:[%s311 + $0x78] sm:$0xff]
        %v381 = vld [vmem:[%s311 + $0x80] sm:$0xff]
        %v382 = vld [vmem:[%s311 + $0x88] sm:$0xff]
        %v383 = vld [vmem:[%s311 + $0x90] sm:$0xff]
        %v384 = vld [vmem:[%s311 + $0x98] sm:$0xff]
        %v385 = vld [vmem:[%s311 + $0xa0] sm:$0xff]
        %v386 = vld [vmem:[%s311 + $0xa8] sm:$0xff]
        %v387 = vld [vmem:[%s311 + $0xb0] sm:$0xff]
        %v388 = vld [vmem:[%s311 + $0xb8] sm:$0xff]
        %v389 = vld [vmem:[%s311 + $0xc0] sm:$0xff]
        %v390 = vld [vmem:[%s311 + $0xc8] sm:$0xff]
        %v391 = vld [vmem:[%s311 + $0xd0] sm:$0xff]
        %v392 = vld [vmem:[%s311 + $0xd8] sm:$0xff]
        %v393 = vld [vmem:[%s311 + $0xe0] sm:$0xff]
        %v394 = vld [vmem:[%s311 + $0xe8] sm:$0xff]
        %v395 = vld [vmem:[%s311 + $0xf0] sm:$0xff]
        %v396 = vld [vmem:[%s311 + $0xf8] sm:$0xff]
        %v397 = vmax.f32 %v365, 0.0
        %v398 = vmax.f32 %v366, 0.0
        %v399 = vmax.f32 %v367, 0.0
        %v400 = vmax.f32 %v368, 0.0
        %v401 = vmax.f32 %v369, 0.0
        %v402 = vmax.f32 %v370, 0.0
        %v403 = vmax.f32 %v371, 0.0
        %v404 = vmax.f32 %v372, 0.0
        %v405 = vmax.f32 %v373, 0.0
        %v406 = vmax.f32 %v374, 0.0
        %v407 = vmax.f32 %v375, 0.0
        %v408 = vmax.f32 %v376, 0.0
        %v409 = vmax.f32 %v377, 0.0
        %v410 = vmax.f32 %v378, 0.0
        %v411 = vmax.f32 %v379, 0.0
        %v412 = vmax.f32 %v380, 0.0
        %v413 = vmax.f32 %v381, 0.0
        %v414 = vmax.f32 %v382, 0.0
        %v415 = vmax.f32 %v383, 0.0
        %v416 = vmax.f32 %v384, 0.0
        %v417 = vmax.f32 %v385, 0.0
        %v418 = vmax.f32 %v386, 0.0
        %v419 = vmax.f32 %v387, 0.0
        %v420 = vmax.f32 %v388, 0.0
        %v421 = vmax.f32 %v389, 0.0
        %v422 = vmax.f32 %v390, 0.0
        %v423 = vmax.f32 %v391, 0.0
        %v424 = vmax.f32 %v392, 0.0
        %v425 = vmax.f32 %v393, 0.0
        %v426 = vmax.f32 %v394, 0.0
        %v427 = vmax.f32 %v395, 0.0
        %v428 = vmax.f32 %v396, 0.0
        %vm429 = vcmp.ne.f32.partialorder %v365, %v365
        %vm430 = vcmp.ne.f32.partialorder %v366, %v366
        %vm431 = vcmp.ne.f32.partialorder %v367, %v367
        %vm432 = vcmp.ne.f32.partialorder %v368, %v368
        %vm433 = vcmp.ne.f32.partialorder %v369, %v369
        %vm434 = vcmp.ne.f32.partialorder %v370, %v370
        %vm435 = vcmp.ne.f32.partialorder %v371, %v371
        %vm436 = vcmp.ne.f32.partialorder %v372, %v372
        %vm437 = vcmp.ne.f32.partialorder %v373, %v373
        %vm438 = vcmp.ne.f32.partialorder %v374, %v374
        %vm439 = vcmp.ne.f32.partialorder %v375, %v375
        %vm440 = vcmp.ne.f32.partialorder %v376, %v376
        %vm441 = vcmp.ne.f32.partialorder %v377, %v377
        %vm442 = vcmp.ne.f32.partialorder %v378, %v378
        %vm443 = vcmp.ne.f32.partialorder %v379, %v379
        %vm444 = vcmp.ne.f32.partialorder %v380, %v380
        %vm445 = vcmp.ne.f32.partialorder %v381, %v381
        %vm446 = vcmp.ne.f32.partialorder %v382, %v382
        %vm447 = vcmp.ne.f32.partialorder %v383, %v383
        %vm448 = vcmp.ne.f32.partialorder %v384, %v384
        %vm449 = vcmp.ne.f32.partialorder %v385, %v385
        %vm450 = vcmp.ne.f32.partialorder %v386, %v386
        %vm451 = vcmp.ne.f32.partialorder %v387, %v387
        %vm452 = vcmp.ne.f32.partialorder %v388, %v388
        %vm453 = vcmp.ne.f32.partialorder %v389, %v389
        %vm454 = vcmp.ne.f32.partialorder %v390, %v390
        %vm455 = vcmp.ne.f32.partialorder %v391, %v391
        %vm456 = vcmp.ne.f32.partialorder %v392, %v392
        %vm457 = vcmp.ne.f32.partialorder %v393, %v393
        %vm458 = vcmp.ne.f32.partialorder %v394, %v394
        %vm459 = vcmp.ne.f32.partialorder %v395, %v395
        %vm460 = vcmp.ne.f32.partialorder %v396, %v396
        %v461 = vadd.f32 %v365, 0.0
        %v462 = vadd.f32 %v366, 0.0
        %v463 = vadd.f32 %v367, 0.0
        %v464 = vadd.f32 %v368, 0.0
        %v465 = vadd.f32 %v369, 0.0
        %v466 = vadd.f32 %v370, 0.0
        %v467 = vadd.f32 %v371, 0.0
        %v468 = vadd.f32 %v372, 0.0
        %v469 = vadd.f32 %v373, 0.0
        %v470 = vadd.f32 %v374, 0.0
        %v471 = vadd.f32 %v375, 0.0
        %v472 = vadd.f32 %v376, 0.0
        %v473 = vadd.f32 %v377, 0.0
        %v474 = vadd.f32 %v378, 0.0
        %v475 = vadd.f32 %v379, 0.0
        %v476 = vadd.f32 %v380, 0.0
        %v477 = vadd.f32 %v381, 0.0
        %v478 = vadd.f32 %v382, 0.0
        %v479 = vadd.f32 %v383, 0.0
        %v480 = vadd.f32 %v384, 0.0
        %v481 = vadd.f32 %v385, 0.0
        %v482 = vadd.f32 %v386, 0.0
        %v483 = vadd.f32 %v387, 0.0
        %v484 = vadd.f32 %v388, 0.0
        %v485 = vadd.f32 %v389, 0.0
        %v486 = vadd.f32 %v390, 0.0
        %v487 = vadd.f32 %v391, 0.0
        %v488 = vadd.f32 %v392, 0.0
        %v489 = vadd.f32 %v393, 0.0
        %v490 = vadd.f32 %v394, 0.0
        %v491 = vadd.f32 %v395, 0.0
        %v492 = vadd.f32 %v396, 0.0
        %v493 = vand.u32 2147483647, %v365
        %v494 = vand.u32 2147483647, %v366
        %v495 = vand.u32 2147483647, %v367
        %v496 = vand.u32 2147483647, %v368
        %v497 = vand.u32 2147483647, %v369
        %v498 = vand.u32 2147483647, %v370
        %v499 = vand.u32 2147483647, %v371
        %v500 = vand.u32 2147483647, %v372
        %v501 = vand.u32 2147483647, %v373
        %v502 = vand.u32 2147483647, %v374
        %v503 = vand.u32 2147483647, %v375
        %v504 = vand.u32 2147483647, %v376
        %v505 = vand.u32 2147483647, %v377
        %v506 = vand.u32 2147483647, %v378
        %v507 = vand.u32 2147483647, %v379
        %v508 = vand.u32 2147483647, %v380
        %v509 = vand.u32 2147483647, %v381
        %v510 = vand.u32 2147483647, %v382
        %v511 = vand.u32 2147483647, %v383
        %v512 = vand.u32 2147483647, %v384
        %v513 = vand.u32 2147483647, %v385
        %v514 = vand.u32 2147483647, %v386
        %v515 = vand.u32 2147483647, %v387
        %v516 = vand.u32 2147483647, %v388
        %v517 = vand.u32 2147483647, %v389
        %v518 = vand.u32 2147483647, %v390
        %v519 = vand.u32 2147483647, %v391
        %v520 = vand.u32 2147483647, %v392
        %v521 = vand.u32 2147483647, %v393
        %v522 = vand.u32 2147483647, %v394
        %v523 = vand.u32 2147483647, %v395
        %v524 = vand.u32 2147483647, %v396
        %v525 = vsub.f32 0.0, %v493
        %v526 = vsub.f32 0.0, %v494
        %v527 = vsub.f32 0.0, %v495
        %v528 = vsub.f32 0.0, %v496
        %v529 = vsub.f32 0.0, %v497
        %v530 = vsub.f32 0.0, %v498
        %v531 = vsub.f32 0.0, %v499
        %v532 = vsub.f32 0.0, %v500
        %v533 = vsub.f32 0.0, %v501
        %v534 = vsub.f32 0.0, %v502
        %v535 = vsub.f32 0.0, %v503
        %v536 = vsub.f32 0.0, %v504
        %v537 = vsub.f32 0.0, %v505
        %v538 = vsub.f32 0.0, %v506
        %v539 = vsub.f32 0.0, %v507
        %v540 = vsub.f32 0.0, %v508
        %v541 = vsub.f32 0.0, %v509
        %v542 = vsub.f32 0.0, %v510
        %v543 = vsub.f32 0.0, %v511
        %v544 = vsub.f32 0.0, %v512
        %v545 = vsub.f32 0.0, %v513
        %v546 = vsub.f32 0.0, %v514
        %v547 = vsub.f32 0.0, %v515
        %v548 = vsub.f32 0.0, %v516
        %v549 = vsub.f32 0.0, %v517
        %v550 = vsub.f32 0.0, %v518
        %v551 = vsub.f32 0.0, %v519
        %v552 = vsub.f32 0.0, %v520
        %v553 = vsub.f32 0.0, %v521
        %v554 = vsub.f32 0.0, %v522
        %v555 = vsub.f32 0.0, %v523
        %v556 = vsub.f32 0.0, %v524
        %v557 = vmul.f32 %v525, 1.442695
        %v558 = vpow.pop %v557
        %v559 = vmul.f32 %v526, 1.442695
        %v560 = vpow.pop %v559
        %v561 = vmul.f32 %v527, 1.442695
        %v562 = vpow.pop %v561
        %v563 = vmul.f32 %v528, 1.442695
        %v564 = vpow.pop %v563
        %v565 = vmul.f32 %v529, 1.442695
        %v566 = vpow.pop %v565
        %v567 = vmul.f32 %v530, 1.442695
        %v568 = vpow.pop %v567
        %v569 = vmul.f32 %v531, 1.442695
        %v570 = vpow.pop %v569
        %v571 = vmul.f32 %v532, 1.442695
        %v572 = vpow.pop %v571
        %v573 = vmul.f32 %v533, 1.442695
        %v574 = vpow.pop %v573
        %v575 = vmul.f32 %v534, 1.442695
        %v576 = vpow.pop %v575
        %v577 = vmul.f32 %v535, 1.442695
        %v578 = vpow.pop %v577
        %v579 = vmul.f32 %v536, 1.442695
        %v580 = vpow.pop %v579
        %v581 = vmul.f32 %v537, 1.442695
        %v582 = vpow.pop %v581
        %v583 = vmul.f32 %v538, 1.442695
        %v584 = vpow.pop %v583
        %v585 = vmul.f32 %v539, 1.442695
        %v586 = vpow.pop %v585
        %v587 = vmul.f32 %v540, 1.442695
        %v588 = vpow.pop %v587
        %v589 = vmul.f32 %v541, 1.442695
        %v590 = vpow.pop %v589
        %v591 = vmul.f32 %v542, 1.442695
        %v592 = vpow.pop %v591
        %v593 = vmul.f32 %v543, 1.442695
        %v594 = vpow.pop %v593
        %v595 = vmul.f32 %v544, 1.442695
        %v596 = vpow.pop %v595
        %v597 = vmul.f32 %v545, 1.442695
        %v598 = vpow.pop %v597
        %v599 = vmul.f32 %v546, 1.442695
        %v600 = vpow.pop %v599
        %v601 = vmul.f32 %v547, 1.442695
        %v602 = vpow.pop %v601
        %v603 = vmul.f32 %v548, 1.442695
        %v604 = vpow.pop %v603
        %v605 = vmul.f32 %v549, 1.442695
        %v606 = vpow.pop %v605
        %v607 = vmul.f32 %v550, 1.442695
        %v608 = vpow.pop %v607
        %v609 = vmul.f32 %v551, 1.442695
        %v610 = vpow.pop %v609
        %v611 = vmul.f32 %v552, 1.442695
        %v612 = vpow.pop %v611
        %v613 = vmul.f32 %v553, 1.442695
        %v614 = vpow.pop %v613
        %v615 = vmul.f32 %v554, 1.442695
        %v616 = vpow.pop %v615
        %v617 = vmul.f32 %v555, 1.442695
        %v618 = vpow.pop %v617
        %v619 = vmul.f32 %v556, 1.442695
        %v620 = vpow.pop %v619
        %v621 = vadd.f32 %v558, 1.0
        %v622 = vlog2.pop %v621
        %v623 = vmul.f32 %v622, 0.6931472
        %v624 = vmul.f32 -0.5, %v558
        %v625 = vadd.f32 %v624, 1.0
        %v626 = vmul.f32 %v625, %v558
        %v627 = vand.u32 2147483647, %v558
        %vm628 = vcmp.lt.f32.partialorder %v627, 0.0004427343
        %v629 = vsel %vm628, %v626, %v623
        %v630 = vadd.f32 %v560, 1.0
        %v631 = vlog2.pop %v630
        %v632 = vmul.f32 %v631, 0.6931472
        %v633 = vmul.f32 -0.5, %v560
        %v634 = vadd.f32 %v633, 1.0
        %v635 = vmul.f32 %v634, %v560
        %v636 = vand.u32 2147483647, %v560
        %vm637 = vcmp.lt.f32.partialorder %v636, 0.0004427343
        %v638 = vsel %vm637, %v635, %v632
        %v639 = vadd.f32 %v562, 1.0
        %v640 = vlog2.pop %v639
        %v641 = vmul.f32 %v640, 0.6931472
        %v642 = vmul.f32 -0.5, %v562
        %v643 = vadd.f32 %v642, 1.0
        %v644 = vmul.f32 %v643, %v562
        %v645 = vand.u32 2147483647, %v562
        %vm646 = vcmp.lt.f32.partialorder %v645, 0.0004427343
        %v647 = vsel %vm646, %v644, %v641
        %v648 = vadd.f32 %v564, 1.0
        %v649 = vlog2.pop %v648
        %v650 = vmul.f32 %v649, 0.6931472
        %v651 = vmul.f32 -0.5, %v564
        %v652 = vadd.f32 %v651, 1.0
        %v653 = vmul.f32 %v652, %v564
        %v654 = vand.u32 2147483647, %v564
        %vm655 = vcmp.lt.f32.partialorder %v654, 0.0004427343
        %v656 = vsel %vm655, %v653, %v650
        %v657 = vadd.f32 %v566, 1.0
        %v658 = vlog2.pop %v657
        %v659 = vmul.f32 %v658, 0.6931472
        %v660 = vmul.f32 -0.5, %v566
        %v661 = vadd.f32 %v660, 1.0
        %v662 = vmul.f32 %v661, %v566
        %v663 = vand.u32 2147483647, %v566
        %vm664 = vcmp.lt.f32.partialorder %v663, 0.0004427343
        %v665 = vsel %vm664, %v662, %v659
        %v666 = vadd.f32 %v568, 1.0
        %v667 = vlog2.pop %v666
        %v668 = vmul.f32 %v667, 0.6931472
        %v669 = vmul.f32 -0.5, %v568
        %v670 = vadd.f32 %v669, 1.0
        %v671 = vmul.f32 %v670, %v568
        %v672 = vand.u32 2147483647, %v568
        %vm673 = vcmp.lt.f32.partialorder %v672, 0.0004427343
        %v674 = vsel %vm673, %v671, %v668
        %v675 = vadd.f32 %v570, 1.0
        %v676 = vlog2.pop %v675
        %v677 = vmul.f32 %v676, 0.6931472
        %v678 = vmul.f32 -0.5, %v570
        %v679 = vadd.f32 %v678, 1.0
        %v680 = vmul.f32 %v679, %v570
        %v681 = vand.u32 2147483647, %v570
        %vm682 = vcmp.lt.f32.partialorder %v681, 0.0004427343
        %v683 = vsel %vm682, %v680, %v677
        %v684 = vadd.f32 %v572, 1.0
        %v685 = vlog2.pop %v684
        %v686 = vmul.f32 %v685, 0.6931472
        %v687 = vmul.f32 -0.5, %v572
        %v688 = vadd.f32 %v687, 1.0
        %v689 = vmul.f32 %v688, %v572
        %v690 = vand.u32 2147483647, %v572
        %vm691 = vcmp.lt.f32.partialorder %v690, 0.0004427343
        %v692 = vsel %vm691, %v689, %v686
        %v693 = vadd.f32 %v574, 1.0
        %v694 = vlog2.pop %v693
        %v695 = vmul.f32 %v694, 0.6931472
        %v696 = vmul.f32 -0.5, %v574
        %v697 = vadd.f32 %v696, 1.0
        %v698 = vmul.f32 %v697, %v574
        %v699 = vand.u32 2147483647, %v574
        %vm700 = vcmp.lt.f32.partialorder %v699, 0.0004427343
        %v701 = vsel %vm700, %v698, %v695
        %v702 = vadd.f32 %v576, 1.0
        %v703 = vlog2.pop %v702
        %v704 = vmul.f32 %v703, 0.6931472
        %v705 = vmul.f32 -0.5, %v576
        %v706 = vadd.f32 %v705, 1.0
        %v707 = vmul.f32 %v706, %v576
        %v708 = vand.u32 2147483647, %v576
        %vm709 = vcmp.lt.f32.partialorder %v708, 0.0004427343
        %v710 = vsel %vm709, %v707, %v704
        %v711 = vadd.f32 %v578, 1.0
        %v712 = vlog2.pop %v711
        %v713 = vmul.f32 %v712, 0.6931472
        %v714 = vmul.f32 -0.5, %v578
        %v715 = vadd.f32 %v714, 1.0
        %v716 = vmul.f32 %v715, %v578
        %v717 = vand.u32 2147483647, %v578
        %vm718 = vcmp.lt.f32.partialorder %v717, 0.0004427343
        %v719 = vsel %vm718, %v716, %v713
        %v720 = vadd.f32 %v580, 1.0
        %v721 = vlog2.pop %v720
        %v722 = vmul.f32 %v721, 0.6931472
        %v723 = vmul.f32 -0.5, %v580
        %v724 = vadd.f32 %v723, 1.0
        %v725 = vmul.f32 %v724, %v580
        %v726 = vand.u32 2147483647, %v580
        %vm727 = vcmp.lt.f32.partialorder %v726, 0.0004427343
        %v728 = vsel %vm727, %v725, %v722
        %v729 = vadd.f32 %v582, 1.0
        %v730 = vlog2.pop %v729
        %v731 = vmul.f32 %v730, 0.6931472
        %v732 = vmul.f32 -0.5, %v582
        %v733 = vadd.f32 %v732, 1.0
        %v734 = vmul.f32 %v733, %v582
        %v735 = vand.u32 2147483647, %v582
        %vm736 = vcmp.lt.f32.partialorder %v735, 0.0004427343
        %v737 = vsel %vm736, %v734, %v731
        %v738 = vadd.f32 %v584, 1.0
        %v739 = vlog2.pop %v738
        %v740 = vmul.f32 %v739, 0.6931472
        %v741 = vmul.f32 -0.5, %v584
        %v742 = vadd.f32 %v741, 1.0
        %v743 = vmul.f32 %v742, %v584
        %v744 = vand.u32 2147483647, %v584
        %vm745 = vcmp.lt.f32.partialorder %v744, 0.0004427343
        %v746 = vsel %vm745, %v743, %v740
        %v747 = vadd.f32 %v586, 1.0
        %v748 = vlog2.pop %v747
        %v749 = vmul.f32 %v748, 0.6931472
        %v750 = vmul.f32 -0.5, %v586
        %v751 = vadd.f32 %v750, 1.0
        %v752 = vmul.f32 %v751, %v586
        %v753 = vand.u32 2147483647, %v586
        %vm754 = vcmp.lt.f32.partialorder %v753, 0.0004427343
        %v755 = vsel %vm754, %v752, %v749
        %v756 = vadd.f32 %v588, 1.0
        %v757 = vlog2.pop %v756
        %v758 = vmul.f32 %v757, 0.6931472
        %v759 = vmul.f32 -0.5, %v588
        %v760 = vadd.f32 %v759, 1.0
        %v761 = vmul.f32 %v760, %v588
        %v762 = vand.u32 2147483647, %v588
        %vm763 = vcmp.lt.f32.partialorder %v762, 0.0004427343
        %v764 = vsel %vm763, %v761, %v758
        %v765 = vadd.f32 %v590, 1.0
        %v766 = vlog2.pop %v765
        %v767 = vmul.f32 %v766, 0.6931472
        %v768 = vmul.f32 -0.5, %v590
        %v769 = vadd.f32 %v768, 1.0
        %v770 = vmul.f32 %v769, %v590
        %v771 = vand.u32 2147483647, %v590
        %vm772 = vcmp.lt.f32.partialorder %v771, 0.0004427343
        %v773 = vsel %vm772, %v770, %v767
        %v774 = vadd.f32 %v592, 1.0
        %v775 = vlog2.pop %v774
        %v776 = vmul.f32 %v775, 0.6931472
        %v777 = vmul.f32 -0.5, %v592
        %v778 = vadd.f32 %v777, 1.0
        %v779 = vmul.f32 %v778, %v592
        %v780 = vand.u32 2147483647, %v592
        %vm781 = vcmp.lt.f32.partialorder %v780, 0.0004427343
        %v782 = vsel %vm781, %v779, %v776
        %v783 = vadd.f32 %v594, 1.0
        %v784 = vlog2.pop %v783
        %v785 = vmul.f32 %v784, 0.6931472
        %v786 = vmul.f32 -0.5, %v594
        %v787 = vadd.f32 %v786, 1.0
        %v788 = vmul.f32 %v787, %v594
        %v789 = vand.u32 2147483647, %v594
        %vm790 = vcmp.lt.f32.partialorder %v789, 0.0004427343
        %v791 = vsel %vm790, %v788, %v785
        %v792 = vadd.f32 %v596, 1.0
        %v793 = vlog2.pop %v792
        %v794 = vmul.f32 %v793, 0.6931472
        %v795 = vmul.f32 -0.5, %v596
        %v796 = vadd.f32 %v795, 1.0
        %v797 = vmul.f32 %v796, %v596
        %v798 = vand.u32 2147483647, %v596
        %vm799 = vcmp.lt.f32.partialorder %v798, 0.0004427343
        %v800 = vsel %vm799, %v797, %v794
        %v801 = vadd.f32 %v598, 1.0
        %v802 = vlog2.pop %v801
        %v803 = vmul.f32 %v802, 0.6931472
        %v804 = vmul.f32 -0.5, %v598
        %v805 = vadd.f32 %v804, 1.0
        %v806 = vmul.f32 %v805, %v598
        %v807 = vand.u32 2147483647, %v598
        %vm808 = vcmp.lt.f32.partialorder %v807, 0.0004427343
        %v809 = vsel %vm808, %v806, %v803
        %v810 = vadd.f32 %v600, 1.0
        %v811 = vlog2.pop %v810
        %v812 = vmul.f32 %v811, 0.6931472
        %v813 = vmul.f32 -0.5, %v600
        %v814 = vadd.f32 %v813, 1.0
        %v815 = vmul.f32 %v814, %v600
        %v816 = vand.u32 2147483647, %v600
        %vm817 = vcmp.lt.f32.partialorder %v816, 0.0004427343
        %v818 = vsel %vm817, %v815, %v812
        %v819 = vadd.f32 %v602, 1.0
        %v820 = vlog2.pop %v819
        %v821 = vmul.f32 %v820, 0.6931472
        %v822 = vmul.f32 -0.5, %v602
        %v823 = vadd.f32 %v822, 1.0
        %v824 = vmul.f32 %v823, %v602
        %v825 = vand.u32 2147483647, %v602
        %vm826 = vcmp.lt.f32.partialorder %v825, 0.0004427343
        %v827 = vsel %vm826, %v824, %v821
        %v828 = vadd.f32 %v604, 1.0
        %v829 = vlog2.pop %v828
        %v830 = vmul.f32 %v829, 0.6931472
        %v831 = vmul.f32 -0.5, %v604
        %v832 = vadd.f32 %v831, 1.0
        %v833 = vmul.f32 %v832, %v604
        %v834 = vand.u32 2147483647, %v604
        %vm835 = vcmp.lt.f32.partialorder %v834, 0.0004427343
        %v836 = vsel %vm835, %v833, %v830
        %v837 = vadd.f32 %v606, 1.0
        %v838 = vlog2.pop %v837
        %v839 = vmul.f32 %v838, 0.6931472
        %v840 = vmul.f32 -0.5, %v606
        %v841 = vadd.f32 %v840, 1.0
        %v842 = vmul.f32 %v841, %v606
        %v843 = vand.u32 2147483647, %v606
        %vm844 = vcmp.lt.f32.partialorder %v843, 0.0004427343
        %v845 = vsel %vm844, %v842, %v839
        %v846 = vadd.f32 %v608, 1.0
        %v847 = vlog2.pop %v846
        %v848 = vmul.f32 %v847, 0.6931472
        %v849 = vmul.f32 -0.5, %v608
        %v850 = vadd.f32 %v849, 1.0
        %v851 = vmul.f32 %v850, %v608
        %v852 = vand.u32 2147483647, %v608
        %vm853 = vcmp.lt.f32.partialorder %v852, 0.0004427343
        %v854 = vsel %vm853, %v851, %v848
        %v855 = vadd.f32 %v610, 1.0
        %v856 = vlog2.pop %v855
        %v857 = vmul.f32 %v856, 0.6931472
        %v858 = vmul.f32 -0.5, %v610
        %v859 = vadd.f32 %v858, 1.0
        %v860 = vmul.f32 %v859, %v610
        %v861 = vand.u32 2147483647, %v610
        %vm862 = vcmp.lt.f32.partialorder %v861, 0.0004427343
        %v863 = vsel %vm862, %v860, %v857
        %v864 = vadd.f32 %v612, 1.0
        %v865 = vlog2.pop %v864
        %v866 = vmul.f32 %v865, 0.6931472
        %v867 = vmul.f32 -0.5, %v612
        %v868 = vadd.f32 %v867, 1.0
        %v869 = vmul.f32 %v868, %v612
        %v870 = vand.u32 2147483647, %v612
        %vm871 = vcmp.lt.f32.partialorder %v870, 0.0004427343
        %v872 = vsel %vm871, %v869, %v866
        %v873 = vadd.f32 %v614, 1.0
        %v874 = vlog2.pop %v873
        %v875 = vmul.f32 %v874, 0.6931472
        %v876 = vmul.f32 -0.5, %v614
        %v877 = vadd.f32 %v876, 1.0
        %v878 = vmul.f32 %v877, %v614
        %v879 = vand.u32 2147483647, %v614
        %vm880 = vcmp.lt.f32.partialorder %v879, 0.0004427343
        %v881 = vsel %vm880, %v878, %v875
        %v882 = vadd.f32 %v616, 1.0
        %v883 = vlog2.pop %v882
        %v884 = vmul.f32 %v883, 0.6931472
        %v885 = vmul.f32 -0.5, %v616
        %v886 = vadd.f32 %v885, 1.0
        %v887 = vmul.f32 %v886, %v616
        %v888 = vand.u32 2147483647, %v616
        %vm889 = vcmp.lt.f32.partialorder %v888, 0.0004427343
        %v890 = vsel %vm889, %v887, %v884
        %v891 = vadd.f32 %v618, 1.0
        %v892 = vlog2.pop %v891
        %v893 = vmul.f32 %v892, 0.6931472
        %v894 = vmul.f32 -0.5, %v618
        %v895 = vadd.f32 %v894, 1.0
        %v896 = vmul.f32 %v895, %v618
        %v897 = vand.u32 2147483647, %v618
        %vm898 = vcmp.lt.f32.partialorder %v897, 0.0004427343
        %v899 = vsel %vm898, %v896, %v893
        %v900 = vadd.f32 %v620, 1.0
        %v901 = vlog2.pop %v900
        %v902 = vmul.f32 %v901, 0.6931472
        %v903 = vmul.f32 -0.5, %v620
        %v904 = vadd.f32 %v903, 1.0
        %v905 = vmul.f32 %v904, %v620
        %v906 = vand.u32 2147483647, %v620
        %vm907 = vcmp.lt.f32.partialorder %v906, 0.0004427343
        %v908 = vsel %vm907, %v905, %v902
        %v909 = vadd.f32 %v397, %v629
        %v910 = vadd.f32 %v398, %v638
        %v911 = vadd.f32 %v399, %v647
        %v912 = vadd.f32 %v400, %v656
        %v913 = vadd.f32 %v401, %v665
        %v914 = vadd.f32 %v402, %v674
        %v915 = vadd.f32 %v403, %v683
        %v916 = vadd.f32 %v404, %v692
        %v917 = vadd.f32 %v405, %v701
        %v918 = vadd.f32 %v406, %v710
        %v919 = vadd.f32 %v407, %v719
        %v920 = vadd.f32 %v408, %v728
        %v921 = vadd.f32 %v409, %v737
        %v922 = vadd.f32 %v410, %v746
        %v923 = vadd.f32 %v411, %v755
        %v924 = vadd.f32 %v412, %v764
        %v925 = vadd.f32 %v413, %v773
        %v926 = vadd.f32 %v414, %v782
        %v927 = vadd.f32 %v415, %v791
        %v928 = vadd.f32 %v416, %v800
        %v929 = vadd.f32 %v417, %v809
        %v930 = vadd.f32 %v418, %v818
        %v931 = vadd.f32 %v419, %v827
        %v932 = vadd.f32 %v420, %v836
        %v933 = vadd.f32 %v421, %v845
        %v934 = vadd.f32 %v422, %v854
        %v935 = vadd.f32 %v423, %v863
        %v936 = vadd.f32 %v424, %v872
        %v937 = vadd.f32 %v425, %v881
        %v938 = vadd.f32 %v426, %v890
        %v939 = vadd.f32 %v427, %v899
        %v940 = vadd.f32 %v428, %v908
        %v941 = vsel %vm429, %v461, %v909
        %v942 = vsel %vm430, %v462, %v910
        %v943 = vsel %vm431, %v463, %v911
        %v944 = vsel %vm432, %v464, %v912
        %v945 = vsel %vm433, %v465, %v913
        %v946 = vsel %vm434, %v466, %v914
        %v947 = vsel %vm435, %v467, %v915
        %v948 = vsel %vm436, %v468, %v916
        %v949 = vsel %vm437, %v469, %v917
        %v950 = vsel %vm438, %v470, %v918
        %v951 = vsel %vm439, %v471, %v919
        %v952 = vsel %vm440, %v472, %v920
        %v953 = vsel %vm441, %v473, %v921
        %v954 = vsel %vm442, %v474, %v922
        %v955 = vsel %vm443, %v475, %v923
        %v956 = vsel %vm444, %v476, %v924
        %v957 = vsel %vm445, %v477, %v925
        %v958 = vsel %vm446, %v478, %v926
        %v959 = vsel %vm447, %v479, %v927
        %v960 = vsel %vm448, %v480, %v928
        %v961 = vsel %vm449, %v481, %v929
        %v962 = vsel %vm450, %v482, %v930
        %v963 = vsel %vm451, %v483, %v931
        %v964 = vsel %vm452, %v484, %v932
        %v965 = vsel %vm453, %v485, %v933
        %v966 = vsel %vm454, %v486, %v934
        %v967 = vsel %vm455, %v487, %v935
        %v968 = vsel %vm456, %v488, %v936
        %v969 = vsel %vm457, %v489, %v937
        %v970 = vsel %vm458, %v490, %v938
        %v971 = vsel %vm459, %v491, %v939
        %v972 = vsel %vm460, %v492, %v940
        %v973 = vsub.f32 %v941, 0.6931472
        %v974 = vsub.f32 %v942, 0.6931472
        %v975 = vsub.f32 %v943, 0.6931472
        %v976 = vsub.f32 %v944, 0.6931472
        %v977 = vsub.f32 %v945, 0.6931472
        %v978 = vsub.f32 %v946, 0.6931472
        %v979 = vsub.f32 %v947, 0.6931472
        %v980 = vsub.f32 %v948, 0.6931472
        %v981 = vsub.f32 %v949, 0.6931472
        %v982 = vsub.f32 %v950, 0.6931472
        %v983 = vsub.f32 %v951, 0.6931472
        %v984 = vsub.f32 %v952, 0.6931472
        %v985 = vsub.f32 %v953, 0.6931472
        %v986 = vsub.f32 %v954, 0.6931472
        %v987 = vsub.f32 %v955, 0.6931472
        %v988 = vsub.f32 %v956, 0.6931472
        %v989 = vsub.f32 %v957, 0.6931472
        %v990 = vsub.f32 %v958, 0.6931472
        %v991 = vsub.f32 %v959, 0.6931472
        %v992 = vsub.f32 %v960, 0.6931472
        %v993 = vsub.f32 %v961, 0.6931472
        %v994 = vsub.f32 %v962, 0.6931472
        %v995 = vsub.f32 %v963, 0.6931472
        %v996 = vsub.f32 %v964, 0.6931472
        %v997 = vsub.f32 %v965, 0.6931472
        %v998 = vsub.f32 %v966, 0.6931472
        %v999 = vsub.f32 %v967, 0.6931472
        %v1000 = vsub.f32 %v968, 0.6931472
        %v1001 = vsub.f32 %v969, 0.6931472
        %v1002 = vsub.f32 %v970, 0.6931472
        %v1003 = vsub.f32 %v971, 0.6931472
        %v1004 = vsub.f32 %v972, 0.6931472
        %v1005 = vpack.c.bf16 %v974, %v973
        %v1006 = vpack.c.bf16 %v976, %v975
        %v1007 = vpack.c.bf16 %v978, %v977
        %v1008 = vpack.c.bf16 %v980, %v979
        %v1009 = vpack.c.bf16 %v982, %v981
        %v1010 = vpack.c.bf16 %v984, %v983
        %v1011 = vpack.c.bf16 %v986, %v985
        %v1012 = vpack.c.bf16 %v988, %v987
        %v1013 = vpack.c.bf16 %v990, %v989
        %v1014 = vpack.c.bf16 %v992, %v991
        %v1015 = vpack.c.bf16 %v994, %v993
        %v1016 = vpack.c.bf16 %v996, %v995
        %v1017 = vpack.c.bf16 %v998, %v997
        %v1018 = vpack.c.bf16 %v1000, %v999
        %v1019 = vpack.c.bf16 %v1002, %v1001
        %v1020 = vpack.c.bf16 %v1004, %v1003
        %v1021 = vld [vmem:[#allocation5] sm:$0xf]
        %v1022 = vld [vmem:[#allocation5 + $0x4] sm:$0xf]
        %v1023 = vld [vmem:[#allocation5 + $0x8] sm:$0xf]
        %v1024 = vld [vmem:[#allocation5 + $0xc] sm:$0xf]
        %v1025 = vld [vmem:[#allocation5 + $0x10] sm:$0xf]
        %v1026 = vld [vmem:[#allocation5 + $0x14] sm:$0xf]
        %v1027 = vld [vmem:[#allocation5 + $0x18] sm:$0xf]
        %v1028 = vld [vmem:[#allocation5 + $0x1c] sm:$0xf]
        %v1029 = vld [vmem:[#allocation5 + $0x20] sm:$0xf]
        %v1030 = vld [vmem:[#allocation5 + $0x24] sm:$0xf]
        %v1031 = vld [vmem:[#allocation5 + $0x28] sm:$0xf]
        %v1032 = vld [vmem:[#allocation5 + $0x2c] sm:$0xf]
        %v1033 = vld [vmem:[#allocation5 + $0x30] sm:$0xf]
        %v1034 = vld [vmem:[#allocation5 + $0x34] sm:$0xf]
        %v1035 = vld [vmem:[#allocation5 + $0x38] sm:$0xf]
        %v1036 = vld [vmem:[#allocation5 + $0x3c] sm:$0xf]
        %v1037 = vld [vmem:[#allocation7] sm:$0x1]
        %v1038 = vperm.slane %v1037, 0
        %v1055 = vunpack.c.l.b16 %v1021
        %v1056 = vunpack.c.l.b16 %v1022
        %v1057 = vunpack.c.l.b16 %v1023
        %v1058 = vunpack.c.l.b16 %v1024
        %v1059 = vunpack.c.l.b16 %v1025
        %v1060 = vunpack.c.l.b16 %v1026
        %v1061 = vunpack.c.l.b16 %v1027
        %v1062 = vunpack.c.l.b16 %v1028
        %v1063 = vunpack.c.l.b16 %v1029
        %v1064 = vunpack.c.l.b16 %v1030
        %v1065 = vunpack.c.l.b16 %v1031
        %v1066 = vunpack.c.l.b16 %v1032
        %v1067 = vunpack.c.l.b16 %v1033
        %v1068 = vunpack.c.l.b16 %v1034
        %v1069 = vunpack.c.l.b16 %v1035
        %v1070 = vunpack.c.l.b16 %v1036
        %v1071 = vpack.c.b16 %v1056, %v1055
        %v1072 = vpack.c.b16 %v1058, %v1057
        %v1073 = vpack.c.b16 %v1060, %v1059
        %v1074 = vpack.c.b16 %v1062, %v1061
        %v1075 = vpack.c.b16 %v1064, %v1063
        %v1076 = vpack.c.b16 %v1066, %v1065
        %v1077 = vpack.c.b16 %v1068, %v1067
        %v1078 = vpack.c.b16 %v1070, %v1069
        %1087 = vmatpush.bf16.msra.mxu0 %v1078
        %1088 = vmatpush.bf16.msra.mxu0 %v1077
        %1089 = vmatpush.bf16.msra.mxu0 %v1076
        %1090 = vmatpush.bf16.msra.mxu0 %v1075
        %1091 = vmatpush.bf16.msra.mxu0 %v1074
        %1092 = vmatpush.bf16.msra.mxu0 %v1073
        %1093 = vmatpush.bf16.msra.mxu0 %v1072
        %1094 = vmatpush.bf16.msra.mxu0 %v1071
        %1095 = vmatmul.bf16.gmra.mxu0 %v1005
        %v1096 = vpop.f32.mrf.mxu0
        %v1097 = vadd.f32 %v1038, %v1096
        %v1098 = vpop.f32.mrf.mxu0
        %v1099 = vadd.f32 %v1038, %v1098
        %1100 = vmatmul.bf16.gmra.mxu0 %v1006
        %v1101 = vpop.f32.mrf.mxu0
        %v1102 = vadd.f32 %v1038, %v1101
        %v1103 = vpop.f32.mrf.mxu0
        %v1104 = vadd.f32 %v1038, %v1103
        %1105 = vmatmul.bf16.gmra.mxu0 %v1007
        %v1106 = vpop.f32.mrf.mxu0
        %v1107 = vadd.f32 %v1038, %v1106
        %v1108 = vpop.f32.mrf.mxu0
        %v1109 = vadd.f32 %v1038, %v1108
        %1110 = vmatmul.bf16.gmra.mxu0 %v1008
        %v1111 = vpop.f32.mrf.mxu0
        %v1112 = vadd.f32 %v1038, %v1111
        %v1113 = vpop.f32.mrf.mxu0
        %v1114 = vadd.f32 %v1038, %v1113
        %1115 = vmatmul.bf16.gmra.mxu0 %v1009
        %v1116 = vpop.f32.mrf.mxu0
        %v1117 = vadd.f32 %v1038, %v1116
        %v1118 = vpop.f32.mrf.mxu0
        %v1119 = vadd.f32 %v1038, %v1118
        %1120 = vmatmul.bf16.gmra.mxu0 %v1010
        %v1121 = vpop.f32.mrf.mxu0
        %v1122 = vadd.f32 %v1038, %v1121
        %v1123 = vpop.f32.mrf.mxu0
        %v1124 = vadd.f32 %v1038, %v1123
        %1125 = vmatmul.bf16.gmra.mxu0 %v1011
        %v1126 = vpop.f32.mrf.mxu0
        %v1127 = vadd.f32 %v1038, %v1126
        %v1128 = vpop.f32.mrf.mxu0
        %v1129 = vadd.f32 %v1038, %v1128
        %1130 = vmatmul.bf16.gmra.mxu0 %v1012
        %v1131 = vpop.f32.mrf.mxu0
        %v1132 = vadd.f32 %v1038, %v1131
        %v1133 = vpop.f32.mrf.mxu0
        %v1134 = vadd.f32 %v1038, %v1133
        %1135 = vmatmul.bf16.gmra.mxu0 %v1013
        %v1136 = vpop.f32.mrf.mxu0
        %v1137 = vadd.f32 %v1038, %v1136
        %v1138 = vpop.f32.mrf.mxu0
        %v1139 = vadd.f32 %v1038, %v1138
        %1140 = vmatmul.bf16.gmra.mxu0 %v1014
        %v1141 = vpop.f32.mrf.mxu0
        %v1142 = vadd.f32 %v1038, %v1141
        %v1143 = vpop.f32.mrf.mxu0
        %v1144 = vadd.f32 %v1038, %v1143
        %1145 = vmatmul.bf16.gmra.mxu0 %v1015
        %v1146 = vpop.f32.mrf.mxu0
        %v1147 = vadd.f32 %v1038, %v1146
        %v1148 = vpop.f32.mrf.mxu0
        %v1149 = vadd.f32 %v1038, %v1148
        %1150 = vmatmul.bf16.gmra.mxu0 %v1016
        %v1151 = vpop.f32.mrf.mxu0
        %v1152 = vadd.f32 %v1038, %v1151
        %v1153 = vpop.f32.mrf.mxu0
        %v1154 = vadd.f32 %v1038, %v1153
        %1155 = vmatmul.bf16.gmra.mxu0 %v1017
        %v1156 = vpop.f32.mrf.mxu0
        %v1157 = vadd.f32 %v1038, %v1156
        %v1158 = vpop.f32.mrf.mxu0
        %v1159 = vadd.f32 %v1038, %v1158
        %1160 = vmatmul.bf16.gmra.mxu0 %v1018
        %v1161 = vpop.f32.mrf.mxu0
        %v1162 = vadd.f32 %v1038, %v1161
        %v1163 = vpop.f32.mrf.mxu0
        %v1164 = vadd.f32 %v1038, %v1163
        %1165 = vmatmul.bf16.gmra.mxu0 %v1019
        %v1166 = vpop.f32.mrf.mxu0
        %v1167 = vadd.f32 %v1038, %v1166
        %v1168 = vpop.f32.mrf.mxu0
        %v1169 = vadd.f32 %v1038, %v1168
        %1170 = vmatmul.bf16.gmra.mxu0 %v1020
        %v1171 = vpop.f32.mrf.mxu0
        %v1172 = vadd.f32 %v1038, %v1171
        %v1173 = vpop.f32.mrf.mxu0
        %v1174 = vadd.f32 %v1038, %v1173
        %1175 = vdwg.mxu0
        %v1176 = vmax.f32 %v1097, 0.0
        %v1177 = vmax.f32 %v1099, 0.0
        %v1178 = vmax.f32 %v1102, 0.0
        %v1179 = vmax.f32 %v1104, 0.0
        %v1180 = vmax.f32 %v1107, 0.0
        %v1181 = vmax.f32 %v1109, 0.0
        %v1182 = vmax.f32 %v1112, 0.0
        %v1183 = vmax.f32 %v1114, 0.0
        %v1184 = vmax.f32 %v1117, 0.0
        %v1185 = vmax.f32 %v1119, 0.0
        %v1186 = vmax.f32 %v1122, 0.0
        %v1187 = vmax.f32 %v1124, 0.0
        %v1188 = vmax.f32 %v1127, 0.0
        %v1189 = vmax.f32 %v1129, 0.0
        %v1190 = vmax.f32 %v1132, 0.0
        %v1191 = vmax.f32 %v1134, 0.0
        %v1192 = vmax.f32 %v1137, 0.0
        %v1193 = vmax.f32 %v1139, 0.0
        %v1194 = vmax.f32 %v1142, 0.0
        %v1195 = vmax.f32 %v1144, 0.0
        %v1196 = vmax.f32 %v1147, 0.0
        %v1197 = vmax.f32 %v1149, 0.0
        %v1198 = vmax.f32 %v1152, 0.0
        %v1199 = vmax.f32 %v1154, 0.0
        %v1200 = vmax.f32 %v1157, 0.0
        %v1201 = vmax.f32 %v1159, 0.0
        %v1202 = vmax.f32 %v1162, 0.0
        %v1203 = vmax.f32 %v1164, 0.0
        %v1204 = vmax.f32 %v1167, 0.0
        %v1205 = vmax.f32 %v1169, 0.0
        %v1206 = vmax.f32 %v1172, 0.0
        %v1207 = vmax.f32 %v1174, 0.0
        %vm1208 = vcmp.ne.f32.partialorder %v1097, %v1097
        %vm1209 = vcmp.ne.f32.partialorder %v1099, %v1099
        %vm1210 = vcmp.ne.f32.partialorder %v1102, %v1102
        %vm1211 = vcmp.ne.f32.partialorder %v1104, %v1104
        %vm1212 = vcmp.ne.f32.partialorder %v1107, %v1107
        %vm1213 = vcmp.ne.f32.partialorder %v1109, %v1109
        %vm1214 = vcmp.ne.f32.partialorder %v1112, %v1112
        %vm1215 = vcmp.ne.f32.partialorder %v1114, %v1114
        %vm1216 = vcmp.ne.f32.partialorder %v1117, %v1117
        %vm1217 = vcmp.ne.f32.partialorder %v1119, %v1119
        %vm1218 = vcmp.ne.f32.partialorder %v1122, %v1122
        %vm1219 = vcmp.ne.f32.partialorder %v1124, %v1124
        %vm1220 = vcmp.ne.f32.partialorder %v1127, %v1127
        %vm1221 = vcmp.ne.f32.partialorder %v1129, %v1129
        %vm1222 = vcmp.ne.f32.partialorder %v1132, %v1132
        %vm1223 = vcmp.ne.f32.partialorder %v1134, %v1134
        %vm1224 = vcmp.ne.f32.partialorder %v1137, %v1137
        %vm1225 = vcmp.ne.f32.partialorder %v1139, %v1139
        %vm1226 = vcmp.ne.f32.partialorder %v1142, %v1142
        %vm1227 = vcmp.ne.f32.partialorder %v1144, %v1144
        %vm1228 = vcmp.ne.f32.partialorder %v1147, %v1147
        %vm1229 = vcmp.ne.f32.partialorder %v1149, %v1149
        %vm1230 = vcmp.ne.f32.partialorder %v1152, %v1152
        %vm1231 = vcmp.ne.f32.partialorder %v1154, %v1154
        %vm1232 = vcmp.ne.f32.partialorder %v1157, %v1157
        %vm1233 = vcmp.ne.f32.partialorder %v1159, %v1159
        %vm1234 = vcmp.ne.f32.partialorder %v1162, %v1162
        %vm1235 = vcmp.ne.f32.partialorder %v1164, %v1164
        %vm1236 = vcmp.ne.f32.partialorder %v1167, %v1167
        %vm1237 = vcmp.ne.f32.partialorder %v1169, %v1169
        %vm1238 = vcmp.ne.f32.partialorder %v1172, %v1172
        %vm1239 = vcmp.ne.f32.partialorder %v1174, %v1174
        %v1240 = vadd.f32 %v1097, 0.0
        %v1241 = vadd.f32 %v1099, 0.0
        %v1242 = vadd.f32 %v1102, 0.0
        %v1243 = vadd.f32 %v1104, 0.0
        %v1244 = vadd.f32 %v1107, 0.0
        %v1245 = vadd.f32 %v1109, 0.0
        %v1246 = vadd.f32 %v1112, 0.0
        %v1247 = vadd.f32 %v1114, 0.0
        %v1248 = vadd.f32 %v1117, 0.0
        %v1249 = vadd.f32 %v1119, 0.0
        %v1250 = vadd.f32 %v1122, 0.0
        %v1251 = vadd.f32 %v1124, 0.0
        %v1252 = vadd.f32 %v1127, 0.0
        %v1253 = vadd.f32 %v1129, 0.0
        %v1254 = vadd.f32 %v1132, 0.0
        %v1255 = vadd.f32 %v1134, 0.0
        %v1256 = vadd.f32 %v1137, 0.0
        %v1257 = vadd.f32 %v1139, 0.0
        %v1258 = vadd.f32 %v1142, 0.0
        %v1259 = vadd.f32 %v1144, 0.0
        %v1260 = vadd.f32 %v1147, 0.0
        %v1261 = vadd.f32 %v1149, 0.0
        %v1262 = vadd.f32 %v1152, 0.0
        %v1263 = vadd.f32 %v1154, 0.0
        %v1264 = vadd.f32 %v1157, 0.0
        %v1265 = vadd.f32 %v1159, 0.0
        %v1266 = vadd.f32 %v1162, 0.0
        %v1267 = vadd.f32 %v1164, 0.0
        %v1268 = vadd.f32 %v1167, 0.0
        %v1269 = vadd.f32 %v1169, 0.0
        %v1270 = vadd.f32 %v1172, 0.0
        %v1271 = vadd.f32 %v1174, 0.0
        %v1272 = vand.u32 2147483647, %v1097
        %v1273 = vand.u32 2147483647, %v1099
        %v1274 = vand.u32 2147483647, %v1102
        %v1275 = vand.u32 2147483647, %v1104
        %v1276 = vand.u32 2147483647, %v1107
        %v1277 = vand.u32 2147483647, %v1109
        %v1278 = vand.u32 2147483647, %v1112
        %v1279 = vand.u32 2147483647, %v1114
        %v1280 = vand.u32 2147483647, %v1117
        %v1281 = vand.u32 2147483647, %v1119
        %v1282 = vand.u32 2147483647, %v1122
        %v1283 = vand.u32 2147483647, %v1124
        %v1284 = vand.u32 2147483647, %v1127
        %v1285 = vand.u32 2147483647, %v1129
        %v1286 = vand.u32 2147483647, %v1132
        %v1287 = vand.u32 2147483647, %v1134
        %v1288 = vand.u32 2147483647, %v1137
        %v1289 = vand.u32 2147483647, %v1139
        %v1290 = vand.u32 2147483647, %v1142
        %v1291 = vand.u32 2147483647, %v1144
        %v1292 = vand.u32 2147483647, %v1147
        %v1293 = vand.u32 2147483647, %v1149
        %v1294 = vand.u32 2147483647, %v1152
        %v1295 = vand.u32 2147483647, %v1154
        %v1296 = vand.u32 2147483647, %v1157
        %v1297 = vand.u32 2147483647, %v1159
        %v1298 = vand.u32 2147483647, %v1162
        %v1299 = vand.u32 2147483647, %v1164
        %v1300 = vand.u32 2147483647, %v1167
        %v1301 = vand.u32 2147483647, %v1169
        %v1302 = vand.u32 2147483647, %v1172
        %v1303 = vand.u32 2147483647, %v1174
        %v1304 = vsub.f32 0.0, %v1272
        %v1305 = vsub.f32 0.0, %v1273
        %v1306 = vsub.f32 0.0, %v1274
        %v1307 = vsub.f32 0.0, %v1275
        %v1308 = vsub.f32 0.0, %v1276
        %v1309 = vsub.f32 0.0, %v1277
        %v1310 = vsub.f32 0.0, %v1278
        %v1311 = vsub.f32 0.0, %v1279
        %v1312 = vsub.f32 0.0, %v1280
        %v1313 = vsub.f32 0.0, %v1281
        %v1314 = vsub.f32 0.0, %v1282
        %v1315 = vsub.f32 0.0, %v1283
        %v1316 = vsub.f32 0.0, %v1284
        %v1317 = vsub.f32 0.0, %v1285
        %v1318 = vsub.f32 0.0, %v1286
        %v1319 = vsub.f32 0.0, %v1287
        %v1320 = vsub.f32 0.0, %v1288
        %v1321 = vsub.f32 0.0, %v1289
        %v1322 = vsub.f32 0.0, %v1290
        %v1323 = vsub.f32 0.0, %v1291
        %v1324 = vsub.f32 0.0, %v1292
        %v1325 = vsub.f32 0.0, %v1293
        %v1326 = vsub.f32 0.0, %v1294
        %v1327 = vsub.f32 0.0, %v1295
        %v1328 = vsub.f32 0.0, %v1296
        %v1329 = vsub.f32 0.0, %v1297
        %v1330 = vsub.f32 0.0, %v1298
        %v1331 = vsub.f32 0.0, %v1299
        %v1332 = vsub.f32 0.0, %v1300
        %v1333 = vsub.f32 0.0, %v1301
        %v1334 = vsub.f32 0.0, %v1302
        %v1335 = vsub.f32 0.0, %v1303
        %v1336 = vmul.f32 %v1304, 1.442695
        %v1337 = vpow.pop %v1336
        %v1338 = vmul.f32 %v1305, 1.442695
        %v1339 = vpow.pop %v1338
        %v1340 = vmul.f32 %v1306, 1.442695
        %v1341 = vpow.pop %v1340
        %v1342 = vmul.f32 %v1307, 1.442695
        %v1343 = vpow.pop %v1342
        %v1344 = vmul.f32 %v1308, 1.442695
        %v1345 = vpow.pop %v1344
        %v1346 = vmul.f32 %v1309, 1.442695
        %v1347 = vpow.pop %v1346
        %v1348 = vmul.f32 %v1310, 1.442695
        %v1349 = vpow.pop %v1348
        %v1350 = vmul.f32 %v1311, 1.442695
        %v1351 = vpow.pop %v1350
        %v1352 = vmul.f32 %v1312, 1.442695
        %v1353 = vpow.pop %v1352
        %v1354 = vmul.f32 %v1313, 1.442695
        %v1355 = vpow.pop %v1354
        %v1356 = vmul.f32 %v1314, 1.442695
        %v1357 = vpow.pop %v1356
        %v1358 = vmul.f32 %v1315, 1.442695
        %v1359 = vpow.pop %v1358
        %v1360 = vmul.f32 %v1316, 1.442695
        %v1361 = vpow.pop %v1360
        %v1362 = vmul.f32 %v1317, 1.442695
        %v1363 = vpow.pop %v1362
        %v1364 = vmul.f32 %v1318, 1.442695
        %v1365 = vpow.pop %v1364
        %v1366 = vmul.f32 %v1319, 1.442695
        %v1367 = vpow.pop %v1366
        %v1368 = vmul.f32 %v1320, 1.442695
        %v1369 = vpow.pop %v1368
        %v1370 = vmul.f32 %v1321, 1.442695
        %v1371 = vpow.pop %v1370
        %v1372 = vmul.f32 %v1322, 1.442695
        %v1373 = vpow.pop %v1372
        %v1374 = vmul.f32 %v1323, 1.442695
        %v1375 = vpow.pop %v1374
        %v1376 = vmul.f32 %v1324, 1.442695
        %v1377 = vpow.pop %v1376
        %v1378 = vmul.f32 %v1325, 1.442695
        %v1379 = vpow.pop %v1378
        %v1380 = vmul.f32 %v1326, 1.442695
        %v1381 = vpow.pop %v1380
        %v1382 = vmul.f32 %v1327, 1.442695
        %v1383 = vpow.pop %v1382
        %v1384 = vmul.f32 %v1328, 1.442695
        %v1385 = vpow.pop %v1384
        %v1386 = vmul.f32 %v1329, 1.442695
        %v1387 = vpow.pop %v1386
        %v1388 = vmul.f32 %v1330, 1.442695
        %v1389 = vpow.pop %v1388
        %v1390 = vmul.f32 %v1331, 1.442695
        %v1391 = vpow.pop %v1390
        %v1392 = vmul.f32 %v1332, 1.442695
        %v1393 = vpow.pop %v1392
        %v1394 = vmul.f32 %v1333, 1.442695
        %v1395 = vpow.pop %v1394
        %v1396 = vmul.f32 %v1334, 1.442695
        %v1397 = vpow.pop %v1396
        %v1398 = vmul.f32 %v1335, 1.442695
        %v1399 = vpow.pop %v1398
        %v1400 = vadd.f32 %v1337, 1.0
        %v1401 = vlog2.pop %v1400
        %v1402 = vmul.f32 %v1401, 0.6931472
        %v1403 = vmul.f32 -0.5, %v1337
        %v1404 = vadd.f32 %v1403, 1.0
        %v1405 = vmul.f32 %v1404, %v1337
        %v1406 = vand.u32 2147483647, %v1337
        %vm1407 = vcmp.lt.f32.partialorder %v1406, 0.0004427343
        %v1408 = vsel %vm1407, %v1405, %v1402
        %v1409 = vadd.f32 %v1339, 1.0
        %v1410 = vlog2.pop %v1409
        %v1411 = vmul.f32 %v1410, 0.6931472
        %v1412 = vmul.f32 -0.5, %v1339
        %v1413 = vadd.f32 %v1412, 1.0
        %v1414 = vmul.f32 %v1413, %v1339
        %v1415 = vand.u32 2147483647, %v1339
        %vm1416 = vcmp.lt.f32.partialorder %v1415, 0.0004427343
        %v1417 = vsel %vm1416, %v1414, %v1411
        %v1418 = vadd.f32 %v1341, 1.0
        %v1419 = vlog2.pop %v1418
        %v1420 = vmul.f32 %v1419, 0.6931472
        %v1421 = vmul.f32 -0.5, %v1341
        %v1422 = vadd.f32 %v1421, 1.0
        %v1423 = vmul.f32 %v1422, %v1341
        %v1424 = vand.u32 2147483647, %v1341
        %vm1425 = vcmp.lt.f32.partialorder %v1424, 0.0004427343
        %v1426 = vsel %vm1425, %v1423, %v1420
        %v1427 = vadd.f32 %v1343, 1.0
        %v1428 = vlog2.pop %v1427
        %v1429 = vmul.f32 %v1428, 0.6931472
        %v1430 = vmul.f32 -0.5, %v1343
        %v1431 = vadd.f32 %v1430, 1.0
        %v1432 = vmul.f32 %v1431, %v1343
        %v1433 = vand.u32 2147483647, %v1343
        %vm1434 = vcmp.lt.f32.partialorder %v1433, 0.0004427343
        %v1435 = vsel %vm1434, %v1432, %v1429
        %v1436 = vadd.f32 %v1345, 1.0
        %v1437 = vlog2.pop %v1436
        %v1438 = vmul.f32 %v1437, 0.6931472
        %v1439 = vmul.f32 -0.5, %v1345
        %v1440 = vadd.f32 %v1439, 1.0
        %v1441 = vmul.f32 %v1440, %v1345
        %v1442 = vand.u32 2147483647, %v1345
        %vm1443 = vcmp.lt.f32.partialorder %v1442, 0.0004427343
        %v1444 = vsel %vm1443, %v1441, %v1438
        %v1445 = vadd.f32 %v1347, 1.0
        %v1446 = vlog2.pop %v1445
        %v1447 = vmul.f32 %v1446, 0.6931472
        %v1448 = vmul.f32 -0.5, %v1347
        %v1449 = vadd.f32 %v1448, 1.0
        %v1450 = vmul.f32 %v1449, %v1347
        %v1451 = vand.u32 2147483647, %v1347
        %vm1452 = vcmp.lt.f32.partialorder %v1451, 0.0004427343
        %v1453 = vsel %vm1452, %v1450, %v1447
        %v1454 = vadd.f32 %v1349, 1.0
        %v1455 = vlog2.pop %v1454
        %v1456 = vmul.f32 %v1455, 0.6931472
        %v1457 = vmul.f32 -0.5, %v1349
        %v1458 = vadd.f32 %v1457, 1.0
        %v1459 = vmul.f32 %v1458, %v1349
        %v1460 = vand.u32 2147483647, %v1349
        %vm1461 = vcmp.lt.f32.partialorder %v1460, 0.0004427343
        %v1462 = vsel %vm1461, %v1459, %v1456
        %v1463 = vadd.f32 %v1351, 1.0
        %v1464 = vlog2.pop %v1463
        %v1465 = vmul.f32 %v1464, 0.6931472
        %v1466 = vmul.f32 -0.5, %v1351
        %v1467 = vadd.f32 %v1466, 1.0
        %v1468 = vmul.f32 %v1467, %v1351
        %v1469 = vand.u32 2147483647, %v1351
        %vm1470 = vcmp.lt.f32.partialorder %v1469, 0.0004427343
        %v1471 = vsel %vm1470, %v1468, %v1465
        %v1472 = vadd.f32 %v1353, 1.0
        %v1473 = vlog2.pop %v1472
        %v1474 = vmul.f32 %v1473, 0.6931472
        %v1475 = vmul.f32 -0.5, %v1353
        %v1476 = vadd.f32 %v1475, 1.0
        %v1477 = vmul.f32 %v1476, %v1353
        %v1478 = vand.u32 2147483647, %v1353
        %vm1479 = vcmp.lt.f32.partialorder %v1478, 0.0004427343
        %v1480 = vsel %vm1479, %v1477, %v1474
        %v1481 = vadd.f32 %v1355, 1.0
        %v1482 = vlog2.pop %v1481
        %v1483 = vmul.f32 %v1482, 0.6931472
        %v1484 = vmul.f32 -0.5, %v1355
        %v1485 = vadd.f32 %v1484, 1.0
        %v1486 = vmul.f32 %v1485, %v1355
        %v1487 = vand.u32 2147483647, %v1355
        %vm1488 = vcmp.lt.f32.partialorder %v1487, 0.0004427343
        %v1489 = vsel %vm1488, %v1486, %v1483
        %v1490 = vadd.f32 %v1357, 1.0
        %v1491 = vlog2.pop %v1490
        %v1492 = vmul.f32 %v1491, 0.6931472
        %v1493 = vmul.f32 -0.5, %v1357
        %v1494 = vadd.f32 %v1493, 1.0
        %v1495 = vmul.f32 %v1494, %v1357
        %v1496 = vand.u32 2147483647, %v1357
        %vm1497 = vcmp.lt.f32.partialorder %v1496, 0.0004427343
        %v1498 = vsel %vm1497, %v1495, %v1492
        %v1499 = vadd.f32 %v1359, 1.0
        %v1500 = vlog2.pop %v1499
        %v1501 = vmul.f32 %v1500, 0.6931472
        %v1502 = vmul.f32 -0.5, %v1359
        %v1503 = vadd.f32 %v1502, 1.0
        %v1504 = vmul.f32 %v1503, %v1359
        %v1505 = vand.u32 2147483647, %v1359
        %vm1506 = vcmp.lt.f32.partialorder %v1505, 0.0004427343
        %v1507 = vsel %vm1506, %v1504, %v1501
        %v1508 = vadd.f32 %v1361, 1.0
        %v1509 = vlog2.pop %v1508
        %v1510 = vmul.f32 %v1509, 0.6931472
        %v1511 = vmul.f32 -0.5, %v1361
        %v1512 = vadd.f32 %v1511, 1.0
        %v1513 = vmul.f32 %v1512, %v1361
        %v1514 = vand.u32 2147483647, %v1361
        %vm1515 = vcmp.lt.f32.partialorder %v1514, 0.0004427343
        %v1516 = vsel %vm1515, %v1513, %v1510
        %v1517 = vadd.f32 %v1363, 1.0
        %v1518 = vlog2.pop %v1517
        %v1519 = vmul.f32 %v1518, 0.6931472
        %v1520 = vmul.f32 -0.5, %v1363
        %v1521 = vadd.f32 %v1520, 1.0
        %v1522 = vmul.f32 %v1521, %v1363
        %v1523 = vand.u32 2147483647, %v1363
        %vm1524 = vcmp.lt.f32.partialorder %v1523, 0.0004427343
        %v1525 = vsel %vm1524, %v1522, %v1519
        %v1526 = vadd.f32 %v1365, 1.0
        %v1527 = vlog2.pop %v1526
        %v1528 = vmul.f32 %v1527, 0.6931472
        %v1529 = vmul.f32 -0.5, %v1365
        %v1530 = vadd.f32 %v1529, 1.0
        %v1531 = vmul.f32 %v1530, %v1365
        %v1532 = vand.u32 2147483647, %v1365
        %vm1533 = vcmp.lt.f32.partialorder %v1532, 0.0004427343
        %v1534 = vsel %vm1533, %v1531, %v1528
        %v1535 = vadd.f32 %v1367, 1.0
        %v1536 = vlog2.pop %v1535
        %v1537 = vmul.f32 %v1536, 0.6931472
        %v1538 = vmul.f32 -0.5, %v1367
        %v1539 = vadd.f32 %v1538, 1.0
        %v1540 = vmul.f32 %v1539, %v1367
        %v1541 = vand.u32 2147483647, %v1367
        %vm1542 = vcmp.lt.f32.partialorder %v1541, 0.0004427343
        %v1543 = vsel %vm1542, %v1540, %v1537
        %v1544 = vadd.f32 %v1369, 1.0
        %v1545 = vlog2.pop %v1544
        %v1546 = vmul.f32 %v1545, 0.6931472
        %v1547 = vmul.f32 -0.5, %v1369
        %v1548 = vadd.f32 %v1547, 1.0
        %v1549 = vmul.f32 %v1548, %v1369
        %v1550 = vand.u32 2147483647, %v1369
        %vm1551 = vcmp.lt.f32.partialorder %v1550, 0.0004427343
        %v1552 = vsel %vm1551, %v1549, %v1546
        %v1553 = vadd.f32 %v1371, 1.0
        %v1554 = vlog2.pop %v1553
        %v1555 = vmul.f32 %v1554, 0.6931472
        %v1556 = vmul.f32 -0.5, %v1371
        %v1557 = vadd.f32 %v1556, 1.0
        %v1558 = vmul.f32 %v1557, %v1371
        %v1559 = vand.u32 2147483647, %v1371
        %vm1560 = vcmp.lt.f32.partialorder %v1559, 0.0004427343
        %v1561 = vsel %vm1560, %v1558, %v1555
        %v1562 = vadd.f32 %v1373, 1.0
        %v1563 = vlog2.pop %v1562
        %v1564 = vmul.f32 %v1563, 0.6931472
        %v1565 = vmul.f32 -0.5, %v1373
        %v1566 = vadd.f32 %v1565, 1.0
        %v1567 = vmul.f32 %v1566, %v1373
        %v1568 = vand.u32 2147483647, %v1373
        %vm1569 = vcmp.lt.f32.partialorder %v1568, 0.0004427343
        %v1570 = vsel %vm1569, %v1567, %v1564
        %v1571 = vadd.f32 %v1375, 1.0
        %v1572 = vlog2.pop %v1571
        %v1573 = vmul.f32 %v1572, 0.6931472
        %v1574 = vmul.f32 -0.5, %v1375
        %v1575 = vadd.f32 %v1574, 1.0
        %v1576 = vmul.f32 %v1575, %v1375
        %v1577 = vand.u32 2147483647, %v1375
        %vm1578 = vcmp.lt.f32.partialorder %v1577, 0.0004427343
        %v1579 = vsel %vm1578, %v1576, %v1573
        %v1580 = vadd.f32 %v1377, 1.0
        %v1581 = vlog2.pop %v1580
        %v1582 = vmul.f32 %v1581, 0.6931472
        %v1583 = vmul.f32 -0.5, %v1377
        %v1584 = vadd.f32 %v1583, 1.0
        %v1585 = vmul.f32 %v1584, %v1377
        %v1586 = vand.u32 2147483647, %v1377
        %vm1587 = vcmp.lt.f32.partialorder %v1586, 0.0004427343
        %v1588 = vsel %vm1587, %v1585, %v1582
        %v1589 = vadd.f32 %v1379, 1.0
        %v1590 = vlog2.pop %v1589
        %v1591 = vmul.f32 %v1590, 0.6931472
        %v1592 = vmul.f32 -0.5, %v1379
        %v1593 = vadd.f32 %v1592, 1.0
        %v1594 = vmul.f32 %v1593, %v1379
        %v1595 = vand.u32 2147483647, %v1379
        %vm1596 = vcmp.lt.f32.partialorder %v1595, 0.0004427343
        %v1597 = vsel %vm1596, %v1594, %v1591
        %v1598 = vadd.f32 %v1381, 1.0
        %v1599 = vlog2.pop %v1598
        %v1600 = vmul.f32 %v1599, 0.6931472
        %v1601 = vmul.f32 -0.5, %v1381
        %v1602 = vadd.f32 %v1601, 1.0
        %v1603 = vmul.f32 %v1602, %v1381
        %v1604 = vand.u32 2147483647, %v1381
        %vm1605 = vcmp.lt.f32.partialorder %v1604, 0.0004427343
        %v1606 = vsel %vm1605, %v1603, %v1600
        %v1607 = vadd.f32 %v1383, 1.0
        %v1608 = vlog2.pop %v1607
        %v1609 = vmul.f32 %v1608, 0.6931472
        %v1610 = vmul.f32 -0.5, %v1383
        %v1611 = vadd.f32 %v1610, 1.0
        %v1612 = vmul.f32 %v1611, %v1383
        %v1613 = vand.u32 2147483647, %v1383
        %vm1614 = vcmp.lt.f32.partialorder %v1613, 0.0004427343
        %v1615 = vsel %vm1614, %v1612, %v1609
        %v1616 = vadd.f32 %v1385, 1.0
        %v1617 = vlog2.pop %v1616
        %v1618 = vmul.f32 %v1617, 0.6931472
        %v1619 = vmul.f32 -0.5, %v1385
        %v1620 = vadd.f32 %v1619, 1.0
        %v1621 = vmul.f32 %v1620, %v1385
        %v1622 = vand.u32 2147483647, %v1385
        %vm1623 = vcmp.lt.f32.partialorder %v1622, 0.0004427343
        %v1624 = vsel %vm1623, %v1621, %v1618
        %v1625 = vadd.f32 %v1387, 1.0
        %v1626 = vlog2.pop %v1625
        %v1627 = vmul.f32 %v1626, 0.6931472
        %v1628 = vmul.f32 -0.5, %v1387
        %v1629 = vadd.f32 %v1628, 1.0
        %v1630 = vmul.f32 %v1629, %v1387
        %v1631 = vand.u32 2147483647, %v1387
        %vm1632 = vcmp.lt.f32.partialorder %v1631, 0.0004427343
        %v1633 = vsel %vm1632, %v1630, %v1627
        %v1634 = vadd.f32 %v1389, 1.0
        %v1635 = vlog2.pop %v1634
        %v1636 = vmul.f32 %v1635, 0.6931472
        %v1637 = vmul.f32 -0.5, %v1389
        %v1638 = vadd.f32 %v1637, 1.0
        %v1639 = vmul.f32 %v1638, %v1389
        %v1640 = vand.u32 2147483647, %v1389
        %vm1641 = vcmp.lt.f32.partialorder %v1640, 0.0004427343
        %v1642 = vsel %vm1641, %v1639, %v1636
        %v1643 = vadd.f32 %v1391, 1.0
        %v1644 = vlog2.pop %v1643
        %v1645 = vmul.f32 %v1644, 0.6931472
        %v1646 = vmul.f32 -0.5, %v1391
        %v1647 = vadd.f32 %v1646, 1.0
        %v1648 = vmul.f32 %v1647, %v1391
        %v1649 = vand.u32 2147483647, %v1391
        %vm1650 = vcmp.lt.f32.partialorder %v1649, 0.0004427343
        %v1651 = vsel %vm1650, %v1648, %v1645
        %v1652 = vadd.f32 %v1393, 1.0
        %v1653 = vlog2.pop %v1652
        %v1654 = vmul.f32 %v1653, 0.6931472
        %v1655 = vmul.f32 -0.5, %v1393
        %v1656 = vadd.f32 %v1655, 1.0
        %v1657 = vmul.f32 %v1656, %v1393
        %v1658 = vand.u32 2147483647, %v1393
        %vm1659 = vcmp.lt.f32.partialorder %v1658, 0.0004427343
        %v1660 = vsel %vm1659, %v1657, %v1654
        %v1661 = vadd.f32 %v1395, 1.0
        %v1662 = vlog2.pop %v1661
        %v1663 = vmul.f32 %v1662, 0.6931472
        %v1664 = vmul.f32 -0.5, %v1395
        %v1665 = vadd.f32 %v1664, 1.0
        %v1666 = vmul.f32 %v1665, %v1395
        %v1667 = vand.u32 2147483647, %v1395
        %vm1668 = vcmp.lt.f32.partialorder %v1667, 0.0004427343
        %v1669 = vsel %vm1668, %v1666, %v1663
        %v1670 = vadd.f32 %v1397, 1.0
        %v1671 = vlog2.pop %v1670
        %v1672 = vmul.f32 %v1671, 0.6931472
        %v1673 = vmul.f32 -0.5, %v1397
        %v1674 = vadd.f32 %v1673, 1.0
        %v1675 = vmul.f32 %v1674, %v1397
        %v1676 = vand.u32 2147483647, %v1397
        %vm1677 = vcmp.lt.f32.partialorder %v1676, 0.0004427343
        %v1678 = vsel %vm1677, %v1675, %v1672
        %v1679 = vadd.f32 %v1399, 1.0
        %v1680 = vlog2.pop %v1679
        %v1681 = vmul.f32 %v1680, 0.6931472
        %v1682 = vmul.f32 -0.5, %v1399
        %v1683 = vadd.f32 %v1682, 1.0
        %v1684 = vmul.f32 %v1683, %v1399
        %v1685 = vand.u32 2147483647, %v1399
        %vm1686 = vcmp.lt.f32.partialorder %v1685, 0.0004427343
        %v1687 = vsel %vm1686, %v1684, %v1681
        %v1688 = vadd.f32 %v1176, %v1408
        %v1689 = vadd.f32 %v1177, %v1417
        %v1690 = vadd.f32 %v1178, %v1426
        %v1691 = vadd.f32 %v1179, %v1435
        %v1692 = vadd.f32 %v1180, %v1444
        %v1693 = vadd.f32 %v1181, %v1453
        %v1694 = vadd.f32 %v1182, %v1462
        %v1695 = vadd.f32 %v1183, %v1471
        %v1696 = vadd.f32 %v1184, %v1480
        %v1697 = vadd.f32 %v1185, %v1489
        %v1698 = vadd.f32 %v1186, %v1498
        %v1699 = vadd.f32 %v1187, %v1507
        %v1700 = vadd.f32 %v1188, %v1516
        %v1701 = vadd.f32 %v1189, %v1525
        %v1702 = vadd.f32 %v1190, %v1534
        %v1703 = vadd.f32 %v1191, %v1543
        %v1704 = vadd.f32 %v1192, %v1552
        %v1705 = vadd.f32 %v1193, %v1561
        %v1706 = vadd.f32 %v1194, %v1570
        %v1707 = vadd.f32 %v1195, %v1579
        %v1708 = vadd.f32 %v1196, %v1588
        %v1709 = vadd.f32 %v1197, %v1597
        %v1710 = vadd.f32 %v1198, %v1606
        %v1711 = vadd.f32 %v1199, %v1615
        %v1712 = vadd.f32 %v1200, %v1624
        %v1713 = vadd.f32 %v1201, %v1633
        %v1714 = vadd.f32 %v1202, %v1642
        %v1715 = vadd.f32 %v1203, %v1651
        %v1716 = vadd.f32 %v1204, %v1660
        %v1717 = vadd.f32 %v1205, %v1669
        %v1718 = vadd.f32 %v1206, %v1678
        %v1719 = vadd.f32 %v1207, %v1687
        %v1720 = vsel %vm1208, %v1240, %v1688
        %v1721 = vsel %vm1209, %v1241, %v1689
        %v1722 = vsel %vm1210, %v1242, %v1690
        %v1723 = vsel %vm1211, %v1243, %v1691
        %v1724 = vsel %vm1212, %v1244, %v1692
        %v1725 = vsel %vm1213, %v1245, %v1693
        %v1726 = vsel %vm1214, %v1246, %v1694
        %v1727 = vsel %vm1215, %v1247, %v1695
        %v1728 = vsel %vm1216, %v1248, %v1696
        %v1729 = vsel %vm1217, %v1249, %v1697
        %v1730 = vsel %vm1218, %v1250, %v1698
        %v1731 = vsel %vm1219, %v1251, %v1699
        %v1732 = vsel %vm1220, %v1252, %v1700
        %v1733 = vsel %vm1221, %v1253, %v1701
        %v1734 = vsel %vm1222, %v1254, %v1702
        %v1735 = vsel %vm1223, %v1255, %v1703
        %v1736 = vsel %vm1224, %v1256, %v1704
        %v1737 = vsel %vm1225, %v1257, %v1705
        %v1738 = vsel %vm1226, %v1258, %v1706
        %v1739 = vsel %vm1227, %v1259, %v1707
        %v1740 = vsel %vm1228, %v1260, %v1708
        %v1741 = vsel %vm1229, %v1261, %v1709
        %v1742 = vsel %vm1230, %v1262, %v1710
        %v1743 = vsel %vm1231, %v1263, %v1711
        %v1744 = vsel %vm1232, %v1264, %v1712
        %v1745 = vsel %vm1233, %v1265, %v1713
        %v1746 = vsel %vm1234, %v1266, %v1714
        %v1747 = vsel %vm1235, %v1267, %v1715
        %v1748 = vsel %vm1236, %v1268, %v1716
        %v1749 = vsel %vm1237, %v1269, %v1717
        %v1750 = vsel %vm1238, %v1270, %v1718
        %v1751 = vsel %vm1239, %v1271, %v1719
        %v1752 = vsub.f32 %v1720, 0.6931472
        %v1753 = vsub.f32 %v1721, 0.6931472
        %v1754 = vsub.f32 %v1722, 0.6931472
        %v1755 = vsub.f32 %v1723, 0.6931472
        %v1756 = vsub.f32 %v1724, 0.6931472
        %v1757 = vsub.f32 %v1725, 0.6931472
        %v1758 = vsub.f32 %v1726, 0.6931472
        %v1759 = vsub.f32 %v1727, 0.6931472
        %v1760 = vsub.f32 %v1728, 0.6931472
        %v1761 = vsub.f32 %v1729, 0.6931472
        %v1762 = vsub.f32 %v1730, 0.6931472
        %v1763 = vsub.f32 %v1731, 0.6931472
        %v1764 = vsub.f32 %v1732, 0.6931472
        %v1765 = vsub.f32 %v1733, 0.6931472
        %v1766 = vsub.f32 %v1734, 0.6931472
        %v1767 = vsub.f32 %v1735, 0.6931472
        %v1768 = vsub.f32 %v1736, 0.6931472
        %v1769 = vsub.f32 %v1737, 0.6931472
        %v1770 = vsub.f32 %v1738, 0.6931472
        %v1771 = vsub.f32 %v1739, 0.6931472
        %v1772 = vsub.f32 %v1740, 0.6931472
        %v1773 = vsub.f32 %v1741, 0.6931472
        %v1774 = vsub.f32 %v1742, 0.6931472
        %v1775 = vsub.f32 %v1743, 0.6931472
        %v1776 = vsub.f32 %v1744, 0.6931472
        %v1777 = vsub.f32 %v1745, 0.6931472
        %v1778 = vsub.f32 %v1746, 0.6931472
        %v1779 = vsub.f32 %v1747, 0.6931472
        %v1780 = vsub.f32 %v1748, 0.6931472
        %v1781 = vsub.f32 %v1749, 0.6931472
        %v1782 = vsub.f32 %v1750, 0.6931472
        %v1783 = vsub.f32 %v1751, 0.6931472
        %v1784 = vpack.c.bf16 %v1753, %v1752
        %v1785 = vpack.c.bf16 %v1755, %v1754
        %v1786 = vpack.c.bf16 %v1757, %v1756
        %v1787 = vpack.c.bf16 %v1759, %v1758
        %v1788 = vpack.c.bf16 %v1761, %v1760
        %v1789 = vpack.c.bf16 %v1763, %v1762
        %v1790 = vpack.c.bf16 %v1765, %v1764
        %v1791 = vpack.c.bf16 %v1767, %v1766
        %v1792 = vpack.c.bf16 %v1769, %v1768
        %v1793 = vpack.c.bf16 %v1771, %v1770
        %v1794 = vpack.c.bf16 %v1773, %v1772
        %v1795 = vpack.c.bf16 %v1775, %v1774
        %v1796 = vpack.c.bf16 %v1777, %v1776
        %v1797 = vpack.c.bf16 %v1779, %v1778
        %v1798 = vpack.c.bf16 %v1781, %v1780
        %v1799 = vpack.c.bf16 %v1783, %v1782
        %v1800 = vld [vmem:[#allocation8] sm:$0xf]
        %v1801 = vld [vmem:[#allocation8 + $0x4] sm:$0xf]
        %v1802 = vld [vmem:[#allocation8 + $0x8] sm:$0xf]
        %v1803 = vld [vmem:[#allocation8 + $0xc] sm:$0xf]
        %v1804 = vld [vmem:[#allocation8 + $0x10] sm:$0xf]
        %v1805 = vld [vmem:[#allocation8 + $0x14] sm:$0xf]
        %v1806 = vld [vmem:[#allocation8 + $0x18] sm:$0xf]
        %v1807 = vld [vmem:[#allocation8 + $0x1c] sm:$0xf]
        %v1808 = vld [vmem:[#allocation8 + $0x20] sm:$0xf]
        %v1809 = vld [vmem:[#allocation8 + $0x24] sm:$0xf]
        %v1810 = vld [vmem:[#allocation8 + $0x28] sm:$0xf]
        %v1811 = vld [vmem:[#allocation8 + $0x2c] sm:$0xf]
        %v1812 = vld [vmem:[#allocation8 + $0x30] sm:$0xf]
        %v1813 = vld [vmem:[#allocation8 + $0x34] sm:$0xf]
        %v1814 = vld [vmem:[#allocation8 + $0x38] sm:$0xf]
        %v1815 = vld [vmem:[#allocation8 + $0x3c] sm:$0xf]
        %v1816 = vld [vmem:[%s4] sm:$0x1]
        %v1817 = vperm.slane %v1816, 0
        %v1834 = vunpack.c.l.b16 %v1800
        %v1835 = vunpack.c.l.b16 %v1801
        %v1836 = vunpack.c.l.b16 %v1802
        %v1837 = vunpack.c.l.b16 %v1803
        %v1838 = vunpack.c.l.b16 %v1804
        %v1839 = vunpack.c.l.b16 %v1805
        %v1840 = vunpack.c.l.b16 %v1806
        %v1841 = vunpack.c.l.b16 %v1807
        %v1842 = vunpack.c.l.b16 %v1808
        %v1843 = vunpack.c.l.b16 %v1809
        %v1844 = vunpack.c.l.b16 %v1810
        %v1845 = vunpack.c.l.b16 %v1811
        %v1846 = vunpack.c.l.b16 %v1812
        %v1847 = vunpack.c.l.b16 %v1813
        %v1848 = vunpack.c.l.b16 %v1814
        %v1849 = vunpack.c.l.b16 %v1815
        %v1850 = vpack.c.b16 %v1835, %v1834
        %v1851 = vpack.c.b16 %v1837, %v1836
        %v1852 = vpack.c.b16 %v1839, %v1838
        %v1853 = vpack.c.b16 %v1841, %v1840
        %v1854 = vpack.c.b16 %v1843, %v1842
        %v1855 = vpack.c.b16 %v1845, %v1844
        %v1856 = vpack.c.b16 %v1847, %v1846
        %v1857 = vpack.c.b16 %v1849, %v1848
        %1866 = vmatpush.bf16.msra.mxu0 %v1857
        %1867 = vmatpush.bf16.msra.mxu0 %v1856
        %1868 = vmatpush.bf16.msra.mxu0 %v1855
        %1869 = vmatpush.bf16.msra.mxu0 %v1854
        %1870 = vmatpush.bf16.msra.mxu0 %v1853
        %1871 = vmatpush.bf16.msra.mxu0 %v1852
        %1872 = vmatpush.bf16.msra.mxu0 %v1851
        %1873 = vmatpush.bf16.msra.mxu0 %v1850
        %1874 = vmatmul.bf16.gmra.mxu0 %v1784
        %v1875 = vpop.f32.mrf.mxu0
        %v1876 = vadd.f32 %v1817, %v1875
        %v1877 = vpop.f32.mrf.mxu0
        %v1878 = vadd.f32 %v1817, %v1877
        %1879 = vmatmul.bf16.gmra.mxu0 %v1785
        %v1880 = vpop.f32.mrf.mxu0
        %v1881 = vadd.f32 %v1817, %v1880
        %v1882 = vpop.f32.mrf.mxu0
        %v1883 = vadd.f32 %v1817, %v1882
        %1884 = vmatmul.bf16.gmra.mxu0 %v1786
        %v1885 = vpop.f32.mrf.mxu0
        %v1886 = vadd.f32 %v1817, %v1885
        %v1887 = vpop.f32.mrf.mxu0
        %v1888 = vadd.f32 %v1817, %v1887
        %1889 = vmatmul.bf16.gmra.mxu0 %v1787
        %v1890 = vpop.f32.mrf.mxu0
        %v1891 = vadd.f32 %v1817, %v1890
        %v1892 = vpop.f32.mrf.mxu0
        %v1893 = vadd.f32 %v1817, %v1892
        %1894 = vmatmul.bf16.gmra.mxu0 %v1788
        %v1895 = vpop.f32.mrf.mxu0
        %v1896 = vadd.f32 %v1817, %v1895
        %v1897 = vpop.f32.mrf.mxu0
        %v1898 = vadd.f32 %v1817, %v1897
        %1899 = vmatmul.bf16.gmra.mxu0 %v1789
        %v1900 = vpop.f32.mrf.mxu0
        %v1901 = vadd.f32 %v1817, %v1900
        %v1902 = vpop.f32.mrf.mxu0
        %v1903 = vadd.f32 %v1817, %v1902
        %1904 = vmatmul.bf16.gmra.mxu0 %v1790
        %v1905 = vpop.f32.mrf.mxu0
        %v1906 = vadd.f32 %v1817, %v1905
        %v1907 = vpop.f32.mrf.mxu0
        %v1908 = vadd.f32 %v1817, %v1907
        %1909 = vmatmul.bf16.gmra.mxu0 %v1791
        %v1910 = vpop.f32.mrf.mxu0
        %v1911 = vadd.f32 %v1817, %v1910
        %v1912 = vpop.f32.mrf.mxu0
        %v1913 = vadd.f32 %v1817, %v1912
        %1914 = vmatmul.bf16.gmra.mxu0 %v1792
        %v1915 = vpop.f32.mrf.mxu0
        %v1916 = vadd.f32 %v1817, %v1915
        %v1917 = vpop.f32.mrf.mxu0
        %v1918 = vadd.f32 %v1817, %v1917
        %1919 = vmatmul.bf16.gmra.mxu0 %v1793
        %v1920 = vpop.f32.mrf.mxu0
        %v1921 = vadd.f32 %v1817, %v1920
        %v1922 = vpop.f32.mrf.mxu0
        %v1923 = vadd.f32 %v1817, %v1922
        %1924 = vmatmul.bf16.gmra.mxu0 %v1794
        %v1925 = vpop.f32.mrf.mxu0
        %v1926 = vadd.f32 %v1817, %v1925
        %v1927 = vpop.f32.mrf.mxu0
        %v1928 = vadd.f32 %v1817, %v1927
        %1929 = vmatmul.bf16.gmra.mxu0 %v1795
        %v1930 = vpop.f32.mrf.mxu0
        %v1931 = vadd.f32 %v1817, %v1930
        %v1932 = vpop.f32.mrf.mxu0
        %v1933 = vadd.f32 %v1817, %v1932
        %1934 = vmatmul.bf16.gmra.mxu0 %v1796
        %v1935 = vpop.f32.mrf.mxu0
        %v1936 = vadd.f32 %v1817, %v1935
        %v1937 = vpop.f32.mrf.mxu0
        %v1938 = vadd.f32 %v1817, %v1937
        %1939 = vmatmul.bf16.gmra.mxu0 %v1797
        %v1940 = vpop.f32.mrf.mxu0
        %v1941 = vadd.f32 %v1817, %v1940
        %v1942 = vpop.f32.mrf.mxu0
        %v1943 = vadd.f32 %v1817, %v1942
        %1944 = vmatmul.bf16.gmra.mxu0 %v1798
        %v1945 = vpop.f32.mrf.mxu0
        %v1946 = vadd.f32 %v1817, %v1945
        %v1947 = vpop.f32.mrf.mxu0
        %v1948 = vadd.f32 %v1817, %v1947
        %1949 = vmatmul.bf16.gmra.mxu0 %v1799
        %v1950 = vpop.f32.mrf.mxu0
        %v1951 = vadd.f32 %v1817, %v1950
        %v1952 = vpop.f32.mrf.mxu0
        %v1953 = vadd.f32 %v1817, %v1952
        %1954 = vdwg.mxu0
        %v1955 = vadd.f32 %v365, %v1876
        %v1956 = vadd.f32 %v366, %v1878
        %v1957 = vadd.f32 %v367, %v1881
        %v1958 = vadd.f32 %v368, %v1883
        %v1959 = vadd.f32 %v369, %v1886
        %v1960 = vadd.f32 %v370, %v1888
        %v1961 = vadd.f32 %v371, %v1891
        %v1962 = vadd.f32 %v372, %v1893
        %v1963 = vadd.f32 %v373, %v1896
        %v1964 = vadd.f32 %v374, %v1898
        %v1965 = vadd.f32 %v375, %v1901
        %v1966 = vadd.f32 %v376, %v1903
        %v1967 = vadd.f32 %v377, %v1906
        %v1968 = vadd.f32 %v378, %v1908
        %v1969 = vadd.f32 %v379, %v1911
        %v1970 = vadd.f32 %v380, %v1913
        %v1971 = vadd.f32 %v381, %v1916
        %v1972 = vadd.f32 %v382, %v1918
        %v1973 = vadd.f32 %v383, %v1921
        %v1974 = vadd.f32 %v384, %v1923
        %v1975 = vadd.f32 %v385, %v1926
        %v1976 = vadd.f32 %v386, %v1928
        %v1977 = vadd.f32 %v387, %v1931
        %v1978 = vadd.f32 %v388, %v1933
        %v1979 = vadd.f32 %v389, %v1936
        %v1980 = vadd.f32 %v390, %v1938
        %v1981 = vadd.f32 %v391, %v1941
        %v1982 = vadd.f32 %v392, %v1943
        %v1983 = vadd.f32 %v393, %v1946
        %v1984 = vadd.f32 %v394, %v1948
        %v1985 = vadd.f32 %v395, %v1951
        %v1986 = vadd.f32 %v396, %v1953
        %v1987 = vmax.f32 %v1955, 0.0
        %v1988 = vmax.f32 %v1956, 0.0
        %v1989 = vmax.f32 %v1957, 0.0
        %v1990 = vmax.f32 %v1958, 0.0
        %v1991 = vmax.f32 %v1959, 0.0
        %v1992 = vmax.f32 %v1960, 0.0
        %v1993 = vmax.f32 %v1961, 0.0
        %v1994 = vmax.f32 %v1962, 0.0
        %v1995 = vmax.f32 %v1963, 0.0
        %v1996 = vmax.f32 %v1964, 0.0
        %v1997 = vmax.f32 %v1965, 0.0
        %v1998 = vmax.f32 %v1966, 0.0
        %v1999 = vmax.f32 %v1967, 0.0
        %v2000 = vmax.f32 %v1968, 0.0
        %v2001 = vmax.f32 %v1969, 0.0
        %v2002 = vmax.f32 %v1970, 0.0
        %v2003 = vmax.f32 %v1971, 0.0
        %v2004 = vmax.f32 %v1972, 0.0
        %v2005 = vmax.f32 %v1973, 0.0
        %v2006 = vmax.f32 %v1974, 0.0
        %v2007 = vmax.f32 %v1975, 0.0
        %v2008 = vmax.f32 %v1976, 0.0
        %v2009 = vmax.f32 %v1977, 0.0
        %v2010 = vmax.f32 %v1978, 0.0
        %v2011 = vmax.f32 %v1979, 0.0
        %v2012 = vmax.f32 %v1980, 0.0
        %v2013 = vmax.f32 %v1981, 0.0
        %v2014 = vmax.f32 %v1982, 0.0
        %v2015 = vmax.f32 %v1983, 0.0
        %v2016 = vmax.f32 %v1984, 0.0
        %v2017 = vmax.f32 %v1985, 0.0
        %v2018 = vmax.f32 %v1986, 0.0
        %vm2019 = vcmp.ne.f32.partialorder %v1955, %v1955
        %vm2020 = vcmp.ne.f32.partialorder %v1956, %v1956
        %vm2021 = vcmp.ne.f32.partialorder %v1957, %v1957
        %vm2022 = vcmp.ne.f32.partialorder %v1958, %v1958
        %vm2023 = vcmp.ne.f32.partialorder %v1959, %v1959
        %vm2024 = vcmp.ne.f32.partialorder %v1960, %v1960
        %vm2025 = vcmp.ne.f32.partialorder %v1961, %v1961
        %vm2026 = vcmp.ne.f32.partialorder %v1962, %v1962
        %vm2027 = vcmp.ne.f32.partialorder %v1963, %v1963
        %vm2028 = vcmp.ne.f32.partialorder %v1964, %v1964
        %vm2029 = vcmp.ne.f32.partialorder %v1965, %v1965
        %vm2030 = vcmp.ne.f32.partialorder %v1966, %v1966
        %vm2031 = vcmp.ne.f32.partialorder %v1967, %v1967
        %vm2032 = vcmp.ne.f32.partialorder %v1968, %v1968
        %vm2033 = vcmp.ne.f32.partialorder %v1969, %v1969
        %vm2034 = vcmp.ne.f32.partialorder %v1970, %v1970
        %vm2035 = vcmp.ne.f32.partialorder %v1971, %v1971
        %vm2036 = vcmp.ne.f32.partialorder %v1972, %v1972
        %vm2037 = vcmp.ne.f32.partialorder %v1973, %v1973
        %vm2038 = vcmp.ne.f32.partialorder %v1974, %v1974
        %vm2039 = vcmp.ne.f32.partialorder %v1975, %v1975
        %vm2040 = vcmp.ne.f32.partialorder %v1976, %v1976
        %vm2041 = vcmp.ne.f32.partialorder %v1977, %v1977
        %vm2042 = vcmp.ne.f32.partialorder %v1978, %v1978
        %vm2043 = vcmp.ne.f32.partialorder %v1979, %v1979
        %vm2044 = vcmp.ne.f32.partialorder %v1980, %v1980
        %vm2045 = vcmp.ne.f32.partialorder %v1981, %v1981
        %vm2046 = vcmp.ne.f32.partialorder %v1982, %v1982
        %vm2047 = vcmp.ne.f32.partialorder %v1983, %v1983
        %vm2048 = vcmp.ne.f32.partialorder %v1984, %v1984
        %vm2049 = vcmp.ne.f32.partialorder %v1985, %v1985
        %vm2050 = vcmp.ne.f32.partialorder %v1986, %v1986
        %v2051 = vadd.f32 %v1955, 0.0
        %v2052 = vadd.f32 %v1956, 0.0
        %v2053 = vadd.f32 %v1957, 0.0
        %v2054 = vadd.f32 %v1958, 0.0
        %v2055 = vadd.f32 %v1959, 0.0
        %v2056 = vadd.f32 %v1960, 0.0
        %v2057 = vadd.f32 %v1961, 0.0
        %v2058 = vadd.f32 %v1962, 0.0
        %v2059 = vadd.f32 %v1963, 0.0
        %v2060 = vadd.f32 %v1964, 0.0
        %v2061 = vadd.f32 %v1965, 0.0
        %v2062 = vadd.f32 %v1966, 0.0
        %v2063 = vadd.f32 %v1967, 0.0
        %v2064 = vadd.f32 %v1968, 0.0
        %v2065 = vadd.f32 %v1969, 0.0
        %v2066 = vadd.f32 %v1970, 0.0
        %v2067 = vadd.f32 %v1971, 0.0
        %v2068 = vadd.f32 %v1972, 0.0
        %v2069 = vadd.f32 %v1973, 0.0
        %v2070 = vadd.f32 %v1974, 0.0
        %v2071 = vadd.f32 %v1975, 0.0
        %v2072 = vadd.f32 %v1976, 0.0
        %v2073 = vadd.f32 %v1977, 0.0
        %v2074 = vadd.f32 %v1978, 0.0
        %v2075 = vadd.f32 %v1979, 0.0
        %v2076 = vadd.f32 %v1980, 0.0
        %v2077 = vadd.f32 %v1981, 0.0
        %v2078 = vadd.f32 %v1982, 0.0
        %v2079 = vadd.f32 %v1983, 0.0
        %v2080 = vadd.f32 %v1984, 0.0
        %v2081 = vadd.f32 %v1985, 0.0
        %v2082 = vadd.f32 %v1986, 0.0
        %v2083 = vand.u32 2147483647, %v1955
        %v2084 = vand.u32 2147483647, %v1956
        %v2085 = vand.u32 2147483647, %v1957
        %v2086 = vand.u32 2147483647, %v1958
        %v2087 = vand.u32 2147483647, %v1959
        %v2088 = vand.u32 2147483647, %v1960
        %v2089 = vand.u32 2147483647, %v1961
        %v2090 = vand.u32 2147483647, %v1962
        %v2091 = vand.u32 2147483647, %v1963
        %v2092 = vand.u32 2147483647, %v1964
        %v2093 = vand.u32 2147483647, %v1965
        %v2094 = vand.u32 2147483647, %v1966
        %v2095 = vand.u32 2147483647, %v1967
        %v2096 = vand.u32 2147483647, %v1968
        %v2097 = vand.u32 2147483647, %v1969
        %v2098 = vand.u32 2147483647, %v1970
        %v2099 = vand.u32 2147483647, %v1971
        %v2100 = vand.u32 2147483647, %v1972
        %v2101 = vand.u32 2147483647, %v1973
        %v2102 = vand.u32 2147483647, %v1974
        %v2103 = vand.u32 2147483647, %v1975
        %v2104 = vand.u32 2147483647, %v1976
        %v2105 = vand.u32 2147483647, %v1977
        %v2106 = vand.u32 2147483647, %v1978
        %v2107 = vand.u32 2147483647, %v1979
        %v2108 = vand.u32 2147483647, %v1980
        %v2109 = vand.u32 2147483647, %v1981
        %v2110 = vand.u32 2147483647, %v1982
        %v2111 = vand.u32 2147483647, %v1983
        %v2112 = vand.u32 2147483647, %v1984
        %v2113 = vand.u32 2147483647, %v1985
        %v2114 = vand.u32 2147483647, %v1986
        %v2115 = vsub.f32 0.0, %v2083
        %v2116 = vsub.f32 0.0, %v2084
        %v2117 = vsub.f32 0.0, %v2085
        %v2118 = vsub.f32 0.0, %v2086
        %v2119 = vsub.f32 0.0, %v2087
        %v2120 = vsub.f32 0.0, %v2088
        %v2121 = vsub.f32 0.0, %v2089
        %v2122 = vsub.f32 0.0, %v2090
        %v2123 = vsub.f32 0.0, %v2091
        %v2124 = vsub.f32 0.0, %v2092
        %v2125 = vsub.f32 0.0, %v2093
        %v2126 = vsub.f32 0.0, %v2094
        %v2127 = vsub.f32 0.0, %v2095
        %v2128 = vsub.f32 0.0, %v2096
        %v2129 = vsub.f32 0.0, %v2097
        %v2130 = vsub.f32 0.0, %v2098
        %v2131 = vsub.f32 0.0, %v2099
        %v2132 = vsub.f32 0.0, %v2100
        %v2133 = vsub.f32 0.0, %v2101
        %v2134 = vsub.f32 0.0, %v2102
        %v2135 = vsub.f32 0.0, %v2103
        %v2136 = vsub.f32 0.0, %v2104
        %v2137 = vsub.f32 0.0, %v2105
        %v2138 = vsub.f32 0.0, %v2106
        %v2139 = vsub.f32 0.0, %v2107
        %v2140 = vsub.f32 0.0, %v2108
        %v2141 = vsub.f32 0.0, %v2109
        %v2142 = vsub.f32 0.0, %v2110
        %v2143 = vsub.f32 0.0, %v2111
        %v2144 = vsub.f32 0.0, %v2112
        %v2145 = vsub.f32 0.0, %v2113
        %v2146 = vsub.f32 0.0, %v2114
        %v2147 = vmul.f32 %v2115, 1.442695
        %v2148 = vpow.pop %v2147
        %v2149 = vmul.f32 %v2116, 1.442695
        %v2150 = vpow.pop %v2149
        %v2151 = vmul.f32 %v2117, 1.442695
        %v2152 = vpow.pop %v2151
        %v2153 = vmul.f32 %v2118, 1.442695
        %v2154 = vpow.pop %v2153
        %v2155 = vmul.f32 %v2119, 1.442695
        %v2156 = vpow.pop %v2155
        %v2157 = vmul.f32 %v2120, 1.442695
        %v2158 = vpow.pop %v2157
        %v2159 = vmul.f32 %v2121, 1.442695
        %v2160 = vpow.pop %v2159
        %v2161 = vmul.f32 %v2122, 1.442695
        %v2162 = vpow.pop %v2161
        %v2163 = vmul.f32 %v2123, 1.442695
        %v2164 = vpow.pop %v2163
        %v2165 = vmul.f32 %v2124, 1.442695
        %v2166 = vpow.pop %v2165
        %v2167 = vmul.f32 %v2125, 1.442695
        %v2168 = vpow.pop %v2167
        %v2169 = vmul.f32 %v2126, 1.442695
        %v2170 = vpow.pop %v2169
        %v2171 = vmul.f32 %v2127, 1.442695
        %v2172 = vpow.pop %v2171
        %v2173 = vmul.f32 %v2128, 1.442695
        %v2174 = vpow.pop %v2173
        %v2175 = vmul.f32 %v2129, 1.442695
        %v2176 = vpow.pop %v2175
        %v2177 = vmul.f32 %v2130, 1.442695
        %v2178 = vpow.pop %v2177
        %v2179 = vmul.f32 %v2131, 1.442695
        %v2180 = vpow.pop %v2179
        %v2181 = vmul.f32 %v2132, 1.442695
        %v2182 = vpow.pop %v2181
        %v2183 = vmul.f32 %v2133, 1.442695
        %v2184 = vpow.pop %v2183
        %v2185 = vmul.f32 %v2134, 1.442695
        %v2186 = vpow.pop %v2185
        %v2187 = vmul.f32 %v2135, 1.442695
        %v2188 = vpow.pop %v2187
        %v2189 = vmul.f32 %v2136, 1.442695
        %v2190 = vpow.pop %v2189
        %v2191 = vmul.f32 %v2137, 1.442695
        %v2192 = vpow.pop %v2191
        %v2193 = vmul.f32 %v2138, 1.442695
        %v2194 = vpow.pop %v2193
        %v2195 = vmul.f32 %v2139, 1.442695
        %v2196 = vpow.pop %v2195
        %v2197 = vmul.f32 %v2140, 1.442695
        %v2198 = vpow.pop %v2197
        %v2199 = vmul.f32 %v2141, 1.442695
        %v2200 = vpow.pop %v2199
        %v2201 = vmul.f32 %v2142, 1.442695
        %v2202 = vpow.pop %v2201
        %v2203 = vmul.f32 %v2143, 1.442695
        %v2204 = vpow.pop %v2203
        %v2205 = vmul.f32 %v2144, 1.442695
        %v2206 = vpow.pop %v2205
        %v2207 = vmul.f32 %v2145, 1.442695
        %v2208 = vpow.pop %v2207
        %v2209 = vmul.f32 %v2146, 1.442695
        %v2210 = vpow.pop %v2209
        %v2211 = vadd.f32 %v2148, 1.0
        %v2212 = vlog2.pop %v2211
        %v2213 = vmul.f32 %v2212, 0.6931472
        %v2214 = vmul.f32 -0.5, %v2148
        %v2215 = vadd.f32 %v2214, 1.0
        %v2216 = vmul.f32 %v2215, %v2148
        %v2217 = vand.u32 2147483647, %v2148
        %vm2218 = vcmp.lt.f32.partialorder %v2217, 0.0004427343
        %v2219 = vsel %vm2218, %v2216, %v2213
        %v2220 = vadd.f32 %v2150, 1.0
        %v2221 = vlog2.pop %v2220
        %v2222 = vmul.f32 %v2221, 0.6931472
        %v2223 = vmul.f32 -0.5, %v2150
        %v2224 = vadd.f32 %v2223, 1.0
        %v2225 = vmul.f32 %v2224, %v2150
        %v2226 = vand.u32 2147483647, %v2150
        %vm2227 = vcmp.lt.f32.partialorder %v2226, 0.0004427343
        %v2228 = vsel %vm2227, %v2225, %v2222
        %v2229 = vadd.f32 %v2152, 1.0
        %v2230 = vlog2.pop %v2229
        %v2231 = vmul.f32 %v2230, 0.6931472
        %v2232 = vmul.f32 -0.5, %v2152
        %v2233 = vadd.f32 %v2232, 1.0
        %v2234 = vmul.f32 %v2233, %v2152
        %v2235 = vand.u32 2147483647, %v2152
        %vm2236 = vcmp.lt.f32.partialorder %v2235, 0.0004427343
        %v2237 = vsel %vm2236, %v2234, %v2231
        %v2238 = vadd.f32 %v2154, 1.0
        %v2239 = vlog2.pop %v2238
        %v2240 = vmul.f32 %v2239, 0.6931472
        %v2241 = vmul.f32 -0.5, %v2154
        %v2242 = vadd.f32 %v2241, 1.0
        %v2243 = vmul.f32 %v2242, %v2154
        %v2244 = vand.u32 2147483647, %v2154
        %vm2245 = vcmp.lt.f32.partialorder %v2244, 0.0004427343
        %v2246 = vsel %vm2245, %v2243, %v2240
        %v2247 = vadd.f32 %v2156, 1.0
        %v2248 = vlog2.pop %v2247
        %v2249 = vmul.f32 %v2248, 0.6931472
        %v2250 = vmul.f32 -0.5, %v2156
        %v2251 = vadd.f32 %v2250, 1.0
        %v2252 = vmul.f32 %v2251, %v2156
        %v2253 = vand.u32 2147483647, %v2156
        %vm2254 = vcmp.lt.f32.partialorder %v2253, 0.0004427343
        %v2255 = vsel %vm2254, %v2252, %v2249
        %v2256 = vadd.f32 %v2158, 1.0
        %v2257 = vlog2.pop %v2256
        %v2258 = vmul.f32 %v2257, 0.6931472
        %v2259 = vmul.f32 -0.5, %v2158
        %v2260 = vadd.f32 %v2259, 1.0
        %v2261 = vmul.f32 %v2260, %v2158
        %v2262 = vand.u32 2147483647, %v2158
        %vm2263 = vcmp.lt.f32.partialorder %v2262, 0.0004427343
        %v2264 = vsel %vm2263, %v2261, %v2258
        %v2265 = vadd.f32 %v2160, 1.0
        %v2266 = vlog2.pop %v2265
        %v2267 = vmul.f32 %v2266, 0.6931472
        %v2268 = vmul.f32 -0.5, %v2160
        %v2269 = vadd.f32 %v2268, 1.0
        %v2270 = vmul.f32 %v2269, %v2160
        %v2271 = vand.u32 2147483647, %v2160
        %vm2272 = vcmp.lt.f32.partialorder %v2271, 0.0004427343
        %v2273 = vsel %vm2272, %v2270, %v2267
        %v2274 = vadd.f32 %v2162, 1.0
        %v2275 = vlog2.pop %v2274
        %v2276 = vmul.f32 %v2275, 0.6931472
        %v2277 = vmul.f32 -0.5, %v2162
        %v2278 = vadd.f32 %v2277, 1.0
        %v2279 = vmul.f32 %v2278, %v2162
        %v2280 = vand.u32 2147483647, %v2162
        %vm2281 = vcmp.lt.f32.partialorder %v2280, 0.0004427343
        %v2282 = vsel %vm2281, %v2279, %v2276
        %v2283 = vadd.f32 %v2164, 1.0
        %v2284 = vlog2.pop %v2283
        %v2285 = vmul.f32 %v2284, 0.6931472
        %v2286 = vmul.f32 -0.5, %v2164
        %v2287 = vadd.f32 %v2286, 1.0
        %v2288 = vmul.f32 %v2287, %v2164
        %v2289 = vand.u32 2147483647, %v2164
        %vm2290 = vcmp.lt.f32.partialorder %v2289, 0.0004427343
        %v2291 = vsel %vm2290, %v2288, %v2285
        %v2292 = vadd.f32 %v2166, 1.0
        %v2293 = vlog2.pop %v2292
        %v2294 = vmul.f32 %v2293, 0.6931472
        %v2295 = vmul.f32 -0.5, %v2166
        %v2296 = vadd.f32 %v2295, 1.0
        %v2297 = vmul.f32 %v2296, %v2166
        %v2298 = vand.u32 2147483647, %v2166
        %vm2299 = vcmp.lt.f32.partialorder %v2298, 0.0004427343
        %v2300 = vsel %vm2299, %v2297, %v2294
        %v2301 = vadd.f32 %v2168, 1.0
        %v2302 = vlog2.pop %v2301
        %v2303 = vmul.f32 %v2302, 0.6931472
        %v2304 = vmul.f32 -0.5, %v2168
        %v2305 = vadd.f32 %v2304, 1.0
        %v2306 = vmul.f32 %v2305, %v2168
        %v2307 = vand.u32 2147483647, %v2168
        %vm2308 = vcmp.lt.f32.partialorder %v2307, 0.0004427343
        %v2309 = vsel %vm2308, %v2306, %v2303
        %v2310 = vadd.f32 %v2170, 1.0
        %v2311 = vlog2.pop %v2310
        %v2312 = vmul.f32 %v2311, 0.6931472
        %v2313 = vmul.f32 -0.5, %v2170
        %v2314 = vadd.f32 %v2313, 1.0
        %v2315 = vmul.f32 %v2314, %v2170
        %v2316 = vand.u32 2147483647, %v2170
        %vm2317 = vcmp.lt.f32.partialorder %v2316, 0.0004427343
        %v2318 = vsel %vm2317, %v2315, %v2312
        %v2319 = vadd.f32 %v2172, 1.0
        %v2320 = vlog2.pop %v2319
        %v2321 = vmul.f32 %v2320, 0.6931472
        %v2322 = vmul.f32 -0.5, %v2172
        %v2323 = vadd.f32 %v2322, 1.0
        %v2324 = vmul.f32 %v2323, %v2172
        %v2325 = vand.u32 2147483647, %v2172
        %vm2326 = vcmp.lt.f32.partialorder %v2325, 0.0004427343
        %v2327 = vsel %vm2326, %v2324, %v2321
        %v2328 = vadd.f32 %v2174, 1.0
        %v2329 = vlog2.pop %v2328
        %v2330 = vmul.f32 %v2329, 0.6931472
        %v2331 = vmul.f32 -0.5, %v2174
        %v2332 = vadd.f32 %v2331, 1.0
        %v2333 = vmul.f32 %v2332, %v2174
        %v2334 = vand.u32 2147483647, %v2174
        %vm2335 = vcmp.lt.f32.partialorder %v2334, 0.0004427343
        %v2336 = vsel %vm2335, %v2333, %v2330
        %v2337 = vadd.f32 %v2176, 1.0
        %v2338 = vlog2.pop %v2337
        %v2339 = vmul.f32 %v2338, 0.6931472
        %v2340 = vmul.f32 -0.5, %v2176
        %v2341 = vadd.f32 %v2340, 1.0
        %v2342 = vmul.f32 %v2341, %v2176
        %v2343 = vand.u32 2147483647, %v2176
        %vm2344 = vcmp.lt.f32.partialorder %v2343, 0.0004427343
        %v2345 = vsel %vm2344, %v2342, %v2339
        %v2346 = vadd.f32 %v2178, 1.0
        %v2347 = vlog2.pop %v2346
        %v2348 = vmul.f32 %v2347, 0.6931472
        %v2349 = vmul.f32 -0.5, %v2178
        %v2350 = vadd.f32 %v2349, 1.0
        %v2351 = vmul.f32 %v2350, %v2178
        %v2352 = vand.u32 2147483647, %v2178
        %vm2353 = vcmp.lt.f32.partialorder %v2352, 0.0004427343
        %v2354 = vsel %vm2353, %v2351, %v2348
        %v2355 = vadd.f32 %v2180, 1.0
        %v2356 = vlog2.pop %v2355
        %v2357 = vmul.f32 %v2356, 0.6931472
        %v2358 = vmul.f32 -0.5, %v2180
        %v2359 = vadd.f32 %v2358, 1.0
        %v2360 = vmul.f32 %v2359, %v2180
        %v2361 = vand.u32 2147483647, %v2180
        %vm2362 = vcmp.lt.f32.partialorder %v2361, 0.0004427343
        %v2363 = vsel %vm2362, %v2360, %v2357
        %v2364 = vadd.f32 %v2182, 1.0
        %v2365 = vlog2.pop %v2364
        %v2366 = vmul.f32 %v2365, 0.6931472
        %v2367 = vmul.f32 -0.5, %v2182
        %v2368 = vadd.f32 %v2367, 1.0
        %v2369 = vmul.f32 %v2368, %v2182
        %v2370 = vand.u32 2147483647, %v2182
        %vm2371 = vcmp.lt.f32.partialorder %v2370, 0.0004427343
        %v2372 = vsel %vm2371, %v2369, %v2366
        %v2373 = vadd.f32 %v2184, 1.0
        %v2374 = vlog2.pop %v2373
        %v2375 = vmul.f32 %v2374, 0.6931472
        %v2376 = vmul.f32 -0.5, %v2184
        %v2377 = vadd.f32 %v2376, 1.0
        %v2378 = vmul.f32 %v2377, %v2184
        %v2379 = vand.u32 2147483647, %v2184
        %vm2380 = vcmp.lt.f32.partialorder %v2379, 0.0004427343
        %v2381 = vsel %vm2380, %v2378, %v2375
        %v2382 = vadd.f32 %v2186, 1.0
        %v2383 = vlog2.pop %v2382
        %v2384 = vmul.f32 %v2383, 0.6931472
        %v2385 = vmul.f32 -0.5, %v2186
        %v2386 = vadd.f32 %v2385, 1.0
        %v2387 = vmul.f32 %v2386, %v2186
        %v2388 = vand.u32 2147483647, %v2186
        %vm2389 = vcmp.lt.f32.partialorder %v2388, 0.0004427343
        %v2390 = vsel %vm2389, %v2387, %v2384
        %v2391 = vadd.f32 %v2188, 1.0
        %v2392 = vlog2.pop %v2391
        %v2393 = vmul.f32 %v2392, 0.6931472
        %v2394 = vmul.f32 -0.5, %v2188
        %v2395 = vadd.f32 %v2394, 1.0
        %v2396 = vmul.f32 %v2395, %v2188
        %v2397 = vand.u32 2147483647, %v2188
        %vm2398 = vcmp.lt.f32.partialorder %v2397, 0.0004427343
        %v2399 = vsel %vm2398, %v2396, %v2393
        %v2400 = vadd.f32 %v2190, 1.0
        %v2401 = vlog2.pop %v2400
        %v2402 = vmul.f32 %v2401, 0.6931472
        %v2403 = vmul.f32 -0.5, %v2190
        %v2404 = vadd.f32 %v2403, 1.0
        %v2405 = vmul.f32 %v2404, %v2190
        %v2406 = vand.u32 2147483647, %v2190
        %vm2407 = vcmp.lt.f32.partialorder %v2406, 0.0004427343
        %v2408 = vsel %vm2407, %v2405, %v2402
        %v2409 = vadd.f32 %v2192, 1.0
        %v2410 = vlog2.pop %v2409
        %v2411 = vmul.f32 %v2410, 0.6931472
        %v2412 = vmul.f32 -0.5, %v2192
        %v2413 = vadd.f32 %v2412, 1.0
        %v2414 = vmul.f32 %v2413, %v2192
        %v2415 = vand.u32 2147483647, %v2192
        %vm2416 = vcmp.lt.f32.partialorder %v2415, 0.0004427343
        %v2417 = vsel %vm2416, %v2414, %v2411
        %v2418 = vadd.f32 %v2194, 1.0
        %v2419 = vlog2.pop %v2418
        %v2420 = vmul.f32 %v2419, 0.6931472
        %v2421 = vmul.f32 -0.5, %v2194
        %v2422 = vadd.f32 %v2421, 1.0
        %v2423 = vmul.f32 %v2422, %v2194
        %v2424 = vand.u32 2147483647, %v2194
        %vm2425 = vcmp.lt.f32.partialorder %v2424, 0.0004427343
        %v2426 = vsel %vm2425, %v2423, %v2420
        %v2427 = vadd.f32 %v2196, 1.0
        %v2428 = vlog2.pop %v2427
        %v2429 = vmul.f32 %v2428, 0.6931472
        %v2430 = vmul.f32 -0.5, %v2196
        %v2431 = vadd.f32 %v2430, 1.0
        %v2432 = vmul.f32 %v2431, %v2196
        %v2433 = vand.u32 2147483647, %v2196
        %vm2434 = vcmp.lt.f32.partialorder %v2433, 0.0004427343
        %v2435 = vsel %vm2434, %v2432, %v2429
        %v2436 = vadd.f32 %v2198, 1.0
        %v2437 = vlog2.pop %v2436
        %v2438 = vmul.f32 %v2437, 0.6931472
        %v2439 = vmul.f32 -0.5, %v2198
        %v2440 = vadd.f32 %v2439, 1.0
        %v2441 = vmul.f32 %v2440, %v2198
        %v2442 = vand.u32 2147483647, %v2198
        %vm2443 = vcmp.lt.f32.partialorder %v2442, 0.0004427343
        %v2444 = vsel %vm2443, %v2441, %v2438
        %v2445 = vadd.f32 %v2200, 1.0
        %v2446 = vlog2.pop %v2445
        %v2447 = vmul.f32 %v2446, 0.6931472
        %v2448 = vmul.f32 -0.5, %v2200
        %v2449 = vadd.f32 %v2448, 1.0
        %v2450 = vmul.f32 %v2449, %v2200
        %v2451 = vand.u32 2147483647, %v2200
        %vm2452 = vcmp.lt.f32.partialorder %v2451, 0.0004427343
        %v2453 = vsel %vm2452, %v2450, %v2447
        %v2454 = vadd.f32 %v2202, 1.0
        %v2455 = vlog2.pop %v2454
        %v2456 = vmul.f32 %v2455, 0.6931472
        %v2457 = vmul.f32 -0.5, %v2202
        %v2458 = vadd.f32 %v2457, 1.0
        %v2459 = vmul.f32 %v2458, %v2202
        %v2460 = vand.u32 2147483647, %v2202
        %vm2461 = vcmp.lt.f32.partialorder %v2460, 0.0004427343
        %v2462 = vsel %vm2461, %v2459, %v2456
        %v2463 = vadd.f32 %v2204, 1.0
        %v2464 = vlog2.pop %v2463
        %v2465 = vmul.f32 %v2464, 0.6931472
        %v2466 = vmul.f32 -0.5, %v2204
        %v2467 = vadd.f32 %v2466, 1.0
        %v2468 = vmul.f32 %v2467, %v2204
        %v2469 = vand.u32 2147483647, %v2204
        %vm2470 = vcmp.lt.f32.partialorder %v2469, 0.0004427343
        %v2471 = vsel %vm2470, %v2468, %v2465
        %v2472 = vadd.f32 %v2206, 1.0
        %v2473 = vlog2.pop %v2472
        %v2474 = vmul.f32 %v2473, 0.6931472
        %v2475 = vmul.f32 -0.5, %v2206
        %v2476 = vadd.f32 %v2475, 1.0
        %v2477 = vmul.f32 %v2476, %v2206
        %v2478 = vand.u32 2147483647, %v2206
        %vm2479 = vcmp.lt.f32.partialorder %v2478, 0.0004427343
        %v2480 = vsel %vm2479, %v2477, %v2474
        %v2481 = vadd.f32 %v2208, 1.0
        %v2482 = vlog2.pop %v2481
        %v2483 = vmul.f32 %v2482, 0.6931472
        %v2484 = vmul.f32 -0.5, %v2208
        %v2485 = vadd.f32 %v2484, 1.0
        %v2486 = vmul.f32 %v2485, %v2208
        %v2487 = vand.u32 2147483647, %v2208
        %vm2488 = vcmp.lt.f32.partialorder %v2487, 0.0004427343
        %v2489 = vsel %vm2488, %v2486, %v2483
        %v2490 = vadd.f32 %v2210, 1.0
        %v2491 = vlog2.pop %v2490
        %v2492 = vmul.f32 %v2491, 0.6931472
        %v2493 = vmul.f32 -0.5, %v2210
        %v2494 = vadd.f32 %v2493, 1.0
        %v2495 = vmul.f32 %v2494, %v2210
        %v2496 = vand.u32 2147483647, %v2210
        %vm2497 = vcmp.lt.f32.partialorder %v2496, 0.0004427343
        %v2498 = vsel %vm2497, %v2495, %v2492
        %v2499 = vadd.f32 %v1987, %v2219
        %v2500 = vadd.f32 %v1988, %v2228
        %v2501 = vadd.f32 %v1989, %v2237
        %v2502 = vadd.f32 %v1990, %v2246
        %v2503 = vadd.f32 %v1991, %v2255
        %v2504 = vadd.f32 %v1992, %v2264
        %v2505 = vadd.f32 %v1993, %v2273
        %v2506 = vadd.f32 %v1994, %v2282
        %v2507 = vadd.f32 %v1995, %v2291
        %v2508 = vadd.f32 %v1996, %v2300
        %v2509 = vadd.f32 %v1997, %v2309
        %v2510 = vadd.f32 %v1998, %v2318
        %v2511 = vadd.f32 %v1999, %v2327
        %v2512 = vadd.f32 %v2000, %v2336
        %v2513 = vadd.f32 %v2001, %v2345
        %v2514 = vadd.f32 %v2002, %v2354
        %v2515 = vadd.f32 %v2003, %v2363
        %v2516 = vadd.f32 %v2004, %v2372
        %v2517 = vadd.f32 %v2005, %v2381
        %v2518 = vadd.f32 %v2006, %v2390
        %v2519 = vadd.f32 %v2007, %v2399
        %v2520 = vadd.f32 %v2008, %v2408
        %v2521 = vadd.f32 %v2009, %v2417
        %v2522 = vadd.f32 %v2010, %v2426
        %v2523 = vadd.f32 %v2011, %v2435
        %v2524 = vadd.f32 %v2012, %v2444
        %v2525 = vadd.f32 %v2013, %v2453
        %v2526 = vadd.f32 %v2014, %v2462
        %v2527 = vadd.f32 %v2015, %v2471
        %v2528 = vadd.f32 %v2016, %v2480
        %v2529 = vadd.f32 %v2017, %v2489
        %v2530 = vadd.f32 %v2018, %v2498
        %v2531 = vsel %vm2019, %v2051, %v2499
        %v2532 = vsel %vm2020, %v2052, %v2500
        %v2533 = vsel %vm2021, %v2053, %v2501
        %v2534 = vsel %vm2022, %v2054, %v2502
        %v2535 = vsel %vm2023, %v2055, %v2503
        %v2536 = vsel %vm2024, %v2056, %v2504
        %v2537 = vsel %vm2025, %v2057, %v2505
        %v2538 = vsel %vm2026, %v2058, %v2506
        %v2539 = vsel %vm2027, %v2059, %v2507
        %v2540 = vsel %vm2028, %v2060, %v2508
        %v2541 = vsel %vm2029, %v2061, %v2509
        %v2542 = vsel %vm2030, %v2062, %v2510
        %v2543 = vsel %vm2031, %v2063, %v2511
        %v2544 = vsel %vm2032, %v2064, %v2512
        %v2545 = vsel %vm2033, %v2065, %v2513
        %v2546 = vsel %vm2034, %v2066, %v2514
        %v2547 = vsel %vm2035, %v2067, %v2515
        %v2548 = vsel %vm2036, %v2068, %v2516
        %v2549 = vsel %vm2037, %v2069, %v2517
        %v2550 = vsel %vm2038, %v2070, %v2518
        %v2551 = vsel %vm2039, %v2071, %v2519
        %v2552 = vsel %vm2040, %v2072, %v2520
        %v2553 = vsel %vm2041, %v2073, %v2521
        %v2554 = vsel %vm2042, %v2074, %v2522
        %v2555 = vsel %vm2043, %v2075, %v2523
        %v2556 = vsel %vm2044, %v2076, %v2524
        %v2557 = vsel %vm2045, %v2077, %v2525
        %v2558 = vsel %vm2046, %v2078, %v2526
        %v2559 = vsel %vm2047, %v2079, %v2527
        %v2560 = vsel %vm2048, %v2080, %v2528
        %v2561 = vsel %vm2049, %v2081, %v2529
        %v2562 = vsel %vm2050, %v2082, %v2530
        %v2563 = vsub.f32 %v2531, 0.6931472
        %v2564 = vsub.f32 %v2532, 0.6931472
        %v2565 = vsub.f32 %v2533, 0.6931472
        %v2566 = vsub.f32 %v2534, 0.6931472
        %v2567 = vsub.f32 %v2535, 0.6931472
        %v2568 = vsub.f32 %v2536, 0.6931472
        %v2569 = vsub.f32 %v2537, 0.6931472
        %v2570 = vsub.f32 %v2538, 0.6931472
        %v2571 = vsub.f32 %v2539, 0.6931472
        %v2572 = vsub.f32 %v2540, 0.6931472
        %v2573 = vsub.f32 %v2541, 0.6931472
        %v2574 = vsub.f32 %v2542, 0.6931472
        %v2575 = vsub.f32 %v2543, 0.6931472
        %v2576 = vsub.f32 %v2544, 0.6931472
        %v2577 = vsub.f32 %v2545, 0.6931472
        %v2578 = vsub.f32 %v2546, 0.6931472
        %v2579 = vsub.f32 %v2547, 0.6931472
        %v2580 = vsub.f32 %v2548, 0.6931472
        %v2581 = vsub.f32 %v2549, 0.6931472
        %v2582 = vsub.f32 %v2550, 0.6931472
        %v2583 = vsub.f32 %v2551, 0.6931472
        %v2584 = vsub.f32 %v2552, 0.6931472
        %v2585 = vsub.f32 %v2553, 0.6931472
        %v2586 = vsub.f32 %v2554, 0.6931472
        %v2587 = vsub.f32 %v2555, 0.6931472
        %v2588 = vsub.f32 %v2556, 0.6931472
        %v2589 = vsub.f32 %v2557, 0.6931472
        %v2590 = vsub.f32 %v2558, 0.6931472
        %v2591 = vsub.f32 %v2559, 0.6931472
        %v2592 = vsub.f32 %v2560, 0.6931472
        %v2593 = vsub.f32 %v2561, 0.6931472
        %v2594 = vsub.f32 %v2562, 0.6931472
        %v2595 = vpack.c.bf16 %v2564, %v2563
        %v2596 = vpack.c.bf16 %v2566, %v2565
        %v2597 = vpack.c.bf16 %v2568, %v2567
        %v2598 = vpack.c.bf16 %v2570, %v2569
        %v2599 = vpack.c.bf16 %v2572, %v2571
        %v2600 = vpack.c.bf16 %v2574, %v2573
        %v2601 = vpack.c.bf16 %v2576, %v2575
        %v2602 = vpack.c.bf16 %v2578, %v2577
        %v2603 = vpack.c.bf16 %v2580, %v2579
        %v2604 = vpack.c.bf16 %v2582, %v2581
        %v2605 = vpack.c.bf16 %v2584, %v2583
        %v2606 = vpack.c.bf16 %v2586, %v2585
        %v2607 = vpack.c.bf16 %v2588, %v2587
        %v2608 = vpack.c.bf16 %v2590, %v2589
        %v2609 = vpack.c.bf16 %v2592, %v2591
        %v2610 = vpack.c.bf16 %v2594, %v2593
        %s2611 = scalar_lea.vmem [#allocation5], 64
        %v2612 = vld [vmem:[%s2611] sm:$0xf]
        %v2613 = vld [vmem:[%s2611 + $0x4] sm:$0xf]
        %v2614 = vld [vmem:[%s2611 + $0x8] sm:$0xf]
        %v2615 = vld [vmem:[%s2611 + $0xc] sm:$0xf]
        %v2616 = vld [vmem:[%s2611 + $0x10] sm:$0xf]
        %v2617 = vld [vmem:[%s2611 + $0x14] sm:$0xf]
        %v2618 = vld [vmem:[%s2611 + $0x18] sm:$0xf]
        %v2619 = vld [vmem:[%s2611 + $0x1c] sm:$0xf]
        %v2620 = vld [vmem:[%s2611 + $0x20] sm:$0xf]
        %v2621 = vld [vmem:[%s2611 + $0x24] sm:$0xf]
        %v2622 = vld [vmem:[%s2611 + $0x28] sm:$0xf]
        %v2623 = vld [vmem:[%s2611 + $0x2c] sm:$0xf]
        %v2624 = vld [vmem:[%s2611 + $0x30] sm:$0xf]
        %v2625 = vld [vmem:[%s2611 + $0x34] sm:$0xf]
        %v2626 = vld [vmem:[%s2611 + $0x38] sm:$0xf]
        %v2627 = vld [vmem:[%s2611 + $0x3c] sm:$0xf]
        %v2628 = vld [vmem:[#allocation7 + $0x1] sm:$0x1]
        %v2629 = vperm.slane %v2628, 0
        %v2646 = vunpack.c.l.b16 %v2612
        %v2647 = vunpack.c.l.b16 %v2613
        %v2648 = vunpack.c.l.b16 %v2614
        %v2649 = vunpack.c.l.b16 %v2615
        %v2650 = vunpack.c.l.b16 %v2616
        %v2651 = vunpack.c.l.b16 %v2617
        %v2652 = vunpack.c.l.b16 %v2618
        %v2653 = vunpack.c.l.b16 %v2619
        %v2654 = vunpack.c.l.b16 %v2620
        %v2655 = vunpack.c.l.b16 %v2621
        %v2656 = vunpack.c.l.b16 %v2622
        %v2657 = vunpack.c.l.b16 %v2623
        %v2658 = vunpack.c.l.b16 %v2624
        %v2659 = vunpack.c.l.b16 %v2625
        %v2660 = vunpack.c.l.b16 %v2626
        %v2661 = vunpack.c.l.b16 %v2627
        %v2662 = vpack.c.b16 %v2647, %v2646
        %v2663 = vpack.c.b16 %v2649, %v2648
        %v2664 = vpack.c.b16 %v2651, %v2650
        %v2665 = vpack.c.b16 %v2653, %v2652
        %v2666 = vpack.c.b16 %v2655, %v2654
        %v2667 = vpack.c.b16 %v2657, %v2656
        %v2668 = vpack.c.b16 %v2659, %v2658
        %v2669 = vpack.c.b16 %v2661, %v2660
        %2678 = vmatpush.bf16.msra.mxu0 %v2669
        %2679 = vmatpush.bf16.msra.mxu0 %v2668
        %2680 = vmatpush.bf16.msra.mxu0 %v2667
        %2681 = vmatpush.bf16.msra.mxu0 %v2666
        %2682 = vmatpush.bf16.msra.mxu0 %v2665
        %2683 = vmatpush.bf16.msra.mxu0 %v2664
        %2684 = vmatpush.bf16.msra.mxu0 %v2663
        %2685 = vmatpush.bf16.msra.mxu0 %v2662
        %2686 = vmatmul.bf16.gmra.mxu0 %v2595
        %v2687 = vpop.f32.mrf.mxu0
        %v2688 = vadd.f32 %v2629, %v2687
        %v2689 = vpop.f32.mrf.mxu0
        %v2690 = vadd.f32 %v2629, %v2689
        %2691 = vmatmul.bf16.gmra.mxu0 %v2596
        %v2692 = vpop.f32.mrf.mxu0
        %v2693 = vadd.f32 %v2629, %v2692
        %v2694 = vpop.f32.mrf.mxu0
        %v2695 = vadd.f32 %v2629, %v2694
        %2696 = vmatmul.bf16.gmra.mxu0 %v2597
        %v2697 = vpop.f32.mrf.mxu0
        %v2698 = vadd.f32 %v2629, %v2697
        %v2699 = vpop.f32.mrf.mxu0
        %v2700 = vadd.f32 %v2629, %v2699
        %2701 = vmatmul.bf16.gmra.mxu0 %v2598
        %v2702 = vpop.f32.mrf.mxu0
        %v2703 = vadd.f32 %v2629, %v2702
        %v2704 = vpop.f32.mrf.mxu0
        %v2705 = vadd.f32 %v2629, %v2704
        %2706 = vmatmul.bf16.gmra.mxu0 %v2599
        %v2707 = vpop.f32.mrf.mxu0
        %v2708 = vadd.f32 %v2629, %v2707
        %v2709 = vpop.f32.mrf.mxu0
        %v2710 = vadd.f32 %v2629, %v2709
        %2711 = vmatmul.bf16.gmra.mxu0 %v2600
        %v2712 = vpop.f32.mrf.mxu0
        %v2713 = vadd.f32 %v2629, %v2712
        %v2714 = vpop.f32.mrf.mxu0
        %v2715 = vadd.f32 %v2629, %v2714
        %2716 = vmatmul.bf16.gmra.mxu0 %v2601
        %v2717 = vpop.f32.mrf.mxu0
        %v2718 = vadd.f32 %v2629, %v2717
        %v2719 = vpop.f32.mrf.mxu0
        %v2720 = vadd.f32 %v2629, %v2719
        %2721 = vmatmul.bf16.gmra.mxu0 %v2602
        %v2722 = vpop.f32.mrf.mxu0
        %v2723 = vadd.f32 %v2629, %v2722
        %v2724 = vpop.f32.mrf.mxu0
        %v2725 = vadd.f32 %v2629, %v2724
        %2726 = vmatmul.bf16.gmra.mxu0 %v2603
        %v2727 = vpop.f32.mrf.mxu0
        %v2728 = vadd.f32 %v2629, %v2727
        %v2729 = vpop.f32.mrf.mxu0
        %v2730 = vadd.f32 %v2629, %v2729
        %2731 = vmatmul.bf16.gmra.mxu0 %v2604
        %v2732 = vpop.f32.mrf.mxu0
        %v2733 = vadd.f32 %v2629, %v2732
        %v2734 = vpop.f32.mrf.mxu0
        %v2735 = vadd.f32 %v2629, %v2734
        %2736 = vmatmul.bf16.gmra.mxu0 %v2605
        %v2737 = vpop.f32.mrf.mxu0
        %v2738 = vadd.f32 %v2629, %v2737
        %v2739 = vpop.f32.mrf.mxu0
        %v2740 = vadd.f32 %v2629, %v2739
        %2741 = vmatmul.bf16.gmra.mxu0 %v2606
        %v2742 = vpop.f32.mrf.mxu0
        %v2743 = vadd.f32 %v2629, %v2742
        %v2744 = vpop.f32.mrf.mxu0
        %v2745 = vadd.f32 %v2629, %v2744
        %2746 = vmatmul.bf16.gmra.mxu0 %v2607
        %v2747 = vpop.f32.mrf.mxu0
        %v2748 = vadd.f32 %v2629, %v2747
        %v2749 = vpop.f32.mrf.mxu0
        %v2750 = vadd.f32 %v2629, %v2749
        %2751 = vmatmul.bf16.gmra.mxu0 %v2608
        %v2752 = vpop.f32.mrf.mxu0
        %v2753 = vadd.f32 %v2629, %v2752
        %v2754 = vpop.f32.mrf.mxu0
        %v2755 = vadd.f32 %v2629, %v2754
        %2756 = vmatmul.bf16.gmra.mxu0 %v2609
        %v2757 = vpop.f32.mrf.mxu0
        %v2758 = vadd.f32 %v2629, %v2757
        %v2759 = vpop.f32.mrf.mxu0
        %v2760 = vadd.f32 %v2629, %v2759
        %2761 = vmatmul.bf16.gmra.mxu0 %v2610
        %v2762 = vpop.f32.mrf.mxu0
        %v2763 = vadd.f32 %v2629, %v2762
        %v2764 = vpop.f32.mrf.mxu0
        %v2765 = vadd.f32 %v2629, %v2764
        %2766 = vdwg.mxu0
        %v2767 = vmax.f32 %v2688, 0.0
        %v2768 = vmax.f32 %v2690, 0.0
        %v2769 = vmax.f32 %v2693, 0.0
        %v2770 = vmax.f32 %v2695, 0.0
        %v2771 = vmax.f32 %v2698, 0.0
        %v2772 = vmax.f32 %v2700, 0.0
        %v2773 = vmax.f32 %v2703, 0.0
        %v2774 = vmax.f32 %v2705, 0.0
        %v2775 = vmax.f32 %v2708, 0.0
        %v2776 = vmax.f32 %v2710, 0.0
        %v2777 = vmax.f32 %v2713, 0.0
        %v2778 = vmax.f32 %v2715, 0.0
        %v2779 = vmax.f32 %v2718, 0.0
        %v2780 = vmax.f32 %v2720, 0.0
        %v2781 = vmax.f32 %v2723, 0.0
        %v2782 = vmax.f32 %v2725, 0.0
        %v2783 = vmax.f32 %v2728, 0.0
        %v2784 = vmax.f32 %v2730, 0.0
        %v2785 = vmax.f32 %v2733, 0.0
        %v2786 = vmax.f32 %v2735, 0.0
        %v2787 = vmax.f32 %v2738, 0.0
        %v2788 = vmax.f32 %v2740, 0.0
        %v2789 = vmax.f32 %v2743, 0.0
        %v2790 = vmax.f32 %v2745, 0.0
        %v2791 = vmax.f32 %v2748, 0.0
        %v2792 = vmax.f32 %v2750, 0.0
        %v2793 = vmax.f32 %v2753, 0.0
        %v2794 = vmax.f32 %v2755, 0.0
        %v2795 = vmax.f32 %v2758, 0.0
        %v2796 = vmax.f32 %v2760, 0.0
        %v2797 = vmax.f32 %v2763, 0.0
        %v2798 = vmax.f32 %v2765, 0.0
        %vm2799 = vcmp.ne.f32.partialorder %v2688, %v2688
        %vm2800 = vcmp.ne.f32.partialorder %v2690, %v2690
        %vm2801 = vcmp.ne.f32.partialorder %v2693, %v2693
        %vm2802 = vcmp.ne.f32.partialorder %v2695, %v2695
        %vm2803 = vcmp.ne.f32.partialorder %v2698, %v2698
        %vm2804 = vcmp.ne.f32.partialorder %v2700, %v2700
        %vm2805 = vcmp.ne.f32.partialorder %v2703, %v2703
        %vm2806 = vcmp.ne.f32.partialorder %v2705, %v2705
        %vm2807 = vcmp.ne.f32.partialorder %v2708, %v2708
        %vm2808 = vcmp.ne.f32.partialorder %v2710, %v2710
        %vm2809 = vcmp.ne.f32.partialorder %v2713, %v2713
        %vm2810 = vcmp.ne.f32.partialorder %v2715, %v2715
        %vm2811 = vcmp.ne.f32.partialorder %v2718, %v2718
        %vm2812 = vcmp.ne.f32.partialorder %v2720, %v2720
        %vm2813 = vcmp.ne.f32.partialorder %v2723, %v2723
        %vm2814 = vcmp.ne.f32.partialorder %v2725, %v2725
        %vm2815 = vcmp.ne.f32.partialorder %v2728, %v2728
        %vm2816 = vcmp.ne.f32.partialorder %v2730, %v2730
        %vm2817 = vcmp.ne.f32.partialorder %v2733, %v2733
        %vm2818 = vcmp.ne.f32.partialorder %v2735, %v2735
        %vm2819 = vcmp.ne.f32.partialorder %v2738, %v2738
        %vm2820 = vcmp.ne.f32.partialorder %v2740, %v2740
        %vm2821 = vcmp.ne.f32.partialorder %v2743, %v2743
        %vm2822 = vcmp.ne.f32.partialorder %v2745, %v2745
        %vm2823 = vcmp.ne.f32.partialorder %v2748, %v2748
        %vm2824 = vcmp.ne.f32.partialorder %v2750, %v2750
        %vm2825 = vcmp.ne.f32.partialorder %v2753, %v2753
        %vm2826 = vcmp.ne.f32.partialorder %v2755, %v2755
        %vm2827 = vcmp.ne.f32.partialorder %v2758, %v2758
        %vm2828 = vcmp.ne.f32.partialorder %v2760, %v2760
        %vm2829 = vcmp.ne.f32.partialorder %v2763, %v2763
        %vm2830 = vcmp.ne.f32.partialorder %v2765, %v2765
        %v2831 = vadd.f32 %v2688, 0.0
        %v2832 = vadd.f32 %v2690, 0.0
        %v2833 = vadd.f32 %v2693, 0.0
        %v2834 = vadd.f32 %v2695, 0.0
        %v2835 = vadd.f32 %v2698, 0.0
        %v2836 = vadd.f32 %v2700, 0.0
        %v2837 = vadd.f32 %v2703, 0.0
        %v2838 = vadd.f32 %v2705, 0.0
        %v2839 = vadd.f32 %v2708, 0.0
        %v2840 = vadd.f32 %v2710, 0.0
        %v2841 = vadd.f32 %v2713, 0.0
        %v2842 = vadd.f32 %v2715, 0.0
        %v2843 = vadd.f32 %v2718, 0.0
        %v2844 = vadd.f32 %v2720, 0.0
        %v2845 = vadd.f32 %v2723, 0.0
        %v2846 = vadd.f32 %v2725, 0.0
        %v2847 = vadd.f32 %v2728, 0.0
        %v2848 = vadd.f32 %v2730, 0.0
        %v2849 = vadd.f32 %v2733, 0.0
        %v2850 = vadd.f32 %v2735, 0.0
        %v2851 = vadd.f32 %v2738, 0.0
        %v2852 = vadd.f32 %v2740, 0.0
        %v2853 = vadd.f32 %v2743, 0.0
        %v2854 = vadd.f32 %v2745, 0.0
        %v2855 = vadd.f32 %v2748, 0.0
        %v2856 = vadd.f32 %v2750, 0.0
        %v2857 = vadd.f32 %v2753, 0.0
        %v2858 = vadd.f32 %v2755, 0.0
        %v2859 = vadd.f32 %v2758, 0.0
        %v2860 = vadd.f32 %v2760, 0.0
        %v2861 = vadd.f32 %v2763, 0.0
        %v2862 = vadd.f32 %v2765, 0.0
        %v2863 = vand.u32 2147483647, %v2688
        %v2864 = vand.u32 2147483647, %v2690
        %v2865 = vand.u32 2147483647, %v2693
        %v2866 = vand.u32 2147483647, %v2695
        %v2867 = vand.u32 2147483647, %v2698
        %v2868 = vand.u32 2147483647, %v2700
        %v2869 = vand.u32 2147483647, %v2703
        %v2870 = vand.u32 2147483647, %v2705
        %v2871 = vand.u32 2147483647, %v2708
        %v2872 = vand.u32 2147483647, %v2710
        %v2873 = vand.u32 2147483647, %v2713
        %v2874 = vand.u32 2147483647, %v2715
        %v2875 = vand.u32 2147483647, %v2718
        %v2876 = vand.u32 2147483647, %v2720
        %v2877 = vand.u32 2147483647, %v2723
        %v2878 = vand.u32 2147483647, %v2725
        %v2879 = vand.u32 2147483647, %v2728
        %v2880 = vand.u32 2147483647, %v2730
        %v2881 = vand.u32 2147483647, %v2733
        %v2882 = vand.u32 2147483647, %v2735
        %v2883 = vand.u32 2147483647, %v2738
        %v2884 = vand.u32 2147483647, %v2740
        %v2885 = vand.u32 2147483647, %v2743
        %v2886 = vand.u32 2147483647, %v2745
        %v2887 = vand.u32 2147483647, %v2748
        %v2888 = vand.u32 2147483647, %v2750
        %v2889 = vand.u32 2147483647, %v2753
        %v2890 = vand.u32 2147483647, %v2755
        %v2891 = vand.u32 2147483647, %v2758
        %v2892 = vand.u32 2147483647, %v2760
        %v2893 = vand.u32 2147483647, %v2763
        %v2894 = vand.u32 2147483647, %v2765
        %v2895 = vsub.f32 0.0, %v2863
        %v2896 = vsub.f32 0.0, %v2864
        %v2897 = vsub.f32 0.0, %v2865
        %v2898 = vsub.f32 0.0, %v2866
        %v2899 = vsub.f32 0.0, %v2867
        %v2900 = vsub.f32 0.0, %v2868
        %v2901 = vsub.f32 0.0, %v2869
        %v2902 = vsub.f32 0.0, %v2870
        %v2903 = vsub.f32 0.0, %v2871
        %v2904 = vsub.f32 0.0, %v2872
        %v2905 = vsub.f32 0.0, %v2873
        %v2906 = vsub.f32 0.0, %v2874
        %v2907 = vsub.f32 0.0, %v2875
        %v2908 = vsub.f32 0.0, %v2876
        %v2909 = vsub.f32 0.0, %v2877
        %v2910 = vsub.f32 0.0, %v2878
        %v2911 = vsub.f32 0.0, %v2879
        %v2912 = vsub.f32 0.0, %v2880
        %v2913 = vsub.f32 0.0, %v2881
        %v2914 = vsub.f32 0.0, %v2882
        %v2915 = vsub.f32 0.0, %v2883
        %v2916 = vsub.f32 0.0, %v2884
        %v2917 = vsub.f32 0.0, %v2885
        %v2918 = vsub.f32 0.0, %v2886
        %v2919 = vsub.f32 0.0, %v2887
        %v2920 = vsub.f32 0.0, %v2888
        %v2921 = vsub.f32 0.0, %v2889
        %v2922 = vsub.f32 0.0, %v2890
        %v2923 = vsub.f32 0.0, %v2891
        %v2924 = vsub.f32 0.0, %v2892
        %v2925 = vsub.f32 0.0, %v2893
        %v2926 = vsub.f32 0.0, %v2894
        %v2927 = vmul.f32 %v2895, 1.442695
        %v2928 = vpow.pop %v2927
        %v2929 = vmul.f32 %v2896, 1.442695
        %v2930 = vpow.pop %v2929
        %v2931 = vmul.f32 %v2897, 1.442695
        %v2932 = vpow.pop %v2931
        %v2933 = vmul.f32 %v2898, 1.442695
        %v2934 = vpow.pop %v2933
        %v2935 = vmul.f32 %v2899, 1.442695
        %v2936 = vpow.pop %v2935
        %v2937 = vmul.f32 %v2900, 1.442695
        %v2938 = vpow.pop %v2937
        %v2939 = vmul.f32 %v2901, 1.442695
        %v2940 = vpow.pop %v2939
        %v2941 = vmul.f32 %v2902, 1.442695
        %v2942 = vpow.pop %v2941
        %v2943 = vmul.f32 %v2903, 1.442695
        %v2944 = vpow.pop %v2943
        %v2945 = vmul.f32 %v2904, 1.442695
        %v2946 = vpow.pop %v2945
        %v2947 = vmul.f32 %v2905, 1.442695
        %v2948 = vpow.pop %v2947
        %v2949 = vmul.f32 %v2906, 1.442695
        %v2950 = vpow.pop %v2949
        %v2951 = vmul.f32 %v2907, 1.442695
        %v2952 = vpow.pop %v2951
        %v2953 = vmul.f32 %v2908, 1.442695
        %v2954 = vpow.pop %v2953
        %v2955 = vmul.f32 %v2909, 1.442695
        %v2956 = vpow.pop %v2955
        %v2957 = vmul.f32 %v2910, 1.442695
        %v2958 = vpow.pop %v2957
        %v2959 = vmul.f32 %v2911, 1.442695
        %v2960 = vpow.pop %v2959
        %v2961 = vmul.f32 %v2912, 1.442695
        %v2962 = vpow.pop %v2961
        %v2963 = vmul.f32 %v2913, 1.442695
        %v2964 = vpow.pop %v2963
        %v2965 = vmul.f32 %v2914, 1.442695
        %v2966 = vpow.pop %v2965
        %v2967 = vmul.f32 %v2915, 1.442695
        %v2968 = vpow.pop %v2967
        %v2969 = vmul.f32 %v2916, 1.442695
        %v2970 = vpow.pop %v2969
        %v2971 = vmul.f32 %v2917, 1.442695
        %v2972 = vpow.pop %v2971
        %v2973 = vmul.f32 %v2918, 1.442695
        %v2974 = vpow.pop %v2973
        %v2975 = vmul.f32 %v2919, 1.442695
        %v2976 = vpow.pop %v2975
        %v2977 = vmul.f32 %v2920, 1.442695
        %v2978 = vpow.pop %v2977
        %v2979 = vmul.f32 %v2921, 1.442695
        %v2980 = vpow.pop %v2979
        %v2981 = vmul.f32 %v2922, 1.442695
        %v2982 = vpow.pop %v2981
        %v2983 = vmul.f32 %v2923, 1.442695
        %v2984 = vpow.pop %v2983
        %v2985 = vmul.f32 %v2924, 1.442695
        %v2986 = vpow.pop %v2985
        %v2987 = vmul.f32 %v2925, 1.442695
        %v2988 = vpow.pop %v2987
        %v2989 = vmul.f32 %v2926, 1.442695
        %v2990 = vpow.pop %v2989
        %v2991 = vadd.f32 %v2928, 1.0
        %v2992 = vlog2.pop %v2991
        %v2993 = vmul.f32 %v2992, 0.6931472
        %v2994 = vmul.f32 -0.5, %v2928
        %v2995 = vadd.f32 %v2994, 1.0
        %v2996 = vmul.f32 %v2995, %v2928
        %v2997 = vand.u32 2147483647, %v2928
        %vm2998 = vcmp.lt.f32.partialorder %v2997, 0.0004427343
        %v2999 = vsel %vm2998, %v2996, %v2993
        %v3000 = vadd.f32 %v2930, 1.0
        %v3001 = vlog2.pop %v3000
        %v3002 = vmul.f32 %v3001, 0.6931472
        %v3003 = vmul.f32 -0.5, %v2930
        %v3004 = vadd.f32 %v3003, 1.0
        %v3005 = vmul.f32 %v3004, %v2930
        %v3006 = vand.u32 2147483647, %v2930
        %vm3007 = vcmp.lt.f32.partialorder %v3006, 0.0004427343
        %v3008 = vsel %vm3007, %v3005, %v3002
        %v3009 = vadd.f32 %v2932, 1.0
        %v3010 = vlog2.pop %v3009
        %v3011 = vmul.f32 %v3010, 0.6931472
        %v3012 = vmul.f32 -0.5, %v2932
        %v3013 = vadd.f32 %v3012, 1.0
        %v3014 = vmul.f32 %v3013, %v2932
        %v3015 = vand.u32 2147483647, %v2932
        %vm3016 = vcmp.lt.f32.partialorder %v3015, 0.0004427343
        %v3017 = vsel %vm3016, %v3014, %v3011
        %v3018 = vadd.f32 %v2934, 1.0
        %v3019 = vlog2.pop %v3018
        %v3020 = vmul.f32 %v3019, 0.6931472
        %v3021 = vmul.f32 -0.5, %v2934
        %v3022 = vadd.f32 %v3021, 1.0
        %v3023 = vmul.f32 %v3022, %v2934
        %v3024 = vand.u32 2147483647, %v2934
        %vm3025 = vcmp.lt.f32.partialorder %v3024, 0.0004427343
        %v3026 = vsel %vm3025, %v3023, %v3020
        %v3027 = vadd.f32 %v2936, 1.0
        %v3028 = vlog2.pop %v3027
        %v3029 = vmul.f32 %v3028, 0.6931472
        %v3030 = vmul.f32 -0.5, %v2936
        %v3031 = vadd.f32 %v3030, 1.0
        %v3032 = vmul.f32 %v3031, %v2936
        %v3033 = vand.u32 2147483647, %v2936
        %vm3034 = vcmp.lt.f32.partialorder %v3033, 0.0004427343
        %v3035 = vsel %vm3034, %v3032, %v3029
        %v3036 = vadd.f32 %v2938, 1.0
        %v3037 = vlog2.pop %v3036
        %v3038 = vmul.f32 %v3037, 0.6931472
        %v3039 = vmul.f32 -0.5, %v2938
        %v3040 = vadd.f32 %v3039, 1.0
        %v3041 = vmul.f32 %v3040, %v2938
        %v3042 = vand.u32 2147483647, %v2938
        %vm3043 = vcmp.lt.f32.partialorder %v3042, 0.0004427343
        %v3044 = vsel %vm3043, %v3041, %v3038
        %v3045 = vadd.f32 %v2940, 1.0
        %v3046 = vlog2.pop %v3045
        %v3047 = vmul.f32 %v3046, 0.6931472
        %v3048 = vmul.f32 -0.5, %v2940
        %v3049 = vadd.f32 %v3048, 1.0
        %v3050 = vmul.f32 %v3049, %v2940
        %v3051 = vand.u32 2147483647, %v2940
        %vm3052 = vcmp.lt.f32.partialorder %v3051, 0.0004427343
        %v3053 = vsel %vm3052, %v3050, %v3047
        %v3054 = vadd.f32 %v2942, 1.0
        %v3055 = vlog2.pop %v3054
        %v3056 = vmul.f32 %v3055, 0.6931472
        %v3057 = vmul.f32 -0.5, %v2942
        %v3058 = vadd.f32 %v3057, 1.0
        %v3059 = vmul.f32 %v3058, %v2942
        %v3060 = vand.u32 2147483647, %v2942
        %vm3061 = vcmp.lt.f32.partialorder %v3060, 0.0004427343
        %v3062 = vsel %vm3061, %v3059, %v3056
        %v3063 = vadd.f32 %v2944, 1.0
        %v3064 = vlog2.pop %v3063
        %v3065 = vmul.f32 %v3064, 0.6931472
        %v3066 = vmul.f32 -0.5, %v2944
        %v3067 = vadd.f32 %v3066, 1.0
        %v3068 = vmul.f32 %v3067, %v2944
        %v3069 = vand.u32 2147483647, %v2944
        %vm3070 = vcmp.lt.f32.partialorder %v3069, 0.0004427343
        %v3071 = vsel %vm3070, %v3068, %v3065
        %v3072 = vadd.f32 %v2946, 1.0
        %v3073 = vlog2.pop %v3072
        %v3074 = vmul.f32 %v3073, 0.6931472
        %v3075 = vmul.f32 -0.5, %v2946
        %v3076 = vadd.f32 %v3075, 1.0
        %v3077 = vmul.f32 %v3076, %v2946
        %v3078 = vand.u32 2147483647, %v2946
        %vm3079 = vcmp.lt.f32.partialorder %v3078, 0.0004427343
        %v3080 = vsel %vm3079, %v3077, %v3074
        %v3081 = vadd.f32 %v2948, 1.0
        %v3082 = vlog2.pop %v3081
        %v3083 = vmul.f32 %v3082, 0.6931472
        %v3084 = vmul.f32 -0.5, %v2948
        %v3085 = vadd.f32 %v3084, 1.0
        %v3086 = vmul.f32 %v3085, %v2948
        %v3087 = vand.u32 2147483647, %v2948
        %vm3088 = vcmp.lt.f32.partialorder %v3087, 0.0004427343
        %v3089 = vsel %vm3088, %v3086, %v3083
        %v3090 = vadd.f32 %v2950, 1.0
        %v3091 = vlog2.pop %v3090
        %v3092 = vmul.f32 %v3091, 0.6931472
        %v3093 = vmul.f32 -0.5, %v2950
        %v3094 = vadd.f32 %v3093, 1.0
        %v3095 = vmul.f32 %v3094, %v2950
        %v3096 = vand.u32 2147483647, %v2950
        %vm3097 = vcmp.lt.f32.partialorder %v3096, 0.0004427343
        %v3098 = vsel %vm3097, %v3095, %v3092
        %v3099 = vadd.f32 %v2952, 1.0
        %v3100 = vlog2.pop %v3099
        %v3101 = vmul.f32 %v3100, 0.6931472
        %v3102 = vmul.f32 -0.5, %v2952
        %v3103 = vadd.f32 %v3102, 1.0
        %v3104 = vmul.f32 %v3103, %v2952
        %v3105 = vand.u32 2147483647, %v2952
        %vm3106 = vcmp.lt.f32.partialorder %v3105, 0.0004427343
        %v3107 = vsel %vm3106, %v3104, %v3101
        %v3108 = vadd.f32 %v2954, 1.0
        %v3109 = vlog2.pop %v3108
        %v3110 = vmul.f32 %v3109, 0.6931472
        %v3111 = vmul.f32 -0.5, %v2954
        %v3112 = vadd.f32 %v3111, 1.0
        %v3113 = vmul.f32 %v3112, %v2954
        %v3114 = vand.u32 2147483647, %v2954
        %vm3115 = vcmp.lt.f32.partialorder %v3114, 0.0004427343
        %v3116 = vsel %vm3115, %v3113, %v3110
        %v3117 = vadd.f32 %v2956, 1.0
        %v3118 = vlog2.pop %v3117
        %v3119 = vmul.f32 %v3118, 0.6931472
        %v3120 = vmul.f32 -0.5, %v2956
        %v3121 = vadd.f32 %v3120, 1.0
        %v3122 = vmul.f32 %v3121, %v2956
        %v3123 = vand.u32 2147483647, %v2956
        %vm3124 = vcmp.lt.f32.partialorder %v3123, 0.0004427343
        %v3125 = vsel %vm3124, %v3122, %v3119
        %v3126 = vadd.f32 %v2958, 1.0
        %v3127 = vlog2.pop %v3126
        %v3128 = vmul.f32 %v3127, 0.6931472
        %v3129 = vmul.f32 -0.5, %v2958
        %v3130 = vadd.f32 %v3129, 1.0
        %v3131 = vmul.f32 %v3130, %v2958
        %v3132 = vand.u32 2147483647, %v2958
        %vm3133 = vcmp.lt.f32.partialorder %v3132, 0.0004427343
        %v3134 = vsel %vm3133, %v3131, %v3128
        %v3135 = vadd.f32 %v2960, 1.0
        %v3136 = vlog2.pop %v3135
        %v3137 = vmul.f32 %v3136, 0.6931472
        %v3138 = vmul.f32 -0.5, %v2960
        %v3139 = vadd.f32 %v3138, 1.0
        %v3140 = vmul.f32 %v3139, %v2960
        %v3141 = vand.u32 2147483647, %v2960
        %vm3142 = vcmp.lt.f32.partialorder %v3141, 0.0004427343
        %v3143 = vsel %vm3142, %v3140, %v3137
        %v3144 = vadd.f32 %v2962, 1.0
        %v3145 = vlog2.pop %v3144
        %v3146 = vmul.f32 %v3145, 0.6931472
        %v3147 = vmul.f32 -0.5, %v2962
        %v3148 = vadd.f32 %v3147, 1.0
        %v3149 = vmul.f32 %v3148, %v2962
        %v3150 = vand.u32 2147483647, %v2962
        %vm3151 = vcmp.lt.f32.partialorder %v3150, 0.0004427343
        %v3152 = vsel %vm3151, %v3149, %v3146
        %v3153 = vadd.f32 %v2964, 1.0
        %v3154 = vlog2.pop %v3153
        %v3155 = vmul.f32 %v3154, 0.6931472
        %v3156 = vmul.f32 -0.5, %v2964
        %v3157 = vadd.f32 %v3156, 1.0
        %v3158 = vmul.f32 %v3157, %v2964
        %v3159 = vand.u32 2147483647, %v2964
        %vm3160 = vcmp.lt.f32.partialorder %v3159, 0.0004427343
        %v3161 = vsel %vm3160, %v3158, %v3155
        %v3162 = vadd.f32 %v2966, 1.0
        %v3163 = vlog2.pop %v3162
        %v3164 = vmul.f32 %v3163, 0.6931472
        %v3165 = vmul.f32 -0.5, %v2966
        %v3166 = vadd.f32 %v3165, 1.0
        %v3167 = vmul.f32 %v3166, %v2966
        %v3168 = vand.u32 2147483647, %v2966
        %vm3169 = vcmp.lt.f32.partialorder %v3168, 0.0004427343
        %v3170 = vsel %vm3169, %v3167, %v3164
        %v3171 = vadd.f32 %v2968, 1.0
        %v3172 = vlog2.pop %v3171
        %v3173 = vmul.f32 %v3172, 0.6931472
        %v3174 = vmul.f32 -0.5, %v2968
        %v3175 = vadd.f32 %v3174, 1.0
        %v3176 = vmul.f32 %v3175, %v2968
        %v3177 = vand.u32 2147483647, %v2968
        %vm3178 = vcmp.lt.f32.partialorder %v3177, 0.0004427343
        %v3179 = vsel %vm3178, %v3176, %v3173
        %v3180 = vadd.f32 %v2970, 1.0
        %v3181 = vlog2.pop %v3180
        %v3182 = vmul.f32 %v3181, 0.6931472
        %v3183 = vmul.f32 -0.5, %v2970
        %v3184 = vadd.f32 %v3183, 1.0
        %v3185 = vmul.f32 %v3184, %v2970
        %v3186 = vand.u32 2147483647, %v2970
        %vm3187 = vcmp.lt.f32.partialorder %v3186, 0.0004427343
        %v3188 = vsel %vm3187, %v3185, %v3182
        %v3189 = vadd.f32 %v2972, 1.0
        %v3190 = vlog2.pop %v3189
        %v3191 = vmul.f32 %v3190, 0.6931472
        %v3192 = vmul.f32 -0.5, %v2972
        %v3193 = vadd.f32 %v3192, 1.0
        %v3194 = vmul.f32 %v3193, %v2972
        %v3195 = vand.u32 2147483647, %v2972
        %vm3196 = vcmp.lt.f32.partialorder %v3195, 0.0004427343
        %v3197 = vsel %vm3196, %v3194, %v3191
        %v3198 = vadd.f32 %v2974, 1.0
        %v3199 = vlog2.pop %v3198
        %v3200 = vmul.f32 %v3199, 0.6931472
        %v3201 = vmul.f32 -0.5, %v2974
        %v3202 = vadd.f32 %v3201, 1.0
        %v3203 = vmul.f32 %v3202, %v2974
        %v3204 = vand.u32 2147483647, %v2974
        %vm3205 = vcmp.lt.f32.partialorder %v3204, 0.0004427343
        %v3206 = vsel %vm3205, %v3203, %v3200
        %v3207 = vadd.f32 %v2976, 1.0
        %v3208 = vlog2.pop %v3207
        %v3209 = vmul.f32 %v3208, 0.6931472
        %v3210 = vmul.f32 -0.5, %v2976
        %v3211 = vadd.f32 %v3210, 1.0
        %v3212 = vmul.f32 %v3211, %v2976
        %v3213 = vand.u32 2147483647, %v2976
        %vm3214 = vcmp.lt.f32.partialorder %v3213, 0.0004427343
        %v3215 = vsel %vm3214, %v3212, %v3209
        %v3216 = vadd.f32 %v2978, 1.0
        %v3217 = vlog2.pop %v3216
        %v3218 = vmul.f32 %v3217, 0.6931472
        %v3219 = vmul.f32 -0.5, %v2978
        %v3220 = vadd.f32 %v3219, 1.0
        %v3221 = vmul.f32 %v3220, %v2978
        %v3222 = vand.u32 2147483647, %v2978
        %vm3223 = vcmp.lt.f32.partialorder %v3222, 0.0004427343
        %v3224 = vsel %vm3223, %v3221, %v3218
        %v3225 = vadd.f32 %v2980, 1.0
        %v3226 = vlog2.pop %v3225
        %v3227 = vmul.f32 %v3226, 0.6931472
        %v3228 = vmul.f32 -0.5, %v2980
        %v3229 = vadd.f32 %v3228, 1.0
        %v3230 = vmul.f32 %v3229, %v2980
        %v3231 = vand.u32 2147483647, %v2980
        %vm3232 = vcmp.lt.f32.partialorder %v3231, 0.0004427343
        %v3233 = vsel %vm3232, %v3230, %v3227
        %v3234 = vadd.f32 %v2982, 1.0
        %v3235 = vlog2.pop %v3234
        %v3236 = vmul.f32 %v3235, 0.6931472
        %v3237 = vmul.f32 -0.5, %v2982
        %v3238 = vadd.f32 %v3237, 1.0
        %v3239 = vmul.f32 %v3238, %v2982
        %v3240 = vand.u32 2147483647, %v2982
        %vm3241 = vcmp.lt.f32.partialorder %v3240, 0.0004427343
        %v3242 = vsel %vm3241, %v3239, %v3236
        %v3243 = vadd.f32 %v2984, 1.0
        %v3244 = vlog2.pop %v3243
        %v3245 = vmul.f32 %v3244, 0.6931472
        %v3246 = vmul.f32 -0.5, %v2984
        %v3247 = vadd.f32 %v3246, 1.0
        %v3248 = vmul.f32 %v3247, %v2984
        %v3249 = vand.u32 2147483647, %v2984
        %vm3250 = vcmp.lt.f32.partialorder %v3249, 0.0004427343
        %v3251 = vsel %vm3250, %v3248, %v3245
        %v3252 = vadd.f32 %v2986, 1.0
        %v3253 = vlog2.pop %v3252
        %v3254 = vmul.f32 %v3253, 0.6931472
        %v3255 = vmul.f32 -0.5, %v2986
        %v3256 = vadd.f32 %v3255, 1.0
        %v3257 = vmul.f32 %v3256, %v2986
        %v3258 = vand.u32 2147483647, %v2986
        %vm3259 = vcmp.lt.f32.partialorder %v3258, 0.0004427343
        %v3260 = vsel %vm3259, %v3257, %v3254
        %v3261 = vadd.f32 %v2988, 1.0
        %v3262 = vlog2.pop %v3261
        %v3263 = vmul.f32 %v3262, 0.6931472
        %v3264 = vmul.f32 -0.5, %v2988
        %v3265 = vadd.f32 %v3264, 1.0
        %v3266 = vmul.f32 %v3265, %v2988
        %v3267 = vand.u32 2147483647, %v2988
        %vm3268 = vcmp.lt.f32.partialorder %v3267, 0.0004427343
        %v3269 = vsel %vm3268, %v3266, %v3263
        %v3270 = vadd.f32 %v2990, 1.0
        %v3271 = vlog2.pop %v3270
        %v3272 = vmul.f32 %v3271, 0.6931472
        %v3273 = vmul.f32 -0.5, %v2990
        %v3274 = vadd.f32 %v3273, 1.0
        %v3275 = vmul.f32 %v3274, %v2990
        %v3276 = vand.u32 2147483647, %v2990
        %vm3277 = vcmp.lt.f32.partialorder %v3276, 0.0004427343
        %v3278 = vsel %vm3277, %v3275, %v3272
        %v3279 = vadd.f32 %v2767, %v2999
        %v3280 = vadd.f32 %v2768, %v3008
        %v3281 = vadd.f32 %v2769, %v3017
        %v3282 = vadd.f32 %v2770, %v3026
        %v3283 = vadd.f32 %v2771, %v3035
        %v3284 = vadd.f32 %v2772, %v3044
        %v3285 = vadd.f32 %v2773, %v3053
        %v3286 = vadd.f32 %v2774, %v3062
        %v3287 = vadd.f32 %v2775, %v3071
        %v3288 = vadd.f32 %v2776, %v3080
        %v3289 = vadd.f32 %v2777, %v3089
        %v3290 = vadd.f32 %v2778, %v3098
        %v3291 = vadd.f32 %v2779, %v3107
        %v3292 = vadd.f32 %v2780, %v3116
        %v3293 = vadd.f32 %v2781, %v3125
        %v3294 = vadd.f32 %v2782, %v3134
        %v3295 = vadd.f32 %v2783, %v3143
        %v3296 = vadd.f32 %v2784, %v3152
        %v3297 = vadd.f32 %v2785, %v3161
        %v3298 = vadd.f32 %v2786, %v3170
        %v3299 = vadd.f32 %v2787, %v3179
        %v3300 = vadd.f32 %v2788, %v3188
        %v3301 = vadd.f32 %v2789, %v3197
        %v3302 = vadd.f32 %v2790, %v3206
        %v3303 = vadd.f32 %v2791, %v3215
        %v3304 = vadd.f32 %v2792, %v3224
        %v3305 = vadd.f32 %v2793, %v3233
        %v3306 = vadd.f32 %v2794, %v3242
        %v3307 = vadd.f32 %v2795, %v3251
        %v3308 = vadd.f32 %v2796, %v3260
        %v3309 = vadd.f32 %v2797, %v3269
        %v3310 = vadd.f32 %v2798, %v3278
        %v3311 = vsel %vm2799, %v2831, %v3279
        %v3312 = vsel %vm2800, %v2832, %v3280
        %v3313 = vsel %vm2801, %v2833, %v3281
        %v3314 = vsel %vm2802, %v2834, %v3282
        %v3315 = vsel %vm2803, %v2835, %v3283
        %v3316 = vsel %vm2804, %v2836, %v3284
        %v3317 = vsel %vm2805, %v2837, %v3285
        %v3318 = vsel %vm2806, %v2838, %v3286
        %v3319 = vsel %vm2807, %v2839, %v3287
        %v3320 = vsel %vm2808, %v2840, %v3288
        %v3321 = vsel %vm2809, %v2841, %v3289
        %v3322 = vsel %vm2810, %v2842, %v3290
        %v3323 = vsel %vm2811, %v2843, %v3291
        %v3324 = vsel %vm2812, %v2844, %v3292
        %v3325 = vsel %vm2813, %v2845, %v3293
        %v3326 = vsel %vm2814, %v2846, %v3294
        %v3327 = vsel %vm2815, %v2847, %v3295
        %v3328 = vsel %vm2816, %v2848, %v3296
        %v3329 = vsel %vm2817, %v2849, %v3297
        %v3330 = vsel %vm2818, %v2850, %v3298
        %v3331 = vsel %vm2819, %v2851, %v3299
        %v3332 = vsel %vm2820, %v2852, %v3300
        %v3333 = vsel %vm2821, %v2853, %v3301
        %v3334 = vsel %vm2822, %v2854, %v3302
        %v3335 = vsel %vm2823, %v2855, %v3303
        %v3336 = vsel %vm2824, %v2856, %v3304
        %v3337 = vsel %vm2825, %v2857, %v3305
        %v3338 = vsel %vm2826, %v2858, %v3306
        %v3339 = vsel %vm2827, %v2859, %v3307
        %v3340 = vsel %vm2828, %v2860, %v3308
        %v3341 = vsel %vm2829, %v2861, %v3309
        %v3342 = vsel %vm2830, %v2862, %v3310
        %v3343 = vsub.f32 %v3311, 0.6931472
        %v3344 = vsub.f32 %v3312, 0.6931472
        %v3345 = vsub.f32 %v3313, 0.6931472
        %v3346 = vsub.f32 %v3314, 0.6931472
        %v3347 = vsub.f32 %v3315, 0.6931472
        %v3348 = vsub.f32 %v3316, 0.6931472
        %v3349 = vsub.f32 %v3317, 0.6931472
        %v3350 = vsub.f32 %v3318, 0.6931472
        %v3351 = vsub.f32 %v3319, 0.6931472
        %v3352 = vsub.f32 %v3320, 0.6931472
        %v3353 = vsub.f32 %v3321, 0.6931472
        %v3354 = vsub.f32 %v3322, 0.6931472
        %v3355 = vsub.f32 %v3323, 0.6931472
        %v3356 = vsub.f32 %v3324, 0.6931472
        %v3357 = vsub.f32 %v3325, 0.6931472
        %v3358 = vsub.f32 %v3326, 0.6931472
        %v3359 = vsub.f32 %v3327, 0.6931472
        %v3360 = vsub.f32 %v3328, 0.6931472
        %v3361 = vsub.f32 %v3329, 0.6931472
        %v3362 = vsub.f32 %v3330, 0.6931472
        %v3363 = vsub.f32 %v3331, 0.6931472
        %v3364 = vsub.f32 %v3332, 0.6931472
        %v3365 = vsub.f32 %v3333, 0.6931472
        %v3366 = vsub.f32 %v3334, 0.6931472
        %v3367 = vsub.f32 %v3335, 0.6931472
        %v3368 = vsub.f32 %v3336, 0.6931472
        %v3369 = vsub.f32 %v3337, 0.6931472
        %v3370 = vsub.f32 %v3338, 0.6931472
        %v3371 = vsub.f32 %v3339, 0.6931472
        %v3372 = vsub.f32 %v3340, 0.6931472
        %v3373 = vsub.f32 %v3341, 0.6931472
        %v3374 = vsub.f32 %v3342, 0.6931472
        %v3375 = vpack.c.bf16 %v3344, %v3343
        %v3376 = vpack.c.bf16 %v3346, %v3345
        %v3377 = vpack.c.bf16 %v3348, %v3347
        %v3378 = vpack.c.bf16 %v3350, %v3349
        %v3379 = vpack.c.bf16 %v3352, %v3351
        %v3380 = vpack.c.bf16 %v3354, %v3353
        %v3381 = vpack.c.bf16 %v3356, %v3355
        %v3382 = vpack.c.bf16 %v3358, %v3357
        %v3383 = vpack.c.bf16 %v3360, %v3359
        %v3384 = vpack.c.bf16 %v3362, %v3361
        %v3385 = vpack.c.bf16 %v3364, %v3363
        %v3386 = vpack.c.bf16 %v3366, %v3365
        %v3387 = vpack.c.bf16 %v3368, %v3367
        %v3388 = vpack.c.bf16 %v3370, %v3369
        %v3389 = vpack.c.bf16 %v3372, %v3371
        %v3390 = vpack.c.bf16 %v3374, %v3373
        %s3391 = scalar_lea.vmem [#allocation8], 64
        %v3392 = vld [vmem:[%s3391] sm:$0xf]
        %v3393 = vld [vmem:[%s3391 + $0x4] sm:$0xf]
        %v3394 = vld [vmem:[%s3391 + $0x8] sm:$0xf]
        %v3395 = vld [vmem:[%s3391 + $0xc] sm:$0xf]
        %v3396 = vld [vmem:[%s3391 + $0x10] sm:$0xf]
        %v3397 = vld [vmem:[%s3391 + $0x14] sm:$0xf]
        %v3398 = vld [vmem:[%s3391 + $0x18] sm:$0xf]
        %v3399 = vld [vmem:[%s3391 + $0x1c] sm:$0xf]
        %v3400 = vld [vmem:[%s3391 + $0x20] sm:$0xf]
        %v3401 = vld [vmem:[%s3391 + $0x24] sm:$0xf]
        %v3402 = vld [vmem:[%s3391 + $0x28] sm:$0xf]
        %v3403 = vld [vmem:[%s3391 + $0x2c] sm:$0xf]
        %v3404 = vld [vmem:[%s3391 + $0x30] sm:$0xf]
        %v3405 = vld [vmem:[%s3391 + $0x34] sm:$0xf]
        %v3406 = vld [vmem:[%s3391 + $0x38] sm:$0xf]
        %v3407 = vld [vmem:[%s3391 + $0x3c] sm:$0xf]
        %v3408 = vld [vmem:[%s4 + $0x1] sm:$0x1]
        %v3409 = vperm.slane %v3408, 0
        %v3426 = vunpack.c.l.b16 %v3392
        %v3427 = vunpack.c.l.b16 %v3393
        %v3428 = vunpack.c.l.b16 %v3394
        %v3429 = vunpack.c.l.b16 %v3395
        %v3430 = vunpack.c.l.b16 %v3396
        %v3431 = vunpack.c.l.b16 %v3397
        %v3432 = vunpack.c.l.b16 %v3398
        %v3433 = vunpack.c.l.b16 %v3399
        %v3434 = vunpack.c.l.b16 %v3400
        %v3435 = vunpack.c.l.b16 %v3401
        %v3436 = vunpack.c.l.b16 %v3402
        %v3437 = vunpack.c.l.b16 %v3403
        %v3438 = vunpack.c.l.b16 %v3404
        %v3439 = vunpack.c.l.b16 %v3405
        %v3440 = vunpack.c.l.b16 %v3406
        %v3441 = vunpack.c.l.b16 %v3407
        %v3442 = vpack.c.b16 %v3427, %v3426
        %v3443 = vpack.c.b16 %v3429, %v3428
        %v3444 = vpack.c.b16 %v3431, %v3430
        %v3445 = vpack.c.b16 %v3433, %v3432
        %v3446 = vpack.c.b16 %v3435, %v3434
        %v3447 = vpack.c.b16 %v3437, %v3436
        %v3448 = vpack.c.b16 %v3439, %v3438
        %v3449 = vpack.c.b16 %v3441, %v3440
        %3458 = vmatpush.bf16.msra.mxu0 %v3449
        %3459 = vmatpush.bf16.msra.mxu0 %v3448
        %3460 = vmatpush.bf16.msra.mxu0 %v3447
        %3461 = vmatpush.bf16.msra.mxu0 %v3446
        %3462 = vmatpush.bf16.msra.mxu0 %v3445
        %3463 = vmatpush.bf16.msra.mxu0 %v3444
        %3464 = vmatpush.bf16.msra.mxu0 %v3443
        %3465 = vmatpush.bf16.msra.mxu0 %v3442
        %3466 = vmatmul.bf16.gmra.mxu0 %v3375
        %v3467 = vpop.f32.mrf.mxu0
        %v3468 = vadd.f32 %v3409, %v3467
        %v3469 = vpop.f32.mrf.mxu0
        %v3470 = vadd.f32 %v3409, %v3469
        %3471 = vmatmul.bf16.gmra.mxu0 %v3376
        %v3472 = vpop.f32.mrf.mxu0
        %v3473 = vadd.f32 %v3409, %v3472
        %v3474 = vpop.f32.mrf.mxu0
        %v3475 = vadd.f32 %v3409, %v3474
        %3476 = vmatmul.bf16.gmra.mxu0 %v3377
        %v3477 = vpop.f32.mrf.mxu0
        %v3478 = vadd.f32 %v3409, %v3477
        %v3479 = vpop.f32.mrf.mxu0
        %v3480 = vadd.f32 %v3409, %v3479
        %3481 = vmatmul.bf16.gmra.mxu0 %v3378
        %v3482 = vpop.f32.mrf.mxu0
        %v3483 = vadd.f32 %v3409, %v3482
        %v3484 = vpop.f32.mrf.mxu0
        %v3485 = vadd.f32 %v3409, %v3484
        %3486 = vmatmul.bf16.gmra.mxu0 %v3379
        %v3487 = vpop.f32.mrf.mxu0
        %v3488 = vadd.f32 %v3409, %v3487
        %v3489 = vpop.f32.mrf.mxu0
        %v3490 = vadd.f32 %v3409, %v3489
        %3491 = vmatmul.bf16.gmra.mxu0 %v3380
        %v3492 = vpop.f32.mrf.mxu0
        %v3493 = vadd.f32 %v3409, %v3492
        %v3494 = vpop.f32.mrf.mxu0
        %v3495 = vadd.f32 %v3409, %v3494
        %3496 = vmatmul.bf16.gmra.mxu0 %v3381
        %v3497 = vpop.f32.mrf.mxu0
        %v3498 = vadd.f32 %v3409, %v3497
        %v3499 = vpop.f32.mrf.mxu0
        %v3500 = vadd.f32 %v3409, %v3499
        %3501 = vmatmul.bf16.gmra.mxu0 %v3382
        %v3502 = vpop.f32.mrf.mxu0
        %v3503 = vadd.f32 %v3409, %v3502
        %v3504 = vpop.f32.mrf.mxu0
        %v3505 = vadd.f32 %v3409, %v3504
        %3506 = vmatmul.bf16.gmra.mxu0 %v3383
        %v3507 = vpop.f32.mrf.mxu0
        %v3508 = vadd.f32 %v3409, %v3507
        %v3509 = vpop.f32.mrf.mxu0
        %v3510 = vadd.f32 %v3409, %v3509
        %3511 = vmatmul.bf16.gmra.mxu0 %v3384
        %v3512 = vpop.f32.mrf.mxu0
        %v3513 = vadd.f32 %v3409, %v3512
        %v3514 = vpop.f32.mrf.mxu0
        %v3515 = vadd.f32 %v3409, %v3514
        %3516 = vmatmul.bf16.gmra.mxu0 %v3385
        %v3517 = vpop.f32.mrf.mxu0
        %v3518 = vadd.f32 %v3409, %v3517
        %v3519 = vpop.f32.mrf.mxu0
        %v3520 = vadd.f32 %v3409, %v3519
        %3521 = vmatmul.bf16.gmra.mxu0 %v3386
        %v3522 = vpop.f32.mrf.mxu0
        %v3523 = vadd.f32 %v3409, %v3522
        %v3524 = vpop.f32.mrf.mxu0
        %v3525 = vadd.f32 %v3409, %v3524
        %3526 = vmatmul.bf16.gmra.mxu0 %v3387
        %v3527 = vpop.f32.mrf.mxu0
        %v3528 = vadd.f32 %v3409, %v3527
        %v3529 = vpop.f32.mrf.mxu0
        %v3530 = vadd.f32 %v3409, %v3529
        %3531 = vmatmul.bf16.gmra.mxu0 %v3388
        %v3532 = vpop.f32.mrf.mxu0
        %v3533 = vadd.f32 %v3409, %v3532
        %v3534 = vpop.f32.mrf.mxu0
        %v3535 = vadd.f32 %v3409, %v3534
        %3536 = vmatmul.bf16.gmra.mxu0 %v3389
        %v3537 = vpop.f32.mrf.mxu0
        %v3538 = vadd.f32 %v3409, %v3537
        %v3539 = vpop.f32.mrf.mxu0
        %v3540 = vadd.f32 %v3409, %v3539
        %3541 = vmatmul.bf16.gmra.mxu0 %v3390
        %v3542 = vpop.f32.mrf.mxu0
        %v3543 = vadd.f32 %v3409, %v3542
        %v3544 = vpop.f32.mrf.mxu0
        %v3545 = vadd.f32 %v3409, %v3544
        %3546 = vdwg.mxu0
        %v3547 = vadd.f32 %v1955, %v3468
        %v3548 = vadd.f32 %v1956, %v3470
        %v3549 = vadd.f32 %v1957, %v3473
        %v3550 = vadd.f32 %v1958, %v3475
        %v3551 = vadd.f32 %v1959, %v3478
        %v3552 = vadd.f32 %v1960, %v3480
        %v3553 = vadd.f32 %v1961, %v3483
        %v3554 = vadd.f32 %v1962, %v3485
        %v3555 = vadd.f32 %v1963, %v3488
        %v3556 = vadd.f32 %v1964, %v3490
        %v3557 = vadd.f32 %v1965, %v3493
        %v3558 = vadd.f32 %v1966, %v3495
        %v3559 = vadd.f32 %v1967, %v3498
        %v3560 = vadd.f32 %v1968, %v3500
        %v3561 = vadd.f32 %v1969, %v3503
        %v3562 = vadd.f32 %v1970, %v3505
        %v3563 = vadd.f32 %v1971, %v3508
        %v3564 = vadd.f32 %v1972, %v3510
        %v3565 = vadd.f32 %v1973, %v3513
        %v3566 = vadd.f32 %v1974, %v3515
        %v3567 = vadd.f32 %v1975, %v3518
        %v3568 = vadd.f32 %v1976, %v3520
        %v3569 = vadd.f32 %v1977, %v3523
        %v3570 = vadd.f32 %v1978, %v3525
        %v3571 = vadd.f32 %v1979, %v3528
        %v3572 = vadd.f32 %v1980, %v3530
        %v3573 = vadd.f32 %v1981, %v3533
        %v3574 = vadd.f32 %v1982, %v3535
        %v3575 = vadd.f32 %v1983, %v3538
        %v3576 = vadd.f32 %v1984, %v3540
        %v3577 = vadd.f32 %v1985, %v3543
        %v3578 = vadd.f32 %v1986, %v3545
        %v3579 = vmax.f32 %v3547, 0.0
        %v3580 = vmax.f32 %v3548, 0.0
        %v3581 = vmax.f32 %v3549, 0.0
        %v3582 = vmax.f32 %v3550, 0.0
        %v3583 = vmax.f32 %v3551, 0.0
        %v3584 = vmax.f32 %v3552, 0.0
        %v3585 = vmax.f32 %v3553, 0.0
        %v3586 = vmax.f32 %v3554, 0.0
        %v3587 = vmax.f32 %v3555, 0.0
        %v3588 = vmax.f32 %v3556, 0.0
        %v3589 = vmax.f32 %v3557, 0.0
        %v3590 = vmax.f32 %v3558, 0.0
        %v3591 = vmax.f32 %v3559, 0.0
        %v3592 = vmax.f32 %v3560, 0.0
        %v3593 = vmax.f32 %v3561, 0.0
        %v3594 = vmax.f32 %v3562, 0.0
        %v3595 = vmax.f32 %v3563, 0.0
        %v3596 = vmax.f32 %v3564, 0.0
        %v3597 = vmax.f32 %v3565, 0.0
        %v3598 = vmax.f32 %v3566, 0.0
        %v3599 = vmax.f32 %v3567, 0.0
        %v3600 = vmax.f32 %v3568, 0.0
        %v3601 = vmax.f32 %v3569, 0.0
        %v3602 = vmax.f32 %v3570, 0.0
        %v3603 = vmax.f32 %v3571, 0.0
        %v3604 = vmax.f32 %v3572, 0.0
        %v3605 = vmax.f32 %v3573, 0.0
        %v3606 = vmax.f32 %v3574, 0.0
        %v3607 = vmax.f32 %v3575, 0.0
        %v3608 = vmax.f32 %v3576, 0.0
        %v3609 = vmax.f32 %v3577, 0.0
        %v3610 = vmax.f32 %v3578, 0.0
        %vm3611 = vcmp.ne.f32.partialorder %v3547, %v3547
        %vm3612 = vcmp.ne.f32.partialorder %v3548, %v3548
        %vm3613 = vcmp.ne.f32.partialorder %v3549, %v3549
        %vm3614 = vcmp.ne.f32.partialorder %v3550, %v3550
        %vm3615 = vcmp.ne.f32.partialorder %v3551, %v3551
        %vm3616 = vcmp.ne.f32.partialorder %v3552, %v3552
        %vm3617 = vcmp.ne.f32.partialorder %v3553, %v3553
        %vm3618 = vcmp.ne.f32.partialorder %v3554, %v3554
        %vm3619 = vcmp.ne.f32.partialorder %v3555, %v3555
        %vm3620 = vcmp.ne.f32.partialorder %v3556, %v3556
        %vm3621 = vcmp.ne.f32.partialorder %v3557, %v3557
        %vm3622 = vcmp.ne.f32.partialorder %v3558, %v3558
        %vm3623 = vcmp.ne.f32.partialorder %v3559, %v3559
        %vm3624 = vcmp.ne.f32.partialorder %v3560, %v3560
        %vm3625 = vcmp.ne.f32.partialorder %v3561, %v3561
        %vm3626 = vcmp.ne.f32.partialorder %v3562, %v3562
        %vm3627 = vcmp.ne.f32.partialorder %v3563, %v3563
        %vm3628 = vcmp.ne.f32.partialorder %v3564, %v3564
        %vm3629 = vcmp.ne.f32.partialorder %v3565, %v3565
        %vm3630 = vcmp.ne.f32.partialorder %v3566, %v3566
        %vm3631 = vcmp.ne.f32.partialorder %v3567, %v3567
        %vm3632 = vcmp.ne.f32.partialorder %v3568, %v3568
        %vm3633 = vcmp.ne.f32.partialorder %v3569, %v3569
        %vm3634 = vcmp.ne.f32.partialorder %v3570, %v3570
        %vm3635 = vcmp.ne.f32.partialorder %v3571, %v3571
        %vm3636 = vcmp.ne.f32.partialorder %v3572, %v3572
        %vm3637 = vcmp.ne.f32.partialorder %v3573, %v3573
        %vm3638 = vcmp.ne.f32.partialorder %v3574, %v3574
        %vm3639 = vcmp.ne.f32.partialorder %v3575, %v3575
        %vm3640 = vcmp.ne.f32.partialorder %v3576, %v3576
        %vm3641 = vcmp.ne.f32.partialorder %v3577, %v3577
        %vm3642 = vcmp.ne.f32.partialorder %v3578, %v3578
        %v3643 = vadd.f32 %v3547, 0.0
        %v3644 = vadd.f32 %v3548, 0.0
        %v3645 = vadd.f32 %v3549, 0.0
        %v3646 = vadd.f32 %v3550, 0.0
        %v3647 = vadd.f32 %v3551, 0.0
        %v3648 = vadd.f32 %v3552, 0.0
        %v3649 = vadd.f32 %v3553, 0.0
        %v3650 = vadd.f32 %v3554, 0.0
        %v3651 = vadd.f32 %v3555, 0.0
        %v3652 = vadd.f32 %v3556, 0.0
        %v3653 = vadd.f32 %v3557, 0.0
        %v3654 = vadd.f32 %v3558, 0.0
        %v3655 = vadd.f32 %v3559, 0.0
        %v3656 = vadd.f32 %v3560, 0.0
        %v3657 = vadd.f32 %v3561, 0.0
        %v3658 = vadd.f32 %v3562, 0.0
        %v3659 = vadd.f32 %v3563, 0.0
        %v3660 = vadd.f32 %v3564, 0.0
        %v3661 = vadd.f32 %v3565, 0.0
        %v3662 = vadd.f32 %v3566, 0.0
        %v3663 = vadd.f32 %v3567, 0.0
        %v3664 = vadd.f32 %v3568, 0.0
        %v3665 = vadd.f32 %v3569, 0.0
        %v3666 = vadd.f32 %v3570, 0.0
        %v3667 = vadd.f32 %v3571, 0.0
        %v3668 = vadd.f32 %v3572, 0.0
        %v3669 = vadd.f32 %v3573, 0.0
        %v3670 = vadd.f32 %v3574, 0.0
        %v3671 = vadd.f32 %v3575, 0.0
        %v3672 = vadd.f32 %v3576, 0.0
        %v3673 = vadd.f32 %v3577, 0.0
        %v3674 = vadd.f32 %v3578, 0.0
        %v3675 = vand.u32 2147483647, %v3547
        %v3676 = vand.u32 2147483647, %v3548
        %v3677 = vand.u32 2147483647, %v3549
        %v3678 = vand.u32 2147483647, %v3550
        %v3679 = vand.u32 2147483647, %v3551
        %v3680 = vand.u32 2147483647, %v3552
        %v3681 = vand.u32 2147483647, %v3553
        %v3682 = vand.u32 2147483647, %v3554
        %v3683 = vand.u32 2147483647, %v3555
        %v3684 = vand.u32 2147483647, %v3556
        %v3685 = vand.u32 2147483647, %v3557
        %v3686 = vand.u32 2147483647, %v3558
        %v3687 = vand.u32 2147483647, %v3559
        %v3688 = vand.u32 2147483647, %v3560
        %v3689 = vand.u32 2147483647, %v3561
        %v3690 = vand.u32 2147483647, %v3562
        %v3691 = vand.u32 2147483647, %v3563
        %v3692 = vand.u32 2147483647, %v3564
        %v3693 = vand.u32 2147483647, %v3565
        %v3694 = vand.u32 2147483647, %v3566
        %v3695 = vand.u32 2147483647, %v3567
        %v3696 = vand.u32 2147483647, %v3568
        %v3697 = vand.u32 2147483647, %v3569
        %v3698 = vand.u32 2147483647, %v3570
        %v3699 = vand.u32 2147483647, %v3571
        %v3700 = vand.u32 2147483647, %v3572
        %v3701 = vand.u32 2147483647, %v3573
        %v3702 = vand.u32 2147483647, %v3574
        %v3703 = vand.u32 2147483647, %v3575
        %v3704 = vand.u32 2147483647, %v3576
        %v3705 = vand.u32 2147483647, %v3577
        %v3706 = vand.u32 2147483647, %v3578
        %v3707 = vsub.f32 0.0, %v3675
        %v3708 = vsub.f32 0.0, %v3676
        %v3709 = vsub.f32 0.0, %v3677
        %v3710 = vsub.f32 0.0, %v3678
        %v3711 = vsub.f32 0.0, %v3679
        %v3712 = vsub.f32 0.0, %v3680
        %v3713 = vsub.f32 0.0, %v3681
        %v3714 = vsub.f32 0.0, %v3682
        %v3715 = vsub.f32 0.0, %v3683
        %v3716 = vsub.f32 0.0, %v3684
        %v3717 = vsub.f32 0.0, %v3685
        %v3718 = vsub.f32 0.0, %v3686
        %v3719 = vsub.f32 0.0, %v3687
        %v3720 = vsub.f32 0.0, %v3688
        %v3721 = vsub.f32 0.0, %v3689
        %v3722 = vsub.f32 0.0, %v3690
        %v3723 = vsub.f32 0.0, %v3691
        %v3724 = vsub.f32 0.0, %v3692
        %v3725 = vsub.f32 0.0, %v3693
        %v3726 = vsub.f32 0.0, %v3694
        %v3727 = vsub.f32 0.0, %v3695
        %v3728 = vsub.f32 0.0, %v3696
        %v3729 = vsub.f32 0.0, %v3697
        %v3730 = vsub.f32 0.0, %v3698
        %v3731 = vsub.f32 0.0, %v3699
        %v3732 = vsub.f32 0.0, %v3700
        %v3733 = vsub.f32 0.0, %v3701
        %v3734 = vsub.f32 0.0, %v3702
        %v3735 = vsub.f32 0.0, %v3703
        %v3736 = vsub.f32 0.0, %v3704
        %v3737 = vsub.f32 0.0, %v3705
        %v3738 = vsub.f32 0.0, %v3706
        %v3739 = vmul.f32 %v3707, 1.442695
        %v3740 = vpow.pop %v3739
        %v3741 = vmul.f32 %v3708, 1.442695
        %v3742 = vpow.pop %v3741
        %v3743 = vmul.f32 %v3709, 1.442695
        %v3744 = vpow.pop %v3743
        %v3745 = vmul.f32 %v3710, 1.442695
        %v3746 = vpow.pop %v3745
        %v3747 = vmul.f32 %v3711, 1.442695
        %v3748 = vpow.pop %v3747
        %v3749 = vmul.f32 %v3712, 1.442695
        %v3750 = vpow.pop %v3749
        %v3751 = vmul.f32 %v3713, 1.442695
        %v3752 = vpow.pop %v3751
        %v3753 = vmul.f32 %v3714, 1.442695
        %v3754 = vpow.pop %v3753
        %v3755 = vmul.f32 %v3715, 1.442695
        %v3756 = vpow.pop %v3755
        %v3757 = vmul.f32 %v3716, 1.442695
        %v3758 = vpow.pop %v3757
        %v3759 = vmul.f32 %v3717, 1.442695
        %v3760 = vpow.pop %v3759
        %v3761 = vmul.f32 %v3718, 1.442695
        %v3762 = vpow.pop %v3761
        %v3763 = vmul.f32 %v3719, 1.442695
        %v3764 = vpow.pop %v3763
        %v3765 = vmul.f32 %v3720, 1.442695
        %v3766 = vpow.pop %v3765
        %v3767 = vmul.f32 %v3721, 1.442695
        %v3768 = vpow.pop %v3767
        %v3769 = vmul.f32 %v3722, 1.442695
        %v3770 = vpow.pop %v3769
        %v3771 = vmul.f32 %v3723, 1.442695
        %v3772 = vpow.pop %v3771
        %v3773 = vmul.f32 %v3724, 1.442695
        %v3774 = vpow.pop %v3773
        %v3775 = vmul.f32 %v3725, 1.442695
        %v3776 = vpow.pop %v3775
        %v3777 = vmul.f32 %v3726, 1.442695
        %v3778 = vpow.pop %v3777
        %v3779 = vmul.f32 %v3727, 1.442695
        %v3780 = vpow.pop %v3779
        %v3781 = vmul.f32 %v3728, 1.442695
        %v3782 = vpow.pop %v3781
        %v3783 = vmul.f32 %v3729, 1.442695
        %v3784 = vpow.pop %v3783
        %v3785 = vmul.f32 %v3730, 1.442695
        %v3786 = vpow.pop %v3785
        %v3787 = vmul.f32 %v3731, 1.442695
        %v3788 = vpow.pop %v3787
        %v3789 = vmul.f32 %v3732, 1.442695
        %v3790 = vpow.pop %v3789
        %v3791 = vmul.f32 %v3733, 1.442695
        %v3792 = vpow.pop %v3791
        %v3793 = vmul.f32 %v3734, 1.442695
        %v3794 = vpow.pop %v3793
        %v3795 = vmul.f32 %v3735, 1.442695
        %v3796 = vpow.pop %v3795
        %v3797 = vmul.f32 %v3736, 1.442695
        %v3798 = vpow.pop %v3797
        %v3799 = vmul.f32 %v3737, 1.442695
        %v3800 = vpow.pop %v3799
        %v3801 = vmul.f32 %v3738, 1.442695
        %v3802 = vpow.pop %v3801
        %v3803 = vadd.f32 %v3740, 1.0
        %v3804 = vlog2.pop %v3803
        %v3805 = vmul.f32 %v3804, 0.6931472
        %v3806 = vmul.f32 -0.5, %v3740
        %v3807 = vadd.f32 %v3806, 1.0
        %v3808 = vmul.f32 %v3807, %v3740
        %v3809 = vand.u32 2147483647, %v3740
        %vm3810 = vcmp.lt.f32.partialorder %v3809, 0.0004427343
        %v3811 = vsel %vm3810, %v3808, %v3805
        %v3812 = vadd.f32 %v3742, 1.0
        %v3813 = vlog2.pop %v3812
        %v3814 = vmul.f32 %v3813, 0.6931472
        %v3815 = vmul.f32 -0.5, %v3742
        %v3816 = vadd.f32 %v3815, 1.0
        %v3817 = vmul.f32 %v3816, %v3742
        %v3818 = vand.u32 2147483647, %v3742
        %vm3819 = vcmp.lt.f32.partialorder %v3818, 0.0004427343
        %v3820 = vsel %vm3819, %v3817, %v3814
        %v3821 = vadd.f32 %v3744, 1.0
        %v3822 = vlog2.pop %v3821
        %v3823 = vmul.f32 %v3822, 0.6931472
        %v3824 = vmul.f32 -0.5, %v3744
        %v3825 = vadd.f32 %v3824, 1.0
        %v3826 = vmul.f32 %v3825, %v3744
        %v3827 = vand.u32 2147483647, %v3744
        %vm3828 = vcmp.lt.f32.partialorder %v3827, 0.0004427343
        %v3829 = vsel %vm3828, %v3826, %v3823
        %v3830 = vadd.f32 %v3746, 1.0
        %v3831 = vlog2.pop %v3830
        %v3832 = vmul.f32 %v3831, 0.6931472
        %v3833 = vmul.f32 -0.5, %v3746
        %v3834 = vadd.f32 %v3833, 1.0
        %v3835 = vmul.f32 %v3834, %v3746
        %v3836 = vand.u32 2147483647, %v3746
        %vm3837 = vcmp.lt.f32.partialorder %v3836, 0.0004427343
        %v3838 = vsel %vm3837, %v3835, %v3832
        %v3839 = vadd.f32 %v3748, 1.0
        %v3840 = vlog2.pop %v3839
        %v3841 = vmul.f32 %v3840, 0.6931472
        %v3842 = vmul.f32 -0.5, %v3748
        %v3843 = vadd.f32 %v3842, 1.0
        %v3844 = vmul.f32 %v3843, %v3748
        %v3845 = vand.u32 2147483647, %v3748
        %vm3846 = vcmp.lt.f32.partialorder %v3845, 0.0004427343
        %v3847 = vsel %vm3846, %v3844, %v3841
        %v3848 = vadd.f32 %v3750, 1.0
        %v3849 = vlog2.pop %v3848
        %v3850 = vmul.f32 %v3849, 0.6931472
        %v3851 = vmul.f32 -0.5, %v3750
        %v3852 = vadd.f32 %v3851, 1.0
        %v3853 = vmul.f32 %v3852, %v3750
        %v3854 = vand.u32 2147483647, %v3750
        %vm3855 = vcmp.lt.f32.partialorder %v3854, 0.0004427343
        %v3856 = vsel %vm3855, %v3853, %v3850
        %v3857 = vadd.f32 %v3752, 1.0
        %v3858 = vlog2.pop %v3857
        %v3859 = vmul.f32 %v3858, 0.6931472
        %v3860 = vmul.f32 -0.5, %v3752
        %v3861 = vadd.f32 %v3860, 1.0
        %v3862 = vmul.f32 %v3861, %v3752
        %v3863 = vand.u32 2147483647, %v3752
        %vm3864 = vcmp.lt.f32.partialorder %v3863, 0.0004427343
        %v3865 = vsel %vm3864, %v3862, %v3859
        %v3866 = vadd.f32 %v3754, 1.0
        %v3867 = vlog2.pop %v3866
        %v3868 = vmul.f32 %v3867, 0.6931472
        %v3869 = vmul.f32 -0.5, %v3754
        %v3870 = vadd.f32 %v3869, 1.0
        %v3871 = vmul.f32 %v3870, %v3754
        %v3872 = vand.u32 2147483647, %v3754
        %vm3873 = vcmp.lt.f32.partialorder %v3872, 0.0004427343
        %v3874 = vsel %vm3873, %v3871, %v3868
        %v3875 = vadd.f32 %v3756, 1.0
        %v3876 = vlog2.pop %v3875
        %v3877 = vmul.f32 %v3876, 0.6931472
        %v3878 = vmul.f32 -0.5, %v3756
        %v3879 = vadd.f32 %v3878, 1.0
        %v3880 = vmul.f32 %v3879, %v3756
        %v3881 = vand.u32 2147483647, %v3756
        %vm3882 = vcmp.lt.f32.partialorder %v3881, 0.0004427343
        %v3883 = vsel %vm3882, %v3880, %v3877
        %v3884 = vadd.f32 %v3758, 1.0
        %v3885 = vlog2.pop %v3884
        %v3886 = vmul.f32 %v3885, 0.6931472
        %v3887 = vmul.f32 -0.5, %v3758
        %v3888 = vadd.f32 %v3887, 1.0
        %v3889 = vmul.f32 %v3888, %v3758
        %v3890 = vand.u32 2147483647, %v3758
        %vm3891 = vcmp.lt.f32.partialorder %v3890, 0.0004427343
        %v3892 = vsel %vm3891, %v3889, %v3886
        %v3893 = vadd.f32 %v3760, 1.0
        %v3894 = vlog2.pop %v3893
        %v3895 = vmul.f32 %v3894, 0.6931472
        %v3896 = vmul.f32 -0.5, %v3760
        %v3897 = vadd.f32 %v3896, 1.0
        %v3898 = vmul.f32 %v3897, %v3760
        %v3899 = vand.u32 2147483647, %v3760
        %vm3900 = vcmp.lt.f32.partialorder %v3899, 0.0004427343
        %v3901 = vsel %vm3900, %v3898, %v3895
        %v3902 = vadd.f32 %v3762, 1.0
        %v3903 = vlog2.pop %v3902
        %v3904 = vmul.f32 %v3903, 0.6931472
        %v3905 = vmul.f32 -0.5, %v3762
        %v3906 = vadd.f32 %v3905, 1.0
        %v3907 = vmul.f32 %v3906, %v3762
        %v3908 = vand.u32 2147483647, %v3762
        %vm3909 = vcmp.lt.f32.partialorder %v3908, 0.0004427343
        %v3910 = vsel %vm3909, %v3907, %v3904
        %v3911 = vadd.f32 %v3764, 1.0
        %v3912 = vlog2.pop %v3911
        %v3913 = vmul.f32 %v3912, 0.6931472
        %v3914 = vmul.f32 -0.5, %v3764
        %v3915 = vadd.f32 %v3914, 1.0
        %v3916 = vmul.f32 %v3915, %v3764
        %v3917 = vand.u32 2147483647, %v3764
        %vm3918 = vcmp.lt.f32.partialorder %v3917, 0.0004427343
        %v3919 = vsel %vm3918, %v3916, %v3913
        %v3920 = vadd.f32 %v3766, 1.0
        %v3921 = vlog2.pop %v3920
        %v3922 = vmul.f32 %v3921, 0.6931472
        %v3923 = vmul.f32 -0.5, %v3766
        %v3924 = vadd.f32 %v3923, 1.0
        %v3925 = vmul.f32 %v3924, %v3766
        %v3926 = vand.u32 2147483647, %v3766
        %vm3927 = vcmp.lt.f32.partialorder %v3926, 0.0004427343
        %v3928 = vsel %vm3927, %v3925, %v3922
        %v3929 = vadd.f32 %v3768, 1.0
        %v3930 = vlog2.pop %v3929
        %v3931 = vmul.f32 %v3930, 0.6931472
        %v3932 = vmul.f32 -0.5, %v3768
        %v3933 = vadd.f32 %v3932, 1.0
        %v3934 = vmul.f32 %v3933, %v3768
        %v3935 = vand.u32 2147483647, %v3768
        %vm3936 = vcmp.lt.f32.partialorder %v3935, 0.0004427343
        %v3937 = vsel %vm3936, %v3934, %v3931
        %v3938 = vadd.f32 %v3770, 1.0
        %v3939 = vlog2.pop %v3938
        %v3940 = vmul.f32 %v3939, 0.6931472
        %v3941 = vmul.f32 -0.5, %v3770
        %v3942 = vadd.f32 %v3941, 1.0
        %v3943 = vmul.f32 %v3942, %v3770
        %v3944 = vand.u32 2147483647, %v3770
        %vm3945 = vcmp.lt.f32.partialorder %v3944, 0.0004427343
        %v3946 = vsel %vm3945, %v3943, %v3940
        %v3947 = vadd.f32 %v3772, 1.0
        %v3948 = vlog2.pop %v3947
        %v3949 = vmul.f32 %v3948, 0.6931472
        %v3950 = vmul.f32 -0.5, %v3772
        %v3951 = vadd.f32 %v3950, 1.0
        %v3952 = vmul.f32 %v3951, %v3772
        %v3953 = vand.u32 2147483647, %v3772
        %vm3954 = vcmp.lt.f32.partialorder %v3953, 0.0004427343
        %v3955 = vsel %vm3954, %v3952, %v3949
        %v3956 = vadd.f32 %v3774, 1.0
        %v3957 = vlog2.pop %v3956
        %v3958 = vmul.f32 %v3957, 0.6931472
        %v3959 = vmul.f32 -0.5, %v3774
        %v3960 = vadd.f32 %v3959, 1.0
        %v3961 = vmul.f32 %v3960, %v3774
        %v3962 = vand.u32 2147483647, %v3774
        %vm3963 = vcmp.lt.f32.partialorder %v3962, 0.0004427343
        %v3964 = vsel %vm3963, %v3961, %v3958
        %v3965 = vadd.f32 %v3776, 1.0
        %v3966 = vlog2.pop %v3965
        %v3967 = vmul.f32 %v3966, 0.6931472
        %v3968 = vmul.f32 -0.5, %v3776
        %v3969 = vadd.f32 %v3968, 1.0
        %v3970 = vmul.f32 %v3969, %v3776
        %v3971 = vand.u32 2147483647, %v3776
        %vm3972 = vcmp.lt.f32.partialorder %v3971, 0.0004427343
        %v3973 = vsel %vm3972, %v3970, %v3967
        %v3974 = vadd.f32 %v3778, 1.0
        %v3975 = vlog2.pop %v3974
        %v3976 = vmul.f32 %v3975, 0.6931472
        %v3977 = vmul.f32 -0.5, %v3778
        %v3978 = vadd.f32 %v3977, 1.0
        %v3979 = vmul.f32 %v3978, %v3778
        %v3980 = vand.u32 2147483647, %v3778
        %vm3981 = vcmp.lt.f32.partialorder %v3980, 0.0004427343
        %v3982 = vsel %vm3981, %v3979, %v3976
        %v3983 = vadd.f32 %v3780, 1.0
        %v3984 = vlog2.pop %v3983
        %v3985 = vmul.f32 %v3984, 0.6931472
        %v3986 = vmul.f32 -0.5, %v3780
        %v3987 = vadd.f32 %v3986, 1.0
        %v3988 = vmul.f32 %v3987, %v3780
        %v3989 = vand.u32 2147483647, %v3780
        %vm3990 = vcmp.lt.f32.partialorder %v3989, 0.0004427343
        %v3991 = vsel %vm3990, %v3988, %v3985
        %v3992 = vadd.f32 %v3782, 1.0
        %v3993 = vlog2.pop %v3992
        %v3994 = vmul.f32 %v3993, 0.6931472
        %v3995 = vmul.f32 -0.5, %v3782
        %v3996 = vadd.f32 %v3995, 1.0
        %v3997 = vmul.f32 %v3996, %v3782
        %v3998 = vand.u32 2147483647, %v3782
        %vm3999 = vcmp.lt.f32.partialorder %v3998, 0.0004427343
        %v4000 = vsel %vm3999, %v3997, %v3994
        %v4001 = vadd.f32 %v3784, 1.0
        %v4002 = vlog2.pop %v4001
        %v4003 = vmul.f32 %v4002, 0.6931472
        %v4004 = vmul.f32 -0.5, %v3784
        %v4005 = vadd.f32 %v4004, 1.0
        %v4006 = vmul.f32 %v4005, %v3784
        %v4007 = vand.u32 2147483647, %v3784
        %vm4008 = vcmp.lt.f32.partialorder %v4007, 0.0004427343
        %v4009 = vsel %vm4008, %v4006, %v4003
        %v4010 = vadd.f32 %v3786, 1.0
        %v4011 = vlog2.pop %v4010
        %v4012 = vmul.f32 %v4011, 0.6931472
        %v4013 = vmul.f32 -0.5, %v3786
        %v4014 = vadd.f32 %v4013, 1.0
        %v4015 = vmul.f32 %v4014, %v3786
        %v4016 = vand.u32 2147483647, %v3786
        %vm4017 = vcmp.lt.f32.partialorder %v4016, 0.0004427343
        %v4018 = vsel %vm4017, %v4015, %v4012
        %v4019 = vadd.f32 %v3788, 1.0
        %v4020 = vlog2.pop %v4019
        %v4021 = vmul.f32 %v4020, 0.6931472
        %v4022 = vmul.f32 -0.5, %v3788
        %v4023 = vadd.f32 %v4022, 1.0
        %v4024 = vmul.f32 %v4023, %v3788
        %v4025 = vand.u32 2147483647, %v3788
        %vm4026 = vcmp.lt.f32.partialorder %v4025, 0.0004427343
        %v4027 = vsel %vm4026, %v4024, %v4021
        %v4028 = vadd.f32 %v3790, 1.0
        %v4029 = vlog2.pop %v4028
        %v4030 = vmul.f32 %v4029, 0.6931472
        %v4031 = vmul.f32 -0.5, %v3790
        %v4032 = vadd.f32 %v4031, 1.0
        %v4033 = vmul.f32 %v4032, %v3790
        %v4034 = vand.u32 2147483647, %v3790
        %vm4035 = vcmp.lt.f32.partialorder %v4034, 0.0004427343
        %v4036 = vsel %vm4035, %v4033, %v4030
        %v4037 = vadd.f32 %v3792, 1.0
        %v4038 = vlog2.pop %v4037
        %v4039 = vmul.f32 %v4038, 0.6931472
        %v4040 = vmul.f32 -0.5, %v3792
        %v4041 = vadd.f32 %v4040, 1.0
        %v4042 = vmul.f32 %v4041, %v3792
        %v4043 = vand.u32 2147483647, %v3792
        %vm4044 = vcmp.lt.f32.partialorder %v4043, 0.0004427343
        %v4045 = vsel %vm4044, %v4042, %v4039
        %v4046 = vadd.f32 %v3794, 1.0
        %v4047 = vlog2.pop %v4046
        %v4048 = vmul.f32 %v4047, 0.6931472
        %v4049 = vmul.f32 -0.5, %v3794
        %v4050 = vadd.f32 %v4049, 1.0
        %v4051 = vmul.f32 %v4050, %v3794
        %v4052 = vand.u32 2147483647, %v3794
        %vm4053 = vcmp.lt.f32.partialorder %v4052, 0.0004427343
        %v4054 = vsel %vm4053, %v4051, %v4048
        %v4055 = vadd.f32 %v3796, 1.0
        %v4056 = vlog2.pop %v4055
        %v4057 = vmul.f32 %v4056, 0.6931472
        %v4058 = vmul.f32 -0.5, %v3796
        %v4059 = vadd.f32 %v4058, 1.0
        %v4060 = vmul.f32 %v4059, %v3796
        %v4061 = vand.u32 2147483647, %v3796
        %vm4062 = vcmp.lt.f32.partialorder %v4061, 0.0004427343
        %v4063 = vsel %vm4062, %v4060, %v4057
        %v4064 = vadd.f32 %v3798, 1.0
        %v4065 = vlog2.pop %v4064
        %v4066 = vmul.f32 %v4065, 0.6931472
        %v4067 = vmul.f32 -0.5, %v3798
        %v4068 = vadd.f32 %v4067, 1.0
        %v4069 = vmul.f32 %v4068, %v3798
        %v4070 = vand.u32 2147483647, %v3798
        %vm4071 = vcmp.lt.f32.partialorder %v4070, 0.0004427343
        %v4072 = vsel %vm4071, %v4069, %v4066
        %v4073 = vadd.f32 %v3800, 1.0
        %v4074 = vlog2.pop %v4073
        %v4075 = vmul.f32 %v4074, 0.6931472
        %v4076 = vmul.f32 -0.5, %v3800
        %v4077 = vadd.f32 %v4076, 1.0
        %v4078 = vmul.f32 %v4077, %v3800
        %v4079 = vand.u32 2147483647, %v3800
        %vm4080 = vcmp.lt.f32.partialorder %v4079, 0.0004427343
        %v4081 = vsel %vm4080, %v4078, %v4075
        %v4082 = vadd.f32 %v3802, 1.0
        %v4083 = vlog2.pop %v4082
        %v4084 = vmul.f32 %v4083, 0.6931472
        %v4085 = vmul.f32 -0.5, %v3802
        %v4086 = vadd.f32 %v4085, 1.0
        %v4087 = vmul.f32 %v4086, %v3802
        %v4088 = vand.u32 2147483647, %v3802
        %vm4089 = vcmp.lt.f32.partialorder %v4088, 0.0004427343
        %v4090 = vsel %vm4089, %v4087, %v4084
        %v4091 = vadd.f32 %v3579, %v3811
        %v4092 = vadd.f32 %v3580, %v3820
        %v4093 = vadd.f32 %v3581, %v3829
        %v4094 = vadd.f32 %v3582, %v3838
        %v4095 = vadd.f32 %v3583, %v3847
        %v4096 = vadd.f32 %v3584, %v3856
        %v4097 = vadd.f32 %v3585, %v3865
        %v4098 = vadd.f32 %v3586, %v3874
        %v4099 = vadd.f32 %v3587, %v3883
        %v4100 = vadd.f32 %v3588, %v3892
        %v4101 = vadd.f32 %v3589, %v3901
        %v4102 = vadd.f32 %v3590, %v3910
        %v4103 = vadd.f32 %v3591, %v3919
        %v4104 = vadd.f32 %v3592, %v3928
        %v4105 = vadd.f32 %v3593, %v3937
        %v4106 = vadd.f32 %v3594, %v3946
        %v4107 = vadd.f32 %v3595, %v3955
        %v4108 = vadd.f32 %v3596, %v3964
        %v4109 = vadd.f32 %v3597, %v3973
        %v4110 = vadd.f32 %v3598, %v3982
        %v4111 = vadd.f32 %v3599, %v3991
        %v4112 = vadd.f32 %v3600, %v4000
        %v4113 = vadd.f32 %v3601, %v4009
        %v4114 = vadd.f32 %v3602, %v4018
        %v4115 = vadd.f32 %v3603, %v4027
        %v4116 = vadd.f32 %v3604, %v4036
        %v4117 = vadd.f32 %v3605, %v4045
        %v4118 = vadd.f32 %v3606, %v4054
        %v4119 = vadd.f32 %v3607, %v4063
        %v4120 = vadd.f32 %v3608, %v4072
        %v4121 = vadd.f32 %v3609, %v4081
        %v4122 = vadd.f32 %v3610, %v4090
        %v4123 = vsel %vm3611, %v3643, %v4091
        %v4124 = vsel %vm3612, %v3644, %v4092
        %v4125 = vsel %vm3613, %v3645, %v4093
        %v4126 = vsel %vm3614, %v3646, %v4094
        %v4127 = vsel %vm3615, %v3647, %v4095
        %v4128 = vsel %vm3616, %v3648, %v4096
        %v4129 = vsel %vm3617, %v3649, %v4097
        %v4130 = vsel %vm3618, %v3650, %v4098
        %v4131 = vsel %vm3619, %v3651, %v4099
        %v4132 = vsel %vm3620, %v3652, %v4100
        %v4133 = vsel %vm3621, %v3653, %v4101
        %v4134 = vsel %vm3622, %v3654, %v4102
        %v4135 = vsel %vm3623, %v3655, %v4103
        %v4136 = vsel %vm3624, %v3656, %v4104
        %v4137 = vsel %vm3625, %v3657, %v4105
        %v4138 = vsel %vm3626, %v3658, %v4106
        %v4139 = vsel %vm3627, %v3659, %v4107
        %v4140 = vsel %vm3628, %v3660, %v4108
        %v4141 = vsel %vm3629, %v3661, %v4109
        %v4142 = vsel %vm3630, %v3662, %v4110
        %v4143 = vsel %vm3631, %v3663, %v4111
        %v4144 = vsel %vm3632, %v3664, %v4112
        %v4145 = vsel %vm3633, %v3665, %v4113
        %v4146 = vsel %vm3634, %v3666, %v4114
        %v4147 = vsel %vm3635, %v3667, %v4115
        %v4148 = vsel %vm3636, %v3668, %v4116
        %v4149 = vsel %vm3637, %v3669, %v4117
        %v4150 = vsel %vm3638, %v3670, %v4118
        %v4151 = vsel %vm3639, %v3671, %v4119
        %v4152 = vsel %vm3640, %v3672, %v4120
        %v4153 = vsel %vm3641, %v3673, %v4121
        %v4154 = vsel %vm3642, %v3674, %v4122
        %v4155 = vsub.f32 %v4123, 0.6931472
        %v4156 = vsub.f32 %v4124, 0.6931472
        %v4157 = vsub.f32 %v4125, 0.6931472
        %v4158 = vsub.f32 %v4126, 0.6931472
        %v4159 = vsub.f32 %v4127, 0.6931472
        %v4160 = vsub.f32 %v4128, 0.6931472
        %v4161 = vsub.f32 %v4129, 0.6931472
        %v4162 = vsub.f32 %v4130, 0.6931472
        %v4163 = vsub.f32 %v4131, 0.6931472
        %v4164 = vsub.f32 %v4132, 0.6931472
        %v4165 = vsub.f32 %v4133, 0.6931472
        %v4166 = vsub.f32 %v4134, 0.6931472
        %v4167 = vsub.f32 %v4135, 0.6931472
        %v4168 = vsub.f32 %v4136, 0.6931472
        %v4169 = vsub.f32 %v4137, 0.6931472
        %v4170 = vsub.f32 %v4138, 0.6931472
        %v4171 = vsub.f32 %v4139, 0.6931472
        %v4172 = vsub.f32 %v4140, 0.6931472
        %v4173 = vsub.f32 %v4141, 0.6931472
        %v4174 = vsub.f32 %v4142, 0.6931472
        %v4175 = vsub.f32 %v4143, 0.6931472
        %v4176 = vsub.f32 %v4144, 0.6931472
        %v4177 = vsub.f32 %v4145, 0.6931472
        %v4178 = vsub.f32 %v4146, 0.6931472
        %v4179 = vsub.f32 %v4147, 0.6931472
        %v4180 = vsub.f32 %v4148, 0.6931472
        %v4181 = vsub.f32 %v4149, 0.6931472
        %v4182 = vsub.f32 %v4150, 0.6931472
        %v4183 = vsub.f32 %v4151, 0.6931472
        %v4184 = vsub.f32 %v4152, 0.6931472
        %v4185 = vsub.f32 %v4153, 0.6931472
        %v4186 = vsub.f32 %v4154, 0.6931472
        %v4187 = vpack.c.bf16 %v4156, %v4155
        %v4188 = vpack.c.bf16 %v4158, %v4157
        %v4189 = vpack.c.bf16 %v4160, %v4159
        %v4190 = vpack.c.bf16 %v4162, %v4161
        %v4191 = vpack.c.bf16 %v4164, %v4163
        %v4192 = vpack.c.bf16 %v4166, %v4165
        %v4193 = vpack.c.bf16 %v4168, %v4167
        %v4194 = vpack.c.bf16 %v4170, %v4169
        %v4195 = vpack.c.bf16 %v4172, %v4171
        %v4196 = vpack.c.bf16 %v4174, %v4173
        %v4197 = vpack.c.bf16 %v4176, %v4175
        %v4198 = vpack.c.bf16 %v4178, %v4177
        %v4199 = vpack.c.bf16 %v4180, %v4179
        %v4200 = vpack.c.bf16 %v4182, %v4181
        %v4201 = vpack.c.bf16 %v4184, %v4183
        %v4202 = vpack.c.bf16 %v4186, %v4185
        %v4203 = vld [vmem:[#allocation10] sm:$0xf]
        %v4204 = vld [vmem:[#allocation10 + $0x4] sm:$0xf]
        %v4205 = vld [vmem:[#allocation10 + $0x8] sm:$0xf]
        %v4206 = vld [vmem:[#allocation10 + $0xc] sm:$0xf]
        %v4207 = vld [vmem:[#allocation10 + $0x10] sm:$0xf]
        %v4208 = vld [vmem:[#allocation10 + $0x14] sm:$0xf]
        %v4209 = vld [vmem:[#allocation10 + $0x18] sm:$0xf]
        %v4210 = vld [vmem:[#allocation10 + $0x1c] sm:$0xf]
        %v4211 = vld [vmem:[#allocation10 + $0x20] sm:$0xf]
        %v4212 = vld [vmem:[#allocation10 + $0x24] sm:$0xf]
        %v4213 = vld [vmem:[#allocation10 + $0x28] sm:$0xf]
        %v4214 = vld [vmem:[#allocation10 + $0x2c] sm:$0xf]
        %v4215 = vld [vmem:[#allocation10 + $0x30] sm:$0xf]
        %v4216 = vld [vmem:[#allocation10 + $0x34] sm:$0xf]
        %v4217 = vld [vmem:[#allocation10 + $0x38] sm:$0xf]
        %v4218 = vld [vmem:[#allocation10 + $0x3c] sm:$0xf]
        %v4219 = vld [vmem:[%s6] sm:$0x1]
        %v4221 = vperm.slane %v4219, 0
        %v4239 = vunpack.c.l.b16 %v4203
        %v4240 = vunpack.c.l.b16 %v4204
        %v4241 = vunpack.c.l.b16 %v4205
        %v4242 = vunpack.c.l.b16 %v4206
        %v4243 = vunpack.c.l.b16 %v4207
        %v4244 = vunpack.c.l.b16 %v4208
        %v4245 = vunpack.c.l.b16 %v4209
        %v4246 = vunpack.c.l.b16 %v4210
        %v4247 = vunpack.c.l.b16 %v4211
        %v4248 = vunpack.c.l.b16 %v4212
        %v4249 = vunpack.c.l.b16 %v4213
        %v4250 = vunpack.c.l.b16 %v4214
        %v4251 = vunpack.c.l.b16 %v4215
        %v4252 = vunpack.c.l.b16 %v4216
        %v4253 = vunpack.c.l.b16 %v4217
        %v4254 = vunpack.c.l.b16 %v4218
        %v4255 = vpack.c.b16 %v4240, %v4239
        %v4256 = vpack.c.b16 %v4242, %v4241
        %v4257 = vpack.c.b16 %v4244, %v4243
        %v4258 = vpack.c.b16 %v4246, %v4245
        %v4259 = vpack.c.b16 %v4248, %v4247
        %v4260 = vpack.c.b16 %v4250, %v4249
        %v4261 = vpack.c.b16 %v4252, %v4251
        %v4262 = vpack.c.b16 %v4254, %v4253
        %4271 = vmatpush.bf16.msra.mxu0 %v4262
        %4272 = vmatpush.bf16.msra.mxu0 %v4261
        %4273 = vmatpush.bf16.msra.mxu0 %v4260
        %4274 = vmatpush.bf16.msra.mxu0 %v4259
        %4275 = vmatpush.bf16.msra.mxu0 %v4258
        %4276 = vmatpush.bf16.msra.mxu0 %v4257
        %4277 = vmatpush.bf16.msra.mxu0 %v4256
        %4278 = vmatpush.bf16.msra.mxu0 %v4255
        %4279 = vmatmul.bf16.gmra.mxu0 %v4187
        %v4280 = vpop.f32.mrf.mxu0
        %v4281 = vadd.f32 %v4221, %v4280
        %v4282 = vpop.f32.mrf.mxu0
        %v4283 = vadd.f32 %v4221, %v4282
        %4284 = vmatmul.bf16.gmra.mxu0 %v4188
        %v4285 = vpop.f32.mrf.mxu0
        %v4286 = vadd.f32 %v4221, %v4285
        %v4287 = vpop.f32.mrf.mxu0
        %v4288 = vadd.f32 %v4221, %v4287
        %4289 = vmatmul.bf16.gmra.mxu0 %v4189
        %v4290 = vpop.f32.mrf.mxu0
        %v4291 = vadd.f32 %v4221, %v4290
        %v4292 = vpop.f32.mrf.mxu0
        %v4293 = vadd.f32 %v4221, %v4292
        %4294 = vmatmul.bf16.gmra.mxu0 %v4190
        %v4295 = vpop.f32.mrf.mxu0
        %v4296 = vadd.f32 %v4221, %v4295
        %v4297 = vpop.f32.mrf.mxu0
        %v4298 = vadd.f32 %v4221, %v4297
        %4299 = vmatmul.bf16.gmra.mxu0 %v4191
        %v4300 = vpop.f32.mrf.mxu0
        %v4301 = vadd.f32 %v4221, %v4300
        %v4302 = vpop.f32.mrf.mxu0
        %v4303 = vadd.f32 %v4221, %v4302
        %4304 = vmatmul.bf16.gmra.mxu0 %v4192
        %v4305 = vpop.f32.mrf.mxu0
        %v4306 = vadd.f32 %v4221, %v4305
        %v4307 = vpop.f32.mrf.mxu0
        %v4308 = vadd.f32 %v4221, %v4307
        %4309 = vmatmul.bf16.gmra.mxu0 %v4193
        %v4310 = vpop.f32.mrf.mxu0
        %v4311 = vadd.f32 %v4221, %v4310
        %v4312 = vpop.f32.mrf.mxu0
        %v4313 = vadd.f32 %v4221, %v4312
        %4314 = vmatmul.bf16.gmra.mxu0 %v4194
        %v4315 = vpop.f32.mrf.mxu0
        %v4316 = vadd.f32 %v4221, %v4315
        %v4317 = vpop.f32.mrf.mxu0
        %v4318 = vadd.f32 %v4221, %v4317
        %4319 = vmatmul.bf16.gmra.mxu0 %v4195
        %v4320 = vpop.f32.mrf.mxu0
        %v4321 = vadd.f32 %v4221, %v4320
        %v4322 = vpop.f32.mrf.mxu0
        %v4323 = vadd.f32 %v4221, %v4322
        %4324 = vmatmul.bf16.gmra.mxu0 %v4196
        %v4325 = vpop.f32.mrf.mxu0
        %v4326 = vadd.f32 %v4221, %v4325
        %v4327 = vpop.f32.mrf.mxu0
        %v4328 = vadd.f32 %v4221, %v4327
        %4329 = vmatmul.bf16.gmra.mxu0 %v4197
        %v4330 = vpop.f32.mrf.mxu0
        %v4331 = vadd.f32 %v4221, %v4330
        %v4332 = vpop.f32.mrf.mxu0
        %v4333 = vadd.f32 %v4221, %v4332
        %4334 = vmatmul.bf16.gmra.mxu0 %v4198
        %v4335 = vpop.f32.mrf.mxu0
        %v4336 = vadd.f32 %v4221, %v4335
        %v4337 = vpop.f32.mrf.mxu0
        %v4338 = vadd.f32 %v4221, %v4337
        %4339 = vmatmul.bf16.gmra.mxu0 %v4199
        %v4340 = vpop.f32.mrf.mxu0
        %v4341 = vadd.f32 %v4221, %v4340
        %v4342 = vpop.f32.mrf.mxu0
        %v4343 = vadd.f32 %v4221, %v4342
        %4344 = vmatmul.bf16.gmra.mxu0 %v4200
        %v4345 = vpop.f32.mrf.mxu0
        %v4346 = vadd.f32 %v4221, %v4345
        %v4347 = vpop.f32.mrf.mxu0
        %v4348 = vadd.f32 %v4221, %v4347
        %4349 = vmatmul.bf16.gmra.mxu0 %v4201
        %v4350 = vpop.f32.mrf.mxu0
        %v4351 = vadd.f32 %v4221, %v4350
        %v4352 = vpop.f32.mrf.mxu0
        %v4353 = vadd.f32 %v4221, %v4352
        %4354 = vmatmul.bf16.gmra.mxu0 %v4202
        %v4355 = vpop.f32.mrf.mxu0
        %v4356 = vadd.f32 %v4221, %v4355
        %v4357 = vpop.f32.mrf.mxu0
        %v4358 = vadd.f32 %v4221, %v4357
        %4359 = vdwg.mxu0
        %4360 = vst [vmem:[%s362] sm:$0xff] %v4281
        %4361 = vst [vmem:[%s362 + $0x8] sm:$0xff] %v4283
        %4362 = vst [vmem:[%s362 + $0x10] sm:$0xff] %v4286
        %4363 = vst [vmem:[%s362 + $0x18] sm:$0xff] %v4288
        %4364 = vst [vmem:[%s362 + $0x20] sm:$0xff] %v4291
        %4365 = vst [vmem:[%s362 + $0x28] sm:$0xff] %v4293
        %4366 = vst [vmem:[%s362 + $0x30] sm:$0xff] %v4296
        %4367 = vst [vmem:[%s362 + $0x38] sm:$0xff] %v4298
        %4368 = vst [vmem:[%s362 + $0x40] sm:$0xff] %v4301
        %4369 = vst [vmem:[%s362 + $0x48] sm:$0xff] %v4303
        %4370 = vst [vmem:[%s362 + $0x50] sm:$0xff] %v4306
        %4371 = vst [vmem:[%s362 + $0x58] sm:$0xff] %v4308
        %4372 = vst [vmem:[%s362 + $0x60] sm:$0xff] %v4311
        %4373 = vst [vmem:[%s362 + $0x68] sm:$0xff] %v4313
        %4374 = vst [vmem:[%s362 + $0x70] sm:$0xff] %v4316
        %4375 = vst [vmem:[%s362 + $0x78] sm:$0xff] %v4318
        %4376 = vst [vmem:[%s362 + $0x80] sm:$0xff] %v4321
        %4377 = vst [vmem:[%s362 + $0x88] sm:$0xff] %v4323
        %4378 = vst [vmem:[%s362 + $0x90] sm:$0xff] %v4326
        %4379 = vst [vmem:[%s362 + $0x98] sm:$0xff] %v4328
        %4380 = vst [vmem:[%s362 + $0xa0] sm:$0xff] %v4331
        %4381 = vst [vmem:[%s362 + $0xa8] sm:$0xff] %v4333
        %4382 = vst [vmem:[%s362 + $0xb0] sm:$0xff] %v4336
        %4383 = vst [vmem:[%s362 + $0xb8] sm:$0xff] %v4338
        %4384 = vst [vmem:[%s362 + $0xc0] sm:$0xff] %v4341
        %4385 = vst [vmem:[%s362 + $0xc8] sm:$0xff] %v4343
        %4386 = vst [vmem:[%s362 + $0xd0] sm:$0xff] %v4346
        %4387 = vst [vmem:[%s362 + $0xd8] sm:$0xff] %v4348
        %4388 = vst [vmem:[%s362 + $0xe0] sm:$0xff] %v4351
        %4389 = vst [vmem:[%s362 + $0xe8] sm:$0xff] %v4353
        %4390 = vst [vmem:[%s362 + $0xf0] sm:$0xff] %v4356
        %4391 = vst [vmem:[%s362 + $0xf8] sm:$0xff] %v4358
        %s4392 = sand.u32 %s186, 1
        %s4393 = scalar_lea.sflag [#allocation4], %s4392
        %s4394 = sand.u32 %s186, 1
        %s4395 = smul.addr %s4394, 256
        %s4396 = scalar_lea.vmem [#allocation11], %s4395
        // Predicated region
        $region69: #{tpu_custom_call.1} parent=47 // pred_check
          %p4397 = pneg %p196
        $region70: #{tpu_custom_call.1} parent=47 // pred_check_branch
          %4399 = sbr.rel (%p4397) target = $region72
        $region71: #{tpu_custom_call.1} parent=47 // pred_region
          %s4400 = smul.u32 32, %s26
          %4402 = vsyncadd %s4393, 0
          %s4403 = smul.addr %s4400, 8
          %s4404 = scalar_lea.hbm %s7, %s4403
          %s4405 = sshll.u32 %s4396, 4
          %s4406 = int_to_ptr.vmem [resolvable:$true] %s4405
          %s4407 = sshll.u32 %s4404, 4
          %s4408 = int_to_ptr.hbm [resolvable:$true] %s4407
          %4413 = dma.vmem_to_hbm [thread:$0]  %s4406, 4096, %s4408, %s4393, 128, 128, 8
        $region72: #{tpu_custom_call.1} parent=47 // pred_fallthru
          _
      $region48: #{tpu_custom_call.1} parent=5 // pred_fallthru
        _
      %p4414 = scmp.le.s32.totalorder 2, %s21
      // Predicated region
      $region73: #{tpu_custom_call.1} parent=5 // pred_check
        %p4415 = pneg %p4414
      $region74: #{tpu_custom_call.1} parent=5 // pred_check_branch
        %4417 = sbr.rel (%p4415) target = $region76
      $region75: #{tpu_custom_call.1} parent=5 // pred_region
        %s4418 = ssub.s32 %s21, 2
        // Predicated region
        $region77: #{tpu_custom_call.1} parent=75 // pred_check
          %p4419 = pneg %p202
        $region78: #{tpu_custom_call.1} parent=75 // pred_check_branch
          %4421 = sbr.rel (%p4419) target = $region80
        $region79: #{tpu_custom_call.1} parent=75 // pred_region
          %s4422 = sand.u32 %s187, 1
          %s4423 = scalar_lea.sflag [#allocation4], %s4422
          %s4424 = sand.u32 %s187, 1
          %s4425 = smul.addr %s4424, 256
          %s4426 = scalar_lea.vmem [#allocation11], %s4425
          %4428 = dma.done %s4423, 4096
        $region80: #{tpu_custom_call.1} parent=75 // pred_fallthru
          _
      $region76: #{tpu_custom_call.1} parent=5 // pred_fallthru
        _
    $region6: #{tpu_custom_call.1} parent=1 // loop_footer
      %s25 = sadd.s32 1, %s21
    $region7: #{tpu_custom_call.1} parent=1 // loop_footer_branch
      %20 = sbr.rel target = $region3
    $region8: #{tpu_custom_call.1} parent=1 // loop_exit
      _
    %4429 = vsyncpa [#allocation3], 1
    %s4430 = scalar_lea.sflag [#allocation3], 1
    %4431 = vsyncpa %s4430, 1
    %4432 = vsyncpa [#allocation6], 1
    %4433 = vsyncpa [#allocation9], 1
    %4434 = vsyncpa [#allocation4], 1
    %s4435 = scalar_lea.sflag [#allocation4], 1
    %4436 = vsyncpa %s4435, 1

</llo_original>
